<compile_context>
chip_gen: v5e
topology: v5e:2x2
jax: 0.10.0
libtpu: 0.0.40
codegen_flags: <defaults>
</compile_context>

<pallas_src>
import functools

import jax
import jax.numpy as jnp
from jax import lax
from jax.experimental import pallas as pl
from jax.experimental.pallas import tpu as pltpu

LN_EPS = 1e-5  # PyTorch nn.LayerNorm default


def _layernorm(x, gamma, beta):
    mu = jnp.mean(x, axis=-1, keepdims=True)
    var = jnp.mean((x - mu) ** 2, axis=-1, keepdims=True)
    return (x - mu) * lax.rsqrt(var + LN_EPS) * gamma + beta


# ---------------------------------------------------------------------------
# Fused kernel: one (batch row, query tile) per grid step.
#   x1  = xq + Wout( MHA(LN1(x)) )
#   out = x1 + m * Wproj( m * relu(Wfc(LN2(x1))) )
# ---------------------------------------------------------------------------
def _fused_block_kernel(x_q_ref, x_kv_ref, amask_ref, tmask_ref,
                        ln1_g_ref, ln1_b_ref,
                        wq_t_ref, bq_ref, wkv_t_ref, bkv_ref,
                        wout_t_ref, bout_ref,
                        ln2_g_ref, ln2_b_ref,
                        wfc_t_ref, bfc_ref, wproj_t_ref, bproj_ref,
                        o_ref, kt_ref, v_ref, ctx_ref,
                        *, n_head, approx_recip):
    f32 = jnp.float32
    cdt = wq_t_ref.dtype                     # MXU compute dtype (bf16 or f32)

    xq = x_q_ref[0]                           # (TQ, D) f32 query rows (residual stream)
    TQ, D = xq.shape
    hd = D // n_head
    g1 = ln1_g_ref[...]
    b1 = ln1_b_ref[...]

    # ---- K/V cache: computed once per batch row (first query tile only) ----
    @pl.when(pl.program_id(1) == 0)
    def _():
        xk = x_kv_ref[0].astype(f32)          # (L, D); streamed in cdt, LN in f32
        xk_n = _layernorm(xk, g1, b1).astype(cdt)
        kv = jnp.dot(xk_n, wkv_t_ref[...],
                     preferred_element_type=f32) + bkv_ref[...]   # (L, 2D) f32
        for h in range(n_head):               # once per batch row, not per tile
            lo = h * hd
            kt_ref[h] = kv[:, lo:lo + hd].astype(cdt).T           # (hd, L) pre-transposed
            v_ref[h] = kv[:, D + lo:D + lo + hd].astype(cdt)      # (L, hd)

    # ---- attention for this query tile ----
    xq_n = _layernorm(xq, g1, b1).astype(cdt)
    # softmax scale is folded into wq_t / bq in the wrapper
    q = jnp.dot(xq_n, wq_t_ref[...], preferred_element_type=f32) + bq_ref[...]
    add_mask = amask_ref[0]                   # (1, L): 0 = keep, -1e30 = masked key

    # Static unroll: n_head is small and slices are static; K^T / V are cached
    # head-major so there is no per-head XLU transpose, only small (TQ, hd)
    # q-slices / ctx-stores per head.
    for h in range(n_head):
        lo = h * hd
        qh = q[:, lo:lo + hd].astype(cdt)
        s = jnp.dot(qh, kt_ref[h], preferred_element_type=f32) + add_mask  # (TQ, L)
        s = s - jnp.max(s, axis=-1, keepdims=True)
        p = jnp.exp(s)
        l = jnp.sum(p, axis=-1, keepdims=True)
        # normalization deferred past P@V: scale (TQ, hd) ctx, not (TQ, L) probs
        ctx = jnp.dot(p.astype(cdt), v_ref[h], preferred_element_type=f32)
        ctx_ref[:, lo:lo + hd] = ctx * pl.reciprocal(l, approx=approx_recip)

    # one K=D output projection for all heads
    attn = jnp.dot(ctx_ref[...].astype(cdt), wout_t_ref[...],
                   preferred_element_type=f32) + bout_ref[...]
    x1 = xq + attn                            # first residual, stays in VMEM

    # ---- masked ReLU MLP ----
    tmask = tmask_ref[0]                      # (TQ, 1)
    x1_n = _layernorm(x1, ln2_g_ref[...], ln2_b_ref[...]).astype(cdt)
    hidden = jnp.dot(x1_n, wfc_t_ref[...], preferred_element_type=f32) + bfc_ref[...]
    hidden = jnp.maximum(hidden, 0.0) * tmask
    y = jnp.dot(hidden.astype(cdt), wproj_t_ref[...],
                preferred_element_type=f32) + bproj_ref[...]
    o_ref[0] = (x1 + y * tmask).astype(o_ref.dtype)


# ---------------------------------------------------------------------------
# Wrapper
# ---------------------------------------------------------------------------
def _choose_q_tile(L):
    """Whole sequence when small; otherwise a 256/128-ish divisor of L."""
    if L <= 256:
        return L
    for t in (256, 128, 64, 32, 16, 8):
        if L % t == 0:
            return t
    return L


def _vmem_capacity_bytes():
    try:
        cap = getattr(pltpu.get_tpu_info(), "vmem_capacity_bytes", None)
        if cap:
            return int(cap)
    except Exception:
        pass
    return 64 * 2 ** 20          # conservative fallback (v7x per-core VMEM)


def _vmem_limit_bytes(L, TQ, D, M, cdt, single_buffer_params):
    cb = jnp.dtype(cdt).itemsize
    wmult = 1 if single_buffer_params else 2
    weights = (4 * D * D + 2 * D * M) * cb * wmult         # Wq, Wkv, Wout, Wfc, Wproj
    small = (10 * D + 2 * M) * 4 * wmult                   # biases + LN params
    blocks = 2 * (2 * TQ * D * 4 + L * D * cb + L * 4 + TQ * 4)   # streamed blocks (x2 buf)
    scratch = 2 * D * L * cb + TQ * D * 4                  # K^T + V caches + ctx
    temps = (2 * L * D * 4 + L * D * cb                    # KV projection + LN'd keys (tile 0)
             + 2 * TQ * D * 4 + 3 * TQ * L * 4             # q / x1, score+prob temporaries
             + 2 * TQ * M * 4)                             # MLP hidden
    est = weights + small + blocks + scratch + int(1.5 * temps)
    budget = int(_vmem_capacity_bytes() * 0.85)            # headroom for Mosaic scratch
    return int(min(budget, max(est, 32 * 2 ** 20)))


def residual_attention_block(x_lbd, mask_lb, params, n_head,
                             compute_dtype=jnp.bfloat16, q_tile=None):
    L, B, D = x_lbd.shape
    M = params['w_fc'].shape[0]
    assert D % n_head == 0
    hd = D // n_head
    f32 = jnp.float32
    cdt = jnp.dtype(compute_dtype)
    approx_recip = bool(cdt != jnp.dtype(jnp.float32))

    TQ = _choose_q_tile(L) if q_tile is None else q_tile
    assert L % TQ == 0
    NQ = L // TQ

    # TODO(synk): accept/return (B, L, D) activations directly so XLA can elide
    # these full-activation HBM transposes.
    x_bld = jnp.transpose(x_lbd, (1, 0, 2)).astype(f32)      # (B, L, D) query/residual stream
    x_kv = x_bld.astype(cdt)                                 # K/V stream in compute dtype (bf16)
    mask_bl = jnp.transpose(mask_lb, (1, 0)).astype(f32)     # (B, L)
    # additive key mask, finite large negative -> robust to fully-masked rows
    add_mask = ((mask_bl - 1.0) * 1e30).reshape(B, 1, L)
    tok_mask = mask_bl.reshape(B, L, 1)                      # per-token MLP mask

    # weight prep: transpose once, fold softmax scale into Wq/bq, cast MXU operands
    scale = 1.0 / float(hd) ** 0.5
    wq_t = (jnp.transpose(params['w_qkv'][:D]) * scale).astype(cdt)   # (D, D)
    bq = (params['b_qkv'][:D] * scale).reshape(1, D).astype(f32)
    wkv_t = jnp.transpose(params['w_qkv'][D:]).astype(cdt)            # (D, 2D)
    bkv = params['b_qkv'][D:].reshape(1, 2 * D).astype(f32)
    wout_t = jnp.transpose(params['w_out']).astype(cdt)               # (D, D)
    wfc_t = jnp.transpose(params['w_fc']).astype(cdt)                 # (D, M)
    wproj_t = jnp.transpose(params['w_proj']).astype(cdt)             # (M, D)

    operands = (x_bld, x_kv, add_mask, tok_mask,
                params['ln1_g'].reshape(1, D).astype(f32),
                params['ln1_b'].reshape(1, D).astype(f32),
                wq_t, bq, wkv_t, bkv,
                wout_t, params['b_out'].reshape(1, D).astype(f32),
                params['ln2_g'].reshape(1, D).astype(f32),
                params['ln2_b'].reshape(1, D).astype(f32),
                wfc_t, params['b_fc'].reshape(1, M).astype(f32),
                wproj_t, params['b_proj'].reshape(1, D).astype(f32))

    cb = cdt.itemsize
    cost = pl.CostEstimate(
        flops=int(2 * B * L * D * (3 * D + 2 * L + D + 2 * M)),
        transcendentals=int(B * n_head * L * L),
        bytes_accessed=int(B * L * D * (2 * 4 + cb) + B * L * 4
                           + (4 * D * D + 2 * D * M) * cb))

    def build_and_call(single_buffer_params):
        if single_buffer_params:
            # constant-index params never change block -> single-buffer them
            def p_spec(shape):
                return pl.BlockSpec(shape, lambda b, q: (0,) * len(shape),
                                    pipeline_mode=pl.Buffered(1))
        else:
            def p_spec(shape):
                return pl.BlockSpec(shape, lambda b, q: (0,) * len(shape))

        in_specs = [
            pl.BlockSpec((1, TQ, D), lambda b, q: (b, q, 0)),   # x query tile (f32)
            pl.BlockSpec((1, L, D), lambda b, q: (b, 0, 0)),    # x K/V rows (cdt), DMA'd once per b
            pl.BlockSpec((1, 1, L), lambda b, q: (b, 0, 0)),    # additive key mask
            pl.BlockSpec((1, TQ, 1), lambda b, q: (b, q, 0)),   # per-token MLP mask
            p_spec((1, D)), p_spec((1, D)),                     # ln1 gamma/beta
            p_spec((D, D)), p_spec((1, D)),                     # Wq^T (pre-scaled), bq
            p_spec((D, 2 * D)), p_spec((1, 2 * D)),             # Wkv^T, bkv
            p_spec((D, D)), p_spec((1, D)),                     # Wout^T, bout
            p_spec((1, D)), p_spec((1, D)),                     # ln2 gamma/beta
            p_spec((D, M)), p_spec((1, M)),                     # Wfc^T, bfc
            p_spec((M, D)), p_spec((1, D)),                     # Wproj^T, bproj
        ]
        return pl.pallas_call(
            functools.partial(_fused_block_kernel, n_head=n_head,
                              approx_recip=approx_recip),
            out_shape=jax.ShapeDtypeStruct((B, L, D), f32),
            grid=(B, NQ),
            in_specs=in_specs,
            out_specs=pl.BlockSpec((1, TQ, D), lambda b, q: (b, q, 0)),
            scratch_shapes=[
                pltpu.VMEM((n_head, hd, L), cdt),    # K^T cache (head-major, per batch row)
                pltpu.VMEM((n_head, L, hd), cdt),    # V   cache (head-major, per batch row)
                pltpu.VMEM((TQ, D), f32),            # per-tile context buffer
            ],
            compiler_params=pltpu.CompilerParams(
                # q-tile axis must be "arbitrary": K/V scratch is reused across it
                dimension_semantics=("parallel", "arbitrary"),
                vmem_limit_bytes=_vmem_limit_bytes(
                    L, TQ, D, M, cdt, single_buffer_params)),
            cost_estimate=cost,
        )(*operands)

    try:
        out_bld = jax.block_until_ready(build_and_call(True))
    except Exception:
        # pl.Buffered(1) / pipeline_mode unsupported on this jax build -> default buffering
        out_bld = build_and_call(False)

    return jnp.transpose(out_bld, (1, 0, 2)), mask_lb


# ---------------------------------------------------------------------------
# Pure-JAX reference (mirrors the PyTorch forward) for a correctness check
# ---------------------------------------------------------------------------
def reference(x_lbd, mask_lb, params, n_head):
    L, B, D = x_lbd.shape
    hd = D // n_head

    def ln(x, g, b):
        mu = x.mean(-1, keepdims=True)
        var = ((x - mu) ** 2).mean(-1, keepdims=True)
        return (x - mu) / jnp.sqrt(var + LN_EPS) * g + b

    xn = ln(x_lbd, params['ln1_g'], params['ln1_b'])
    qkv = xn @ params['w_qkv'].T + params['b_qkv']
    q, k, v = jnp.split(qkv, 3, axis=-1)
    to_head = lambda t: jnp.transpose(t.reshape(L, B, n_head, hd), (1, 2, 0, 3))
    qh, kh, vh = to_head(q), to_head(k), to_head(v)
    scores = jnp.einsum('bhld,bhmd->bhlm', qh, kh) / jnp.sqrt(jnp.float32(hd))
    add = jnp.where(mask_lb.T == 0, -jnp.inf, 0.0)[:, None, None, :]
    p = jax.nn.softmax(scores + add, axis=-1)
    ctx = jnp.einsum('bhlm,bhmd->bhld', p, vh)
    ctx = jnp.transpose(ctx, (2, 0, 1, 3)).reshape(L, B, D)
    x = x_lbd + ctx @ params['w_out'].T + params['b_out']

    xn2 = ln(x, params['ln2_g'], params['ln2_b'])
    h = jax.nn.relu(xn2 @ params['w_fc'].T + params['b_fc']) * mask_lb[..., None]
    y = (h @ params['w_proj'].T + params['b_proj']) * mask_lb[..., None]
    return x + y, mask_lb


if __name__ == "__main__":
    L, B, D, H, MLP = 8, 2, 32, 4, 64

    key = jax.random.PRNGKey(0)
    ks = jax.random.split(key, 16)
    init = lambda k, shape, s=0.05: (s * jax.random.normal(k, shape)).astype(jnp.float32)

    params = dict(
        ln1_g=(1.0 + init(ks[0], (D,), 0.1)), ln1_b=init(ks[1], (D,), 0.1),
        w_qkv=init(ks[2], (3 * D, D)), b_qkv=init(ks[3], (3 * D,)),
        w_out=init(ks[4], (D, D)), b_out=init(ks[5], (D,)),
        ln2_g=(1.0 + init(ks[6], (D,), 0.1)), ln2_b=init(ks[7], (D,), 0.1),
        w_fc=init(ks[8], (MLP, D), 0.1), b_fc=init(ks[9], (MLP,), 0.1),
        w_proj=init(ks[10], (D, MLP), 0.1), b_proj=init(ks[11], (D,), 0.1),
    )

    x = jax.random.normal(ks[12], (L, B, D), jnp.float32)
    mask = (jax.random.uniform(ks[13], (L, B)) > 0.3).astype(jnp.float32)
    mask = mask.at[0, :].set(1.0)   # at least one unmasked key per batch row

    ref, _ = reference(x, mask, params, n_head=H)

    # float32 compute path: tight semantic check (exact softmax reciprocal)
    out_f32, out_mask = residual_attention_block(
        x, mask, params, n_head=H, compute_dtype=jnp.float32)
    out_f32 = jax.block_until_ready(out_f32)
    assert out_f32.shape == (L, B, D) and out_mask.shape == (L, B)
    err_f32 = float(jnp.max(jnp.abs(out_f32 - ref)))
    assert err_f32 < 5e-3, f"f32 max err {err_f32}"

    # bfloat16 MXU path (performance configuration): looser tolerance
    out_bf16, _ = residual_attention_block(
        x, mask, params, n_head=H, compute_dtype=jnp.bfloat16)
    out_bf16 = jax.block_until_ready(out_bf16)
    err_bf16 = float(jnp.max(jnp.abs(out_bf16 - ref)))
    assert err_bf16 < 7e-2, f"bf16 max err {err_bf16}"

    print("KERNEL_OK")
</pallas_src>

<mosaic_0001>
module attributes {stable_mosaic.version = 11 : i64} {
  func.func @_fused_block_kernel(%arg0: i32, %arg1: i32, %arg2: memref<1x8x32xf32, #tpu.memory_space<vmem>>, %arg3: memref<1x8x32xf32, #tpu.memory_space<vmem>>, %arg4: memref<1x1x8xf32, #tpu.memory_space<vmem>>, %arg5: memref<1x8x1xf32, #tpu.memory_space<vmem>>, %arg6: memref<1x32xf32, #tpu.memory_space<vmem>>, %arg7: memref<1x32xf32, #tpu.memory_space<vmem>>, %arg8: memref<32x32xf32, #tpu.memory_space<vmem>>, %arg9: memref<1x32xf32, #tpu.memory_space<vmem>>, %arg10: memref<32x64xf32, #tpu.memory_space<vmem>>, %arg11: memref<1x64xf32, #tpu.memory_space<vmem>>, %arg12: memref<32x32xf32, #tpu.memory_space<vmem>>, %arg13: memref<1x32xf32, #tpu.memory_space<vmem>>, %arg14: memref<1x32xf32, #tpu.memory_space<vmem>>, %arg15: memref<1x32xf32, #tpu.memory_space<vmem>>, %arg16: memref<32x64xf32, #tpu.memory_space<vmem>>, %arg17: memref<1x64xf32, #tpu.memory_space<vmem>>, %arg18: memref<64x32xf32, #tpu.memory_space<vmem>>, %arg19: memref<1x32xf32, #tpu.memory_space<vmem>>, %arg20: memref<1x8x32xf32, #tpu.memory_space<vmem>>, %arg21: memref<4x8x8xf32, #tpu.memory_space<vmem>>, %arg22: memref<4x8x8xf32, #tpu.memory_space<vmem>>, %arg23: memref<8x32xf32, #tpu.memory_space<vmem>>) attributes {dimension_semantics = [#tpu.dimension_semantics<parallel>, #tpu.dimension_semantics<arbitrary>], iteration_bounds = array<i64: 2, 1>, scalar_prefetch = 0 : i64, scratch_operands = 3 : i64, tpu.core_type = #tpu.core_type<tc>, window_params = [{transform_indices = @transform_0, window_bounds = array<i64: 1, 8, 32>}, {transform_indices = @transform_1, window_bounds = array<i64: 1, 8, 32>}, {transform_indices = @transform_2, window_bounds = array<i64: 1, 1, 8>}, {transform_indices = @transform_3, window_bounds = array<i64: 1, 8, 1>}, {pipeline_mode = #tpu.pipeline_mode<synchronous>, transform_indices = @transform_4, window_bounds = array<i64: 1, 32>}, {pipeline_mode = #tpu.pipeline_mode<synchronous>, transform_indices = @transform_5, window_bounds = array<i64: 1, 32>}, {pipeline_mode = #tpu.pipeline_mode<synchronous>, transform_indices = @transform_6, window_bounds = array<i64: 32, 32>}, {pipeline_mode = #tpu.pipeline_mode<synchronous>, transform_indices = @transform_7, window_bounds = array<i64: 1, 32>}, {pipeline_mode = #tpu.pipeline_mode<synchronous>, transform_indices = @transform_8, window_bounds = array<i64: 32, 64>}, {pipeline_mode = #tpu.pipeline_mode<synchronous>, transform_indices = @transform_9, window_bounds = array<i64: 1, 64>}, {pipeline_mode = #tpu.pipeline_mode<synchronous>, transform_indices = @transform_10, window_bounds = array<i64: 32, 32>}, {pipeline_mode = #tpu.pipeline_mode<synchronous>, transform_indices = @transform_11, window_bounds = array<i64: 1, 32>}, {pipeline_mode = #tpu.pipeline_mode<synchronous>, transform_indices = @transform_12, window_bounds = array<i64: 1, 32>}, {pipeline_mode = #tpu.pipeline_mode<synchronous>, transform_indices = @transform_13, window_bounds = array<i64: 1, 32>}, {pipeline_mode = #tpu.pipeline_mode<synchronous>, transform_indices = @transform_14, window_bounds = array<i64: 32, 64>}, {pipeline_mode = #tpu.pipeline_mode<synchronous>, transform_indices = @transform_15, window_bounds = array<i64: 1, 64>}, {pipeline_mode = #tpu.pipeline_mode<synchronous>, transform_indices = @transform_16, window_bounds = array<i64: 64, 32>}, {pipeline_mode = #tpu.pipeline_mode<synchronous>, transform_indices = @transform_17, window_bounds = array<i64: 1, 32>}, {transform_indices = @transform_18, window_bounds = array<i64: 1, 8, 32>}]} {
    %c0 = arith.constant 0 : index
    %c0_0 = arith.constant 0 : index
    %c0_1 = arith.constant 0 : index
    %0 = vector.load %arg2[%c0, %c0_0, %c0_1] : memref<1x8x32xf32, #tpu.memory_space<vmem>>, vector<1x8x32xf32>
    %1 = vector.shape_cast %0 : vector<1x8x32xf32> to vector<8x32xf32>
    %c0_2 = arith.constant 0 : index
    %c0_3 = arith.constant 0 : index
    %2 = vector.load %arg6[%c0_2, %c0_3] : memref<1x32xf32, #tpu.memory_space<vmem>>, vector<1x32xf32>
    %c0_4 = arith.constant 0 : index
    %c0_5 = arith.constant 0 : index
    %3 = vector.load %arg7[%c0_4, %c0_5] : memref<1x32xf32, #tpu.memory_space<vmem>>, vector<1x32xf32>
    %c0_i32 = arith.constant 0 : i32
    %4 = arith.cmpi eq, %arg1, %c0_i32 : i32
    %5 = arith.extui %4 : i1 to i32
    %c0_i32_6 = arith.constant 0 : i32
    %6 = arith.cmpi ne, %5, %c0_i32_6 : i32
    scf.if %6 {
      %c0_94 = arith.constant 0 : index
      %c0_95 = arith.constant 0 : index
      %c0_96 = arith.constant 0 : index
      %169 = vector.load %arg3[%c0_94, %c0_95, %c0_96] : memref<1x8x32xf32, #tpu.memory_space<vmem>>, vector<1x8x32xf32>
      %170 = vector.shape_cast %169 : vector<1x8x32xf32> to vector<8x32xf32>
      %cst_97 = arith.constant dense<0.000000e+00> : vector<8xf32>
      %171 = vector.multi_reduction <add>, %170, %cst_97 [1] : vector<8x32xf32> to vector<8xf32>
      %172 = vector.shape_cast %171 : vector<8xf32> to vector<8x1xf32>
      %cst_98 = arith.constant 3.200000e+01 : f32
      %173 = vector.broadcast %cst_98 : f32 to vector<8x1xf32>
      %174 = arith.divf %172, %173 : vector<8x1xf32>
      %175 = vector.broadcast %174 : vector<8x1xf32> to vector<8x32xf32>
      %176 = arith.subf %170, %175 : vector<8x32xf32>
      %177 = arith.mulf %176, %176 : vector<8x32xf32>
      %cst_99 = arith.constant dense<0.000000e+00> : vector<8xf32>
      %178 = vector.multi_reduction <add>, %177, %cst_99 [1] : vector<8x32xf32> to vector<8xf32>
      %179 = vector.shape_cast %178 : vector<8xf32> to vector<8x1xf32>
      %cst_100 = arith.constant 3.200000e+01 : f32
      %180 = vector.broadcast %cst_100 : f32 to vector<8x1xf32>
      %181 = arith.divf %179, %180 : vector<8x1xf32>
      %182 = vector.broadcast %174 : vector<8x1xf32> to vector<8x32xf32>
      %183 = arith.subf %170, %182 : vector<8x32xf32>
      %cst_101 = arith.constant 9.99999974E-6 : f32
      %184 = vector.broadcast %cst_101 : f32 to vector<8x1xf32>
      %185 = arith.addf %181, %184 : vector<8x1xf32>
      %186 = math.rsqrt %185 : vector<8x1xf32>
      %187 = vector.broadcast %186 : vector<8x1xf32> to vector<8x32xf32>
      %188 = arith.mulf %183, %187 : vector<8x32xf32>
      %189 = vector.broadcast %2 : vector<1x32xf32> to vector<8x32xf32>
      %190 = arith.mulf %188, %189 : vector<8x32xf32>
      %191 = vector.broadcast %3 : vector<1x32xf32> to vector<8x32xf32>
      %192 = arith.addf %190, %191 : vector<8x32xf32>
      %c0_102 = arith.constant 0 : index
      %c0_103 = arith.constant 0 : index
      %193 = vector.load %arg10[%c0_102, %c0_103] : memref<32x64xf32, #tpu.memory_space<vmem>>, vector<32x64xf32>
      %cst_104 = arith.constant dense<0.000000e+00> : vector<8x64xf32>
      %194 = tpu.matmul %192, %193, %cst_104 {dimension_numbers = #tpu.dot_dimension_numbers<[1], [0], [0], [1], [0, 0, 1, 1], [], []>} : vector<8x32xf32>, vector<32x64xf32>, vector<8x64xf32> -> vector<8x64xf32>
      %c0_105 = arith.constant 0 : index
      %c0_106 = arith.constant 0 : index
      %195 = vector.load %arg11[%c0_105, %c0_106] : memref<1x64xf32, #tpu.memory_space<vmem>>, vector<1x64xf32>
      %196 = vector.broadcast %195 : vector<1x64xf32> to vector<8x64xf32>
      %197 = arith.addf %194, %196 : vector<8x64xf32>
      %198 = vector.extract_strided_slice %197 {offsets = [0, 0], sizes = [8, 8], strides = [1, 1]} : vector<8x64xf32> to vector<8x8xf32>
      %199 = tpu.transpose %198, [1, 0] : vector<8x8xf32> -> vector<8x8xf32>
      %c0_107 = arith.constant 0 : index
      %c0_108 = arith.constant 0 : index
      %c0_109 = arith.constant 0 : index
      %200 = vector.load %arg21[%c0_107, %c0_108, %c0_109] : memref<4x8x8xf32, #tpu.memory_space<vmem>>, vector<1x8x8xf32>
      %201 = vector.shape_cast %200 : vector<1x8x8xf32> to vector<8x8xf32>
      %202 = vector.shape_cast %199 : vector<8x8xf32> to vector<1x8x8xf32>
      tpu.vector_store %arg21[%c0_107, %c0_108, %c0_109], %202 {strides = array<i32>} : memref<4x8x8xf32, #tpu.memory_space<vmem>>, vector<1x8x8xf32>,
      %203 = vector.extract_strided_slice %197 {offsets = [0, 32], sizes = [8, 8], strides = [1, 1]} : vector<8x64xf32> to vector<8x8xf32>
      %c0_110 = arith.constant 0 : index
      %c0_111 = arith.constant 0 : index
      %c0_112 = arith.constant 0 : index
      %204 = vector.load %arg22[%c0_110, %c0_111, %c0_112] : memref<4x8x8xf32, #tpu.memory_space<vmem>>, vector<1x8x8xf32>
      %205 = vector.shape_cast %204 : vector<1x8x8xf32> to vector<8x8xf32>
      %206 = vector.shape_cast %203 : vector<8x8xf32> to vector<1x8x8xf32>
      tpu.vector_store %arg22[%c0_110, %c0_111, %c0_112], %206 {strides = array<i32>} : memref<4x8x8xf32, #tpu.memory_space<vmem>>, vector<1x8x8xf32>,
      %207 = vector.extract_strided_slice %197 {offsets = [0, 8], sizes = [8, 8], strides = [1, 1]} : vector<8x64xf32> to vector<8x8xf32>
      %208 = tpu.transpose %207, [1, 0] : vector<8x8xf32> -> vector<8x8xf32>
      %c1_113 = arith.constant 1 : index
      %c0_114 = arith.constant 0 : index
      %c0_115 = arith.constant 0 : index
      %209 = vector.load %arg21[%c1_113, %c0_114, %c0_115] : memref<4x8x8xf32, #tpu.memory_space<vmem>>, vector<1x8x8xf32>
      %210 = vector.shape_cast %209 : vector<1x8x8xf32> to vector<8x8xf32>
      %211 = vector.shape_cast %208 : vector<8x8xf32> to vector<1x8x8xf32>
      tpu.vector_store %arg21[%c1_113, %c0_114, %c0_115], %211 {strides = array<i32>} : memref<4x8x8xf32, #tpu.memory_space<vmem>>, vector<1x8x8xf32>,
      %212 = vector.extract_strided_slice %197 {offsets = [0, 40], sizes = [8, 8], strides = [1, 1]} : vector<8x64xf32> to vector<8x8xf32>
      %c1_116 = arith.constant 1 : index
      %c0_117 = arith.constant 0 : index
      %c0_118 = arith.constant 0 : index
      %213 = vector.load %arg22[%c1_116, %c0_117, %c0_118] : memref<4x8x8xf32, #tpu.memory_space<vmem>>, vector<1x8x8xf32>
      %214 = vector.shape_cast %213 : vector<1x8x8xf32> to vector<8x8xf32>
      %215 = vector.shape_cast %212 : vector<8x8xf32> to vector<1x8x8xf32>
      tpu.vector_store %arg22[%c1_116, %c0_117, %c0_118], %215 {strides = array<i32>} : memref<4x8x8xf32, #tpu.memory_space<vmem>>, vector<1x8x8xf32>,
      %216 = vector.extract_strided_slice %197 {offsets = [0, 16], sizes = [8, 8], strides = [1, 1]} : vector<8x64xf32> to vector<8x8xf32>
      %217 = tpu.transpose %216, [1, 0] : vector<8x8xf32> -> vector<8x8xf32>
      %c2_119 = arith.constant 2 : index
      %c0_120 = arith.constant 0 : index
      %c0_121 = arith.constant 0 : index
      %218 = vector.load %arg21[%c2_119, %c0_120, %c0_121] : memref<4x8x8xf32, #tpu.memory_space<vmem>>, vector<1x8x8xf32>
      %219 = vector.shape_cast %218 : vector<1x8x8xf32> to vector<8x8xf32>
      %220 = vector.shape_cast %217 : vector<8x8xf32> to vector<1x8x8xf32>
      tpu.vector_store %arg21[%c2_119, %c0_120, %c0_121], %220 {strides = array<i32>} : memref<4x8x8xf32, #tpu.memory_space<vmem>>, vector<1x8x8xf32>,
      %221 = vector.extract_strided_slice %197 {offsets = [0, 48], sizes = [8, 8], strides = [1, 1]} : vector<8x64xf32> to vector<8x8xf32>
      %c2_122 = arith.constant 2 : index
      %c0_123 = arith.constant 0 : index
      %c0_124 = arith.constant 0 : index
      %222 = vector.load %arg22[%c2_122, %c0_123, %c0_124] : memref<4x8x8xf32, #tpu.memory_space<vmem>>, vector<1x8x8xf32>
      %223 = vector.shape_cast %222 : vector<1x8x8xf32> to vector<8x8xf32>
      %224 = vector.shape_cast %221 : vector<8x8xf32> to vector<1x8x8xf32>
      tpu.vector_store %arg22[%c2_122, %c0_123, %c0_124], %224 {strides = array<i32>} : memref<4x8x8xf32, #tpu.memory_space<vmem>>, vector<1x8x8xf32>,
      %225 = vector.extract_strided_slice %197 {offsets = [0, 24], sizes = [8, 8], strides = [1, 1]} : vector<8x64xf32> to vector<8x8xf32>
      %226 = tpu.transpose %225, [1, 0] : vector<8x8xf32> -> vector<8x8xf32>
      %c3_125 = arith.constant 3 : index
      %c0_126 = arith.constant 0 : index
      %c0_127 = arith.constant 0 : index
      %227 = vector.load %arg21[%c3_125, %c0_126, %c0_127] : memref<4x8x8xf32, #tpu.memory_space<vmem>>, vector<1x8x8xf32>
      %228 = vector.shape_cast %227 : vector<1x8x8xf32> to vector<8x8xf32>
      %229 = vector.shape_cast %226 : vector<8x8xf32> to vector<1x8x8xf32>
      tpu.vector_store %arg21[%c3_125, %c0_126, %c0_127], %229 {strides = array<i32>} : memref<4x8x8xf32, #tpu.memory_space<vmem>>, vector<1x8x8xf32>,
      %230 = vector.extract_strided_slice %197 {offsets = [0, 56], sizes = [8, 8], strides = [1, 1]} : vector<8x64xf32> to vector<8x8xf32>
      %c3_128 = arith.constant 3 : index
      %c0_129 = arith.constant 0 : index
      %c0_130 = arith.constant 0 : index
      %231 = vector.load %arg22[%c3_128, %c0_129, %c0_130] : memref<4x8x8xf32, #tpu.memory_space<vmem>>, vector<1x8x8xf32>
      %232 = vector.shape_cast %231 : vector<1x8x8xf32> to vector<8x8xf32>
      %233 = vector.shape_cast %230 : vector<8x8xf32> to vector<1x8x8xf32>
      tpu.vector_store %arg22[%c3_128, %c0_129, %c0_130], %233 {strides = array<i32>} : memref<4x8x8xf32, #tpu.memory_space<vmem>>, vector<1x8x8xf32>,
    } else {
    }
    %cst = arith.constant dense<0.000000e+00> : vector<8xf32>
    %7 = vector.multi_reduction <add>, %1, %cst [1] : vector<8x32xf32> to vector<8xf32>
    %8 = vector.shape_cast %7 : vector<8xf32> to vector<8x1xf32>
    %cst_7 = arith.constant 3.200000e+01 : f32
    %9 = vector.broadcast %cst_7 : f32 to vector<8x1xf32>
    %10 = arith.divf %8, %9 : vector<8x1xf32>
    %11 = vector.broadcast %10 : vector<8x1xf32> to vector<8x32xf32>
    %12 = arith.subf %1, %11 : vector<8x32xf32>
    %13 = arith.mulf %12, %12 : vector<8x32xf32>
    %cst_8 = arith.constant dense<0.000000e+00> : vector<8xf32>
    %14 = vector.multi_reduction <add>, %13, %cst_8 [1] : vector<8x32xf32> to vector<8xf32>
    %15 = vector.shape_cast %14 : vector<8xf32> to vector<8x1xf32>
    %cst_9 = arith.constant 3.200000e+01 : f32
    %16 = vector.broadcast %cst_9 : f32 to vector<8x1xf32>
    %17 = arith.divf %15, %16 : vector<8x1xf32>
    %18 = vector.broadcast %10 : vector<8x1xf32> to vector<8x32xf32>
    %19 = arith.subf %1, %18 : vector<8x32xf32>
    %cst_10 = arith.constant 9.99999974E-6 : f32
    %20 = vector.broadcast %cst_10 : f32 to vector<8x1xf32>
    %21 = arith.addf %17, %20 : vector<8x1xf32>
    %22 = math.rsqrt %21 : vector<8x1xf32>
    %23 = vector.broadcast %22 : vector<8x1xf32> to vector<8x32xf32>
    %24 = arith.mulf %19, %23 : vector<8x32xf32>
    %25 = vector.broadcast %2 : vector<1x32xf32> to vector<8x32xf32>
    %26 = arith.mulf %24, %25 : vector<8x32xf32>
    %27 = vector.broadcast %3 : vector<1x32xf32> to vector<8x32xf32>
    %28 = arith.addf %26, %27 : vector<8x32xf32>
    %c0_11 = arith.constant 0 : index
    %c0_12 = arith.constant 0 : index
    %29 = vector.load %arg8[%c0_11, %c0_12] : memref<32x32xf32, #tpu.memory_space<vmem>>, vector<32x32xf32>
    %cst_13 = arith.constant dense<0.000000e+00> : vector<8x32xf32>
    %30 = tpu.matmul %28, %29, %cst_13 {dimension_numbers = #tpu.dot_dimension_numbers<[1], [0], [0], [1], [0, 0, 1, 1], [], []>} : vector<8x32xf32>, vector<32x32xf32>, vector<8x32xf32> -> vector<8x32xf32>
    %c0_14 = arith.constant 0 : index
    %c0_15 = arith.constant 0 : index
    %31 = vector.load %arg9[%c0_14, %c0_15] : memref<1x32xf32, #tpu.memory_space<vmem>>, vector<1x32xf32>
    %32 = vector.broadcast %31 : vector<1x32xf32> to vector<8x32xf32>
    %33 = arith.addf %30, %32 : vector<8x32xf32>
    %c0_16 = arith.constant 0 : index
    %c0_17 = arith.constant 0 : index
    %c0_18 = arith.constant 0 : index
    %34 = vector.load %arg4[%c0_16, %c0_17, %c0_18] : memref<1x1x8xf32, #tpu.memory_space<vmem>>, vector<1x1x8xf32>
    %35 = vector.shape_cast %34 : vector<1x1x8xf32> to vector<1x8xf32>
    %36 = vector.extract_strided_slice %33 {offsets = [0, 0], sizes = [8, 8], strides = [1, 1]} : vector<8x32xf32> to vector<8x8xf32>
    %c0_19 = arith.constant 0 : index
    %c0_20 = arith.constant 0 : index
    %c0_21 = arith.constant 0 : index
    %37 = vector.load %arg21[%c0_19, %c0_20, %c0_21] : memref<4x8x8xf32, #tpu.memory_space<vmem>>, vector<1x8x8xf32>
    %38 = vector.shape_cast %37 : vector<1x8x8xf32> to vector<8x8xf32>
    %cst_22 = arith.constant dense<0.000000e+00> : vector<8x8xf32>
    %39 = tpu.matmul %36, %38, %cst_22 {dimension_numbers = #tpu.dot_dimension_numbers<[1], [0], [0], [1], [0, 0, 1, 1], [], []>} : vector<8x8xf32>, vector<8x8xf32>, vector<8x8xf32> -> vector<8x8xf32>
    %40 = vector.broadcast %35 : vector<1x8xf32> to vector<8x8xf32>
    %41 = arith.addf %39, %40 : vector<8x8xf32>
    %cst_23 = arith.constant dense<0xFF800000> : vector<8xf32>
    %42 = vector.multi_reduction <maximumf>, %41, %cst_23 [1] : vector<8x8xf32> to vector<8xf32>
    %43 = vector.shape_cast %42 : vector<8xf32> to vector<8x1xf32>
    %44 = vector.broadcast %43 : vector<8x1xf32> to vector<8x8xf32>
    %45 = arith.subf %41, %44 : vector<8x8xf32>
    %46 = math.exp %45 : vector<8x8xf32>
    %cst_24 = arith.constant dense<0.000000e+00> : vector<8xf32>
    %47 = vector.multi_reduction <add>, %46, %cst_24 [1] : vector<8x8xf32> to vector<8xf32>
    %48 = vector.shape_cast %47 : vector<8xf32> to vector<8x1xf32>
    %c0_25 = arith.constant 0 : index
    %c0_26 = arith.constant 0 : index
    %c0_27 = arith.constant 0 : index
    %49 = vector.load %arg22[%c0_25, %c0_26, %c0_27] : memref<4x8x8xf32, #tpu.memory_space<vmem>>, vector<1x8x8xf32>
    %50 = vector.shape_cast %49 : vector<1x8x8xf32> to vector<8x8xf32>
    %cst_28 = arith.constant dense<0.000000e+00> : vector<8x8xf32>
    %51 = tpu.matmul %46, %50, %cst_28 {dimension_numbers = #tpu.dot_dimension_numbers<[1], [0], [0], [1], [0, 0, 1, 1], [], []>} : vector<8x8xf32>, vector<8x8xf32>, vector<8x8xf32> -> vector<8x8xf32>
    %52 = tpu.reciprocal %48 : vector<8x1xf32> -> vector<8x1xf32>
    %53 = vector.broadcast %52 : vector<8x1xf32> to vector<8x8xf32>
    %54 = arith.mulf %51, %53 : vector<8x8xf32>
    %c0_29 = arith.constant 0 : index
    %c0_30 = arith.constant 0 : index
    %55 = vector.load %arg23[%c0_29, %c0_30] : memref<8x32xf32, #tpu.memory_space<vmem>>, vector<8x8xf32>
    tpu.vector_store %arg23[%c0_29, %c0_30], %54 {strides = array<i32>} : memref<8x32xf32, #tpu.memory_space<vmem>>, vector<8x8xf32>,
    %56 = vector.extract_strided_slice %33 {offsets = [0, 8], sizes = [8, 8], strides = [1, 1]} : vector<8x32xf32> to vector<8x8xf32>
    %c1 = arith.constant 1 : index
    %c0_31 = arith.constant 0 : index
    %c0_32 = arith.constant 0 : index
    %57 = vector.load %arg21[%c1, %c0_31, %c0_32] : memref<4x8x8xf32, #tpu.memory_space<vmem>>, vector<1x8x8xf32>
    %58 = vector.shape_cast %57 : vector<1x8x8xf32> to vector<8x8xf32>
    %cst_33 = arith.constant dense<0.000000e+00> : vector<8x8xf32>
    %59 = tpu.matmul %56, %58, %cst_33 {dimension_numbers = #tpu.dot_dimension_numbers<[1], [0], [0], [1], [0, 0, 1, 1], [], []>} : vector<8x8xf32>, vector<8x8xf32>, vector<8x8xf32> -> vector<8x8xf32>
    %60 = vector.broadcast %35 : vector<1x8xf32> to vector<8x8xf32>
    %61 = arith.addf %59, %60 : vector<8x8xf32>
    %cst_34 = arith.constant dense<0xFF800000> : vector<8xf32>
    %62 = vector.multi_reduction <maximumf>, %61, %cst_34 [1] : vector<8x8xf32> to vector<8xf32>
    %63 = vector.shape_cast %62 : vector<8xf32> to vector<8x1xf32>
    %64 = vector.broadcast %63 : vector<8x1xf32> to vector<8x8xf32>
    %65 = arith.subf %61, %64 : vector<8x8xf32>
    %66 = math.exp %65 : vector<8x8xf32>
    %cst_35 = arith.constant dense<0.000000e+00> : vector<8xf32>
    %67 = vector.multi_reduction <add>, %66, %cst_35 [1] : vector<8x8xf32> to vector<8xf32>
    %68 = vector.shape_cast %67 : vector<8xf32> to vector<8x1xf32>
    %c1_36 = arith.constant 1 : index
    %c0_37 = arith.constant 0 : index
    %c0_38 = arith.constant 0 : index
    %69 = vector.load %arg22[%c1_36, %c0_37, %c0_38] : memref<4x8x8xf32, #tpu.memory_space<vmem>>, vector<1x8x8xf32>
    %70 = vector.shape_cast %69 : vector<1x8x8xf32> to vector<8x8xf32>
    %cst_39 = arith.constant dense<0.000000e+00> : vector<8x8xf32>
    %71 = tpu.matmul %66, %70, %cst_39 {dimension_numbers = #tpu.dot_dimension_numbers<[1], [0], [0], [1], [0, 0, 1, 1], [], []>} : vector<8x8xf32>, vector<8x8xf32>, vector<8x8xf32> -> vector<8x8xf32>
    %72 = tpu.reciprocal %68 : vector<8x1xf32> -> vector<8x1xf32>
    %73 = vector.broadcast %72 : vector<8x1xf32> to vector<8x8xf32>
    %74 = arith.mulf %71, %73 : vector<8x8xf32>
    %c0_40 = arith.constant 0 : index
    %c8 = arith.constant 8 : index
    %75 = vector.load %arg23[%c0_40, %c8] : memref<8x32xf32, #tpu.memory_space<vmem>>, vector<8x8xf32>
    tpu.vector_store %arg23[%c0_40, %c8], %74 {strides = array<i32>} : memref<8x32xf32, #tpu.memory_space<vmem>>, vector<8x8xf32>,
    %76 = vector.extract_strided_slice %33 {offsets = [0, 16], sizes = [8, 8], strides = [1, 1]} : vector<8x32xf32> to vector<8x8xf32>
    %c2 = arith.constant 2 : index
    %c0_41 = arith.constant 0 : index
    %c0_42 = arith.constant 0 : index
    %77 = vector.load %arg21[%c2, %c0_41, %c0_42] : memref<4x8x8xf32, #tpu.memory_space<vmem>>, vector<1x8x8xf32>
    %78 = vector.shape_cast %77 : vector<1x8x8xf32> to vector<8x8xf32>
    %cst_43 = arith.constant dense<0.000000e+00> : vector<8x8xf32>
    %79 = tpu.matmul %76, %78, %cst_43 {dimension_numbers = #tpu.dot_dimension_numbers<[1], [0], [0], [1], [0, 0, 1, 1], [], []>} : vector<8x8xf32>, vector<8x8xf32>, vector<8x8xf32> -> vector<8x8xf32>
    %80 = vector.broadcast %35 : vector<1x8xf32> to vector<8x8xf32>
    %81 = arith.addf %79, %80 : vector<8x8xf32>
    %cst_44 = arith.constant dense<0xFF800000> : vector<8xf32>
    %82 = vector.multi_reduction <maximumf>, %81, %cst_44 [1] : vector<8x8xf32> to vector<8xf32>
    %83 = vector.shape_cast %82 : vector<8xf32> to vector<8x1xf32>
    %84 = vector.broadcast %83 : vector<8x1xf32> to vector<8x8xf32>
    %85 = arith.subf %81, %84 : vector<8x8xf32>
    %86 = math.exp %85 : vector<8x8xf32>
    %cst_45 = arith.constant dense<0.000000e+00> : vector<8xf32>
    %87 = vector.multi_reduction <add>, %86, %cst_45 [1] : vector<8x8xf32> to vector<8xf32>
    %88 = vector.shape_cast %87 : vector<8xf32> to vector<8x1xf32>
    %c2_46 = arith.constant 2 : index
    %c0_47 = arith.constant 0 : index
    %c0_48 = arith.constant 0 : index
    %89 = vector.load %arg22[%c2_46, %c0_47, %c0_48] : memref<4x8x8xf32, #tpu.memory_space<vmem>>, vector<1x8x8xf32>
    %90 = vector.shape_cast %89 : vector<1x8x8xf32> to vector<8x8xf32>
    %cst_49 = arith.constant dense<0.000000e+00> : vector<8x8xf32>
    %91 = tpu.matmul %86, %90, %cst_49 {dimension_numbers = #tpu.dot_dimension_numbers<[1], [0], [0], [1], [0, 0, 1, 1], [], []>} : vector<8x8xf32>, vector<8x8xf32>, vector<8x8xf32> -> vector<8x8xf32>
    %92 = tpu.reciprocal %88 : vector<8x1xf32> -> vector<8x1xf32>
    %93 = vector.broadcast %92 : vector<8x1xf32> to vector<8x8xf32>
    %94 = arith.mulf %91, %93 : vector<8x8xf32>
    %c0_50 = arith.constant 0 : index
    %c16 = arith.constant 16 : index
    %95 = vector.load %arg23[%c0_50, %c16] : memref<8x32xf32, #tpu.memory_space<vmem>>, vector<8x8xf32>
    tpu.vector_store %arg23[%c0_50, %c16], %94 {strides = array<i32>} : memref<8x32xf32, #tpu.memory_space<vmem>>, vector<8x8xf32>,
    %96 = vector.extract_strided_slice %33 {offsets = [0, 24], sizes = [8, 8], strides = [1, 1]} : vector<8x32xf32> to vector<8x8xf32>
    %c3 = arith.constant 3 : index
    %c0_51 = arith.constant 0 : index
    %c0_52 = arith.constant 0 : index
    %97 = vector.load %arg21[%c3, %c0_51, %c0_52] : memref<4x8x8xf32, #tpu.memory_space<vmem>>, vector<1x8x8xf32>
    %98 = vector.shape_cast %97 : vector<1x8x8xf32> to vector<8x8xf32>
    %cst_53 = arith.constant dense<0.000000e+00> : vector<8x8xf32>
    %99 = tpu.matmul %96, %98, %cst_53 {dimension_numbers = #tpu.dot_dimension_numbers<[1], [0], [0], [1], [0, 0, 1, 1], [], []>} : vector<8x8xf32>, vector<8x8xf32>, vector<8x8xf32> -> vector<8x8xf32>
    %100 = vector.broadcast %35 : vector<1x8xf32> to vector<8x8xf32>
    %101 = arith.addf %99, %100 : vector<8x8xf32>
    %cst_54 = arith.constant dense<0xFF800000> : vector<8xf32>
    %102 = vector.multi_reduction <maximumf>, %101, %cst_54 [1] : vector<8x8xf32> to vector<8xf32>
    %103 = vector.shape_cast %102 : vector<8xf32> to vector<8x1xf32>
    %104 = vector.broadcast %103 : vector<8x1xf32> to vector<8x8xf32>
    %105 = arith.subf %101, %104 : vector<8x8xf32>
    %106 = math.exp %105 : vector<8x8xf32>
    %cst_55 = arith.constant dense<0.000000e+00> : vector<8xf32>
    %107 = vector.multi_reduction <add>, %106, %cst_55 [1] : vector<8x8xf32> to vector<8xf32>
    %108 = vector.shape_cast %107 : vector<8xf32> to vector<8x1xf32>
    %c3_56 = arith.constant 3 : index
    %c0_57 = arith.constant 0 : index
    %c0_58 = arith.constant 0 : index
    %109 = vector.load %arg22[%c3_56, %c0_57, %c0_58] : memref<4x8x8xf32, #tpu.memory_space<vmem>>, vector<1x8x8xf32>
    %110 = vector.shape_cast %109 : vector<1x8x8xf32> to vector<8x8xf32>
    %cst_59 = arith.constant dense<0.000000e+00> : vector<8x8xf32>
    %111 = tpu.matmul %106, %110, %cst_59 {dimension_numbers = #tpu.dot_dimension_numbers<[1], [0], [0], [1], [0, 0, 1, 1], [], []>} : vector<8x8xf32>, vector<8x8xf32>, vector<8x8xf32> -> vector<8x8xf32>
    %112 = tpu.reciprocal %108 : vector<8x1xf32> -> vector<8x1xf32>
    %113 = vector.broadcast %112 : vector<8x1xf32> to vector<8x8xf32>
    %114 = arith.mulf %111, %113 : vector<8x8xf32>
    %c0_60 = arith.constant 0 : index
    %c24 = arith.constant 24 : index
    %115 = vector.load %arg23[%c0_60, %c24] : memref<8x32xf32, #tpu.memory_space<vmem>>, vector<8x8xf32>
    tpu.vector_store %arg23[%c0_60, %c24], %114 {strides = array<i32>} : memref<8x32xf32, #tpu.memory_space<vmem>>, vector<8x8xf32>,
    %c0_61 = arith.constant 0 : index
    %c0_62 = arith.constant 0 : index
    %116 = vector.load %arg23[%c0_61, %c0_62] : memref<8x32xf32, #tpu.memory_space<vmem>>, vector<8x32xf32>
    %c0_63 = arith.constant 0 : index
    %c0_64 = arith.constant 0 : index
    %117 = vector.load %arg12[%c0_63, %c0_64] : memref<32x32xf32, #tpu.memory_space<vmem>>, vector<32x32xf32>
    %cst_65 = arith.constant dense<0.000000e+00> : vector<8x32xf32>
    %118 = tpu.matmul %116, %117, %cst_65 {dimension_numbers = #tpu.dot_dimension_numbers<[1], [0], [0], [1], [0, 0, 1, 1], [], []>} : vector<8x32xf32>, vector<32x32xf32>, vector<8x32xf32> -> vector<8x32xf32>
    %c0_66 = arith.constant 0 : index
    %c0_67 = arith.constant 0 : index
    %119 = vector.load %arg13[%c0_66, %c0_67] : memref<1x32xf32, #tpu.memory_space<vmem>>, vector<1x32xf32>
    %120 = vector.broadcast %119 : vector<1x32xf32> to vector<8x32xf32>
    %121 = arith.addf %118, %120 : vector<8x32xf32>
    %122 = arith.addf %1, %121 : vector<8x32xf32>
    %c0_68 = arith.constant 0 : index
    %c0_69 = arith.constant 0 : index
    %c0_70 = arith.constant 0 : index
    %123 = vector.load %arg5[%c0_68, %c0_69, %c0_70] : memref<1x8x1xf32, #tpu.memory_space<vmem>>, vector<1x8x1xf32>
    %124 = vector.shape_cast %123 : vector<1x8x1xf32> to vector<8x1xf32>
    %c0_71 = arith.constant 0 : index
    %c0_72 = arith.constant 0 : index
    %125 = vector.load %arg14[%c0_71, %c0_72] : memref<1x32xf32, #tpu.memory_space<vmem>>, vector<1x32xf32>
    %c0_73 = arith.constant 0 : index
    %c0_74 = arith.constant 0 : index
    %126 = vector.load %arg15[%c0_73, %c0_74] : memref<1x32xf32, #tpu.memory_space<vmem>>, vector<1x32xf32>
    %cst_75 = arith.constant dense<0.000000e+00> : vector<8xf32>
    %127 = vector.multi_reduction <add>, %122, %cst_75 [1] : vector<8x32xf32> to vector<8xf32>
    %128 = vector.shape_cast %127 : vector<8xf32> to vector<8x1xf32>
    %cst_76 = arith.constant 3.200000e+01 : f32
    %129 = vector.broadcast %cst_76 : f32 to vector<8x1xf32>
    %130 = arith.divf %128, %129 : vector<8x1xf32>
    %131 = vector.broadcast %130 : vector<8x1xf32> to vector<8x32xf32>
    %132 = arith.subf %122, %131 : vector<8x32xf32>
    %133 = arith.mulf %132, %132 : vector<8x32xf32>
    %cst_77 = arith.constant dense<0.000000e+00> : vector<8xf32>
    %134 = vector.multi_reduction <add>, %133, %cst_77 [1] : vector<8x32xf32> to vector<8xf32>
    %135 = vector.shape_cast %134 : vector<8xf32> to vector<8x1xf32>
    %cst_78 = arith.constant 3.200000e+01 : f32
    %136 = vector.broadcast %cst_78 : f32 to vector<8x1xf32>
    %137 = arith.divf %135, %136 : vector<8x1xf32>
    %138 = vector.broadcast %130 : vector<8x1xf32> to vector<8x32xf32>
    %139 = arith.subf %122, %138 : vector<8x32xf32>
    %cst_79 = arith.constant 9.99999974E-6 : f32
    %140 = vector.broadcast %cst_79 : f32 to vector<8x1xf32>
    %141 = arith.addf %137, %140 : vector<8x1xf32>
    %142 = math.rsqrt %141 : vector<8x1xf32>
    %143 = vector.broadcast %142 : vector<8x1xf32> to vector<8x32xf32>
    %144 = arith.mulf %139, %143 : vector<8x32xf32>
    %145 = vector.broadcast %125 : vector<1x32xf32> to vector<8x32xf32>
    %146 = arith.mulf %144, %145 : vector<8x32xf32>
    %147 = vector.broadcast %126 : vector<1x32xf32> to vector<8x32xf32>
    %148 = arith.addf %146, %147 : vector<8x32xf32>
    %c0_80 = arith.constant 0 : index
    %c0_81 = arith.constant 0 : index
    %149 = vector.load %arg16[%c0_80, %c0_81] : memref<32x64xf32, #tpu.memory_space<vmem>>, vector<32x64xf32>
    %cst_82 = arith.constant dense<0.000000e+00> : vector<8x64xf32>
    %150 = tpu.matmul %148, %149, %cst_82 {dimension_numbers = #tpu.dot_dimension_numbers<[1], [0], [0], [1], [0, 0, 1, 1], [], []>} : vector<8x32xf32>, vector<32x64xf32>, vector<8x64xf32> -> vector<8x64xf32>
    %c0_83 = arith.constant 0 : index
    %c0_84 = arith.constant 0 : index
    %151 = vector.load %arg17[%c0_83, %c0_84] : memref<1x64xf32, #tpu.memory_space<vmem>>, vector<1x64xf32>
    %152 = vector.broadcast %151 : vector<1x64xf32> to vector<8x64xf32>
    %153 = arith.addf %150, %152 : vector<8x64xf32>
    %cst_85 = arith.constant 0.000000e+00 : f32
    %154 = vector.broadcast %cst_85 : f32 to vector<8x64xf32>
    %155 = arith.maximumf %153, %154 : vector<8x64xf32>
    %156 = vector.broadcast %124 : vector<8x1xf32> to vector<8x64xf32>
    %157 = arith.mulf %155, %156 : vector<8x64xf32>
    %c0_86 = arith.constant 0 : index
    %c0_87 = arith.constant 0 : index
    %158 = vector.load %arg18[%c0_86, %c0_87] : memref<64x32xf32, #tpu.memory_space<vmem>>, vector<64x32xf32>
    %cst_88 = arith.constant dense<0.000000e+00> : vector<8x32xf32>
    %159 = tpu.matmul %157, %158, %cst_88 {dimension_numbers = #tpu.dot_dimension_numbers<[1], [0], [0], [1], [0, 0, 1, 1], [], []>} : vector<8x64xf32>, vector<64x32xf32>, vector<8x32xf32> -> vector<8x32xf32>
    %c0_89 = arith.constant 0 : index
    %c0_90 = arith.constant 0 : index
    %160 = vector.load %arg19[%c0_89, %c0_90] : memref<1x32xf32, #tpu.memory_space<vmem>>, vector<1x32xf32>
    %161 = vector.broadcast %160 : vector<1x32xf32> to vector<8x32xf32>
    %162 = arith.addf %159, %161 : vector<8x32xf32>
    %163 = vector.broadcast %124 : vector<8x1xf32> to vector<8x32xf32>
    %164 = arith.mulf %162, %163 : vector<8x32xf32>
    %165 = arith.addf %122, %164 : vector<8x32xf32>
    %c0_91 = arith.constant 0 : index
    %c0_92 = arith.constant 0 : index
    %c0_93 = arith.constant 0 : index
    %166 = vector.load %arg20[%c0_91, %c0_92, %c0_93] : memref<1x8x32xf32, #tpu.memory_space<vmem>>, vector<1x8x32xf32>
    %167 = vector.shape_cast %166 : vector<1x8x32xf32> to vector<8x32xf32>
    %168 = vector.shape_cast %165 : vector<8x32xf32> to vector<1x8x32xf32>
    tpu.vector_store %arg20[%c0_91, %c0_92, %c0_93], %168 {strides = array<i32>} : memref<1x8x32xf32, #tpu.memory_space<vmem>>, vector<1x8x32xf32>,
    return
  }
  func.func @transform_0(%arg0: i32, %arg1: i32) -> (i32, i32, i32) {
    %c0_i32 = arith.constant 0 : i32
    %c0_i32_0 = arith.constant 0 : i32
    return %arg0, %arg1, %c0_i32 : i32, i32, i32
  }
  func.func @transform_1(%arg0: i32, %arg1: i32) -> (i32, i32, i32) {
    %c0_i32 = arith.constant 0 : i32
    %c0_i32_0 = arith.constant 0 : i32
    %c0_i32_1 = arith.constant 0 : i32
    return %arg0, %c0_i32, %c0_i32_0 : i32, i32, i32
  }
  func.func @transform_2(%arg0: i32, %arg1: i32) -> (i32, i32, i32) {
    %c0_i32 = arith.constant 0 : i32
    %c0_i32_0 = arith.constant 0 : i32
    %c0_i32_1 = arith.constant 0 : i32
    return %arg0, %c0_i32, %c0_i32_0 : i32, i32, i32
  }
  func.func @transform_3(%arg0: i32, %arg1: i32) -> (i32, i32, i32) {
    %c0_i32 = arith.constant 0 : i32
    %c0_i32_0 = arith.constant 0 : i32
    return %arg0, %arg1, %c0_i32 : i32, i32, i32
  }
  func.func @transform_4(%arg0: i32, %arg1: i32) -> (i32, i32) {
    %c0_i32 = arith.constant 0 : i32
    %c0_i32_0 = arith.constant 0 : i32
    %c0_i32_1 = arith.constant 0 : i32
    return %c0_i32, %c0_i32_0 : i32, i32
  }
  func.func @transform_5(%arg0: i32, %arg1: i32) -> (i32, i32) {
    %c0_i32 = arith.constant 0 : i32
    %c0_i32_0 = arith.constant 0 : i32
    %c0_i32_1 = arith.constant 0 : i32
    return %c0_i32, %c0_i32_0 : i32, i32
  }
  func.func @transform_6(%arg0: i32, %arg1: i32) -> (i32, i32) {
    %c0_i32 = arith.constant 0 : i32
    %c0_i32_0 = arith.constant 0 : i32
    %c0_i32_1 = arith.constant 0 : i32
    return %c0_i32, %c0_i32_0 : i32, i32
  }
  func.func @transform_7(%arg0: i32, %arg1: i32) -> (i32, i32) {
    %c0_i32 = arith.constant 0 : i32
    %c0_i32_0 = arith.constant 0 : i32
    %c0_i32_1 = arith.constant 0 : i32
    return %c0_i32, %c0_i32_0 : i32, i32
  }
  func.func @transform_8(%arg0: i32, %arg1: i32) -> (i32, i32) {
    %c0_i32 = arith.constant 0 : i32
    %c0_i32_0 = arith.constant 0 : i32
    %c0_i32_1 = arith.constant 0 : i32
    return %c0_i32, %c0_i32_0 : i32, i32
  }
  func.func @transform_9(%arg0: i32, %arg1: i32) -> (i32, i32) {
    %c0_i32 = arith.constant 0 : i32
    %c0_i32_0 = arith.constant 0 : i32
    %c0_i32_1 = arith.constant 0 : i32
    return %c0_i32, %c0_i32_0 : i32, i32
  }
  func.func @transform_10(%arg0: i32, %arg1: i32) -> (i32, i32) {
    %c0_i32 = arith.constant 0 : i32
    %c0_i32_0 = arith.constant 0 : i32
    %c0_i32_1 = arith.constant 0 : i32
    return %c0_i32, %c0_i32_0 : i32, i32
  }
  func.func @transform_11(%arg0: i32, %arg1: i32) -> (i32, i32) {
    %c0_i32 = arith.constant 0 : i32
    %c0_i32_0 = arith.constant 0 : i32
    %c0_i32_1 = arith.constant 0 : i32
    return %c0_i32, %c0_i32_0 : i32, i32
  }
  func.func @transform_12(%arg0: i32, %arg1: i32) -> (i32, i32) {
    %c0_i32 = arith.constant 0 : i32
    %c0_i32_0 = arith.constant 0 : i32
    %c0_i32_1 = arith.constant 0 : i32
    return %c0_i32, %c0_i32_0 : i32, i32
  }
  func.func @transform_13(%arg0: i32, %arg1: i32) -> (i32, i32) {
    %c0_i32 = arith.constant 0 : i32
    %c0_i32_0 = arith.constant 0 : i32
    %c0_i32_1 = arith.constant 0 : i32
    return %c0_i32, %c0_i32_0 : i32, i32
  }
  func.func @transform_14(%arg0: i32, %arg1: i32) -> (i32, i32) {
    %c0_i32 = arith.constant 0 : i32
    %c0_i32_0 = arith.constant 0 : i32
    %c0_i32_1 = arith.constant 0 : i32
    return %c0_i32, %c0_i32_0 : i32, i32
  }
  func.func @transform_15(%arg0: i32, %arg1: i32) -> (i32, i32) {
    %c0_i32 = arith.constant 0 : i32
    %c0_i32_0 = arith.constant 0 : i32
    %c0_i32_1 = arith.constant 0 : i32
    return %c0_i32, %c0_i32_0 : i32, i32
  }
  func.func @transform_16(%arg0: i32, %arg1: i32) -> (i32, i32) {
    %c0_i32 = arith.constant 0 : i32
    %c0_i32_0 = arith.constant 0 : i32
    %c0_i32_1 = arith.constant 0 : i32
    return %c0_i32, %c0_i32_0 : i32, i32
  }
  func.func @transform_17(%arg0: i32, %arg1: i32) -> (i32, i32) {
    %c0_i32 = arith.constant 0 : i32
    %c0_i32_0 = arith.constant 0 : i32
    %c0_i32_1 = arith.constant 0 : i32
    return %c0_i32, %c0_i32_0 : i32, i32
  }
  func.func @transform_18(%arg0: i32, %arg1: i32) -> (i32, i32, i32) {
    %c0_i32 = arith.constant 0 : i32
    %c0_i32_0 = arith.constant 0 : i32
    return %arg0, %arg1, %c0_i32 : i32, i32, i32
  }
}

module attributes {stable_mosaic.version = 11 : i64} {
  func.func @_fused_block_kernel(%arg0: i32, %arg1: i32, %arg2: memref<1x8x32xf32, #tpu.memory_space<vmem>>, %arg3: memref<1x8x32xf32, #tpu.memory_space<vmem>>, %arg4: memref<1x1x8xf32, #tpu.memory_space<vmem>>, %arg5: memref<1x8x1xf32, #tpu.memory_space<vmem>>, %arg6: memref<1x32xf32, #tpu.memory_space<vmem>>, %arg7: memref<1x32xf32, #tpu.memory_space<vmem>>, %arg8: memref<32x32xf32, #tpu.memory_space<vmem>>, %arg9: memref<1x32xf32, #tpu.memory_space<vmem>>, %arg10: memref<32x64xf32, #tpu.memory_space<vmem>>, %arg11: memref<1x64xf32, #tpu.memory_space<vmem>>, %arg12: memref<32x32xf32, #tpu.memory_space<vmem>>, %arg13: memref<1x32xf32, #tpu.memory_space<vmem>>, %arg14: memref<1x32xf32, #tpu.memory_space<vmem>>, %arg15: memref<1x32xf32, #tpu.memory_space<vmem>>, %arg16: memref<32x64xf32, #tpu.memory_space<vmem>>, %arg17: memref<1x64xf32, #tpu.memory_space<vmem>>, %arg18: memref<64x32xf32, #tpu.memory_space<vmem>>, %arg19: memref<1x32xf32, #tpu.memory_space<vmem>>, %arg20: memref<1x8x32xf32, #tpu.memory_space<vmem>>, %arg21: memref<4x8x8xf32, #tpu.memory_space<vmem>>, %arg22: memref<4x8x8xf32, #tpu.memory_space<vmem>>, %arg23: memref<8x32xf32, #tpu.memory_space<vmem>>) attributes {dimension_semantics = [#tpu.dimension_semantics<parallel>, #tpu.dimension_semantics<arbitrary>], iteration_bounds = array<i64: 2, 1>, scalar_prefetch = 0 : i64, scratch_operands = 3 : i64, tpu.core_type = #tpu.core_type<tc>, window_params = [{transform_indices = @transform_0, window_bounds = array<i64: 1, 8, 32>}, {transform_indices = @transform_1, window_bounds = array<i64: 1, 8, 32>}, {transform_indices = @transform_2, window_bounds = array<i64: 1, 1, 8>}, {transform_indices = @transform_3, window_bounds = array<i64: 1, 8, 1>}, {pipeline_mode = #tpu.pipeline_mode<synchronous>, transform_indices = @transform_4, window_bounds = array<i64: 1, 32>}, {pipeline_mode = #tpu.pipeline_mode<synchronous>, transform_indices = @transform_5, window_bounds = array<i64: 1, 32>}, {pipeline_mode = #tpu.pipeline_mode<synchronous>, transform_indices = @transform_6, window_bounds = array<i64: 32, 32>}, {pipeline_mode = #tpu.pipeline_mode<synchronous>, transform_indices = @transform_7, window_bounds = array<i64: 1, 32>}, {pipeline_mode = #tpu.pipeline_mode<synchronous>, transform_indices = @transform_8, window_bounds = array<i64: 32, 64>}, {pipeline_mode = #tpu.pipeline_mode<synchronous>, transform_indices = @transform_9, window_bounds = array<i64: 1, 64>}, {pipeline_mode = #tpu.pipeline_mode<synchronous>, transform_indices = @transform_10, window_bounds = array<i64: 32, 32>}, {pipeline_mode = #tpu.pipeline_mode<synchronous>, transform_indices = @transform_11, window_bounds = array<i64: 1, 32>}, {pipeline_mode = #tpu.pipeline_mode<synchronous>, transform_indices = @transform_12, window_bounds = array<i64: 1, 32>}, {pipeline_mode = #tpu.pipeline_mode<synchronous>, transform_indices = @transform_13, window_bounds = array<i64: 1, 32>}, {pipeline_mode = #tpu.pipeline_mode<synchronous>, transform_indices = @transform_14, window_bounds = array<i64: 32, 64>}, {pipeline_mode = #tpu.pipeline_mode<synchronous>, transform_indices = @transform_15, window_bounds = array<i64: 1, 64>}, {pipeline_mode = #tpu.pipeline_mode<synchronous>, transform_indices = @transform_16, window_bounds = array<i64: 64, 32>}, {pipeline_mode = #tpu.pipeline_mode<synchronous>, transform_indices = @transform_17, window_bounds = array<i64: 1, 32>}, {transform_indices = @transform_18, window_bounds = array<i64: 1, 8, 32>}]} {
    %c0 = arith.constant 0 : index
    %c0_0 = arith.constant 0 : index
    %c0_1 = arith.constant 0 : index
    %0 = vector.load %arg2[%c0, %c0_0, %c0_1] : memref<1x8x32xf32, #tpu.memory_space<vmem>>, vector<1x8x32xf32>
    %1 = vector.shape_cast %0 : vector<1x8x32xf32> to vector<8x32xf32>
    %c0_2 = arith.constant 0 : index
    %c0_3 = arith.constant 0 : index
    %2 = vector.load %arg6[%c0_2, %c0_3] : memref<1x32xf32, #tpu.memory_space<vmem>>, vector<1x32xf32>
    %c0_4 = arith.constant 0 : index
    %c0_5 = arith.constant 0 : index
    %3 = vector.load %arg7[%c0_4, %c0_5] : memref<1x32xf32, #tpu.memory_space<vmem>>, vector<1x32xf32>
    %c0_i32 = arith.constant 0 : i32
    %4 = arith.cmpi eq, %arg1, %c0_i32 : i32
    %5 = arith.extui %4 : i1 to i32
    %c0_i32_6 = arith.constant 0 : i32
    %6 = arith.cmpi ne, %5, %c0_i32_6 : i32
    scf.if %6 {
      %c0_94 = arith.constant 0 : index
      %c0_95 = arith.constant 0 : index
      %c0_96 = arith.constant 0 : index
      %169 = vector.load %arg3[%c0_94, %c0_95, %c0_96] : memref<1x8x32xf32, #tpu.memory_space<vmem>>, vector<1x8x32xf32>
      %170 = vector.shape_cast %169 : vector<1x8x32xf32> to vector<8x32xf32>
      %cst_97 = arith.constant dense<0.000000e+00> : vector<8xf32>
      %171 = vector.multi_reduction <add>, %170, %cst_97 [1] : vector<8x32xf32> to vector<8xf32>
      %172 = vector.shape_cast %171 : vector<8xf32> to vector<8x1xf32>
      %cst_98 = arith.constant 3.200000e+01 : f32
      %173 = vector.broadcast %cst_98 : f32 to vector<8x1xf32>
      %174 = arith.divf %172, %173 : vector<8x1xf32>
      %175 = vector.broadcast %174 : vector<8x1xf32> to vector<8x32xf32>
      %176 = arith.subf %170, %175 : vector<8x32xf32>
      %177 = arith.mulf %176, %176 : vector<8x32xf32>
      %cst_99 = arith.constant dense<0.000000e+00> : vector<8xf32>
      %178 = vector.multi_reduction <add>, %177, %cst_99 [1] : vector<8x32xf32> to vector<8xf32>
      %179 = vector.shape_cast %178 : vector<8xf32> to vector<8x1xf32>
      %cst_100 = arith.constant 3.200000e+01 : f32
      %180 = vector.broadcast %cst_100 : f32 to vector<8x1xf32>
      %181 = arith.divf %179, %180 : vector<8x1xf32>
      %182 = vector.broadcast %174 : vector<8x1xf32> to vector<8x32xf32>
      %183 = arith.subf %170, %182 : vector<8x32xf32>
      %cst_101 = arith.constant 9.99999974E-6 : f32
      %184 = vector.broadcast %cst_101 : f32 to vector<8x1xf32>
      %185 = arith.addf %181, %184 : vector<8x1xf32>
      %186 = math.rsqrt %185 : vector<8x1xf32>
      %187 = vector.broadcast %186 : vector<8x1xf32> to vector<8x32xf32>
      %188 = arith.mulf %183, %187 : vector<8x32xf32>
      %189 = vector.broadcast %2 : vector<1x32xf32> to vector<8x32xf32>
      %190 = arith.mulf %188, %189 : vector<8x32xf32>
      %191 = vector.broadcast %3 : vector<1x32xf32> to vector<8x32xf32>
      %192 = arith.addf %190, %191 : vector<8x32xf32>
      %c0_102 = arith.constant 0 : index
      %c0_103 = arith.constant 0 : index
      %193 = vector.load %arg10[%c0_102, %c0_103] : memref<32x64xf32, #tpu.memory_space<vmem>>, vector<32x64xf32>
      %cst_104 = arith.constant dense<0.000000e+00> : vector<8x64xf32>
      %194 = tpu.matmul %192, %193, %cst_104 {dimension_numbers = #tpu.dot_dimension_numbers<[1], [0], [0], [1], [0, 0, 1, 1], [], []>} : vector<8x32xf32>, vector<32x64xf32>, vector<8x64xf32> -> vector<8x64xf32>
      %c0_105 = arith.constant 0 : index
      %c0_106 = arith.constant 0 : index
      %195 = vector.load %arg11[%c0_105, %c0_106] : memref<1x64xf32, #tpu.memory_space<vmem>>, vector<1x64xf32>
      %196 = vector.broadcast %195 : vector<1x64xf32> to vector<8x64xf32>
      %197 = arith.addf %194, %196 : vector<8x64xf32>
      %198 = vector.extract_strided_slice %197 {offsets = [0, 0], sizes = [8, 8], strides = [1, 1]} : vector<8x64xf32> to vector<8x8xf32>
      %199 = tpu.transpose %198, [1, 0] : vector<8x8xf32> -> vector<8x8xf32>
      %c0_107 = arith.constant 0 : index
      %c0_108 = arith.constant 0 : index
      %c0_109 = arith.constant 0 : index
      %200 = vector.load %arg21[%c0_107, %c0_108, %c0_109] : memref<4x8x8xf32, #tpu.memory_space<vmem>>, vector<1x8x8xf32>
      %201 = vector.shape_cast %200 : vector<1x8x8xf32> to vector<8x8xf32>
      %202 = vector.shape_cast %199 : vector<8x8xf32> to vector<1x8x8xf32>
      tpu.vector_store %arg21[%c0_107, %c0_108, %c0_109], %202 {strides = array<i32>} : memref<4x8x8xf32, #tpu.memory_space<vmem>>, vector<1x8x8xf32>,
      %203 = vector.extract_strided_slice %197 {offsets = [0, 32], sizes = [8, 8], strides = [1, 1]} : vector<8x64xf32> to vector<8x8xf32>
      %c0_110 = arith.constant 0 : index
      %c0_111 = arith.constant 0 : index
      %c0_112 = arith.constant 0 : index
      %204 = vector.load %arg22[%c0_110, %c0_111, %c0_112] : memref<4x8x8xf32, #tpu.memory_space<vmem>>, vector<1x8x8xf32>
      %205 = vector.shape_cast %204 : vector<1x8x8xf32> to vector<8x8xf32>
      %206 = vector.shape_cast %203 : vector<8x8xf32> to vector<1x8x8xf32>
      tpu.vector_store %arg22[%c0_110, %c0_111, %c0_112], %206 {strides = array<i32>} : memref<4x8x8xf32, #tpu.memory_space<vmem>>, vector<1x8x8xf32>,
      %207 = vector.extract_strided_slice %197 {offsets = [0, 8], sizes = [8, 8], strides = [1, 1]} : vector<8x64xf32> to vector<8x8xf32>
      %208 = tpu.transpose %207, [1, 0] : vector<8x8xf32> -> vector<8x8xf32>
      %c1_113 = arith.constant 1 : index
      %c0_114 = arith.constant 0 : index
      %c0_115 = arith.constant 0 : index
      %209 = vector.load %arg21[%c1_113, %c0_114, %c0_115] : memref<4x8x8xf32, #tpu.memory_space<vmem>>, vector<1x8x8xf32>
      %210 = vector.shape_cast %209 : vector<1x8x8xf32> to vector<8x8xf32>
      %211 = vector.shape_cast %208 : vector<8x8xf32> to vector<1x8x8xf32>
      tpu.vector_store %arg21[%c1_113, %c0_114, %c0_115], %211 {strides = array<i32>} : memref<4x8x8xf32, #tpu.memory_space<vmem>>, vector<1x8x8xf32>,
      %212 = vector.extract_strided_slice %197 {offsets = [0, 40], sizes = [8, 8], strides = [1, 1]} : vector<8x64xf32> to vector<8x8xf32>
      %c1_116 = arith.constant 1 : index
      %c0_117 = arith.constant 0 : index
      %c0_118 = arith.constant 0 : index
      %213 = vector.load %arg22[%c1_116, %c0_117, %c0_118] : memref<4x8x8xf32, #tpu.memory_space<vmem>>, vector<1x8x8xf32>
      %214 = vector.shape_cast %213 : vector<1x8x8xf32> to vector<8x8xf32>
      %215 = vector.shape_cast %212 : vector<8x8xf32> to vector<1x8x8xf32>
      tpu.vector_store %arg22[%c1_116, %c0_117, %c0_118], %215 {strides = array<i32>} : memref<4x8x8xf32, #tpu.memory_space<vmem>>, vector<1x8x8xf32>,
      %216 = vector.extract_strided_slice %197 {offsets = [0, 16], sizes = [8, 8], strides = [1, 1]} : vector<8x64xf32> to vector<8x8xf32>
      %217 = tpu.transpose %216, [1, 0] : vector<8x8xf32> -> vector<8x8xf32>
      %c2_119 = arith.constant 2 : index
      %c0_120 = arith.constant 0 : index
      %c0_121 = arith.constant 0 : index
      %218 = vector.load %arg21[%c2_119, %c0_120, %c0_121] : memref<4x8x8xf32, #tpu.memory_space<vmem>>, vector<1x8x8xf32>
      %219 = vector.shape_cast %218 : vector<1x8x8xf32> to vector<8x8xf32>
      %220 = vector.shape_cast %217 : vector<8x8xf32> to vector<1x8x8xf32>
      tpu.vector_store %arg21[%c2_119, %c0_120, %c0_121], %220 {strides = array<i32>} : memref<4x8x8xf32, #tpu.memory_space<vmem>>, vector<1x8x8xf32>,
      %221 = vector.extract_strided_slice %197 {offsets = [0, 48], sizes = [8, 8], strides = [1, 1]} : vector<8x64xf32> to vector<8x8xf32>
      %c2_122 = arith.constant 2 : index
      %c0_123 = arith.constant 0 : index
      %c0_124 = arith.constant 0 : index
      %222 = vector.load %arg22[%c2_122, %c0_123, %c0_124] : memref<4x8x8xf32, #tpu.memory_space<vmem>>, vector<1x8x8xf32>
      %223 = vector.shape_cast %222 : vector<1x8x8xf32> to vector<8x8xf32>
      %224 = vector.shape_cast %221 : vector<8x8xf32> to vector<1x8x8xf32>
      tpu.vector_store %arg22[%c2_122, %c0_123, %c0_124], %224 {strides = array<i32>} : memref<4x8x8xf32, #tpu.memory_space<vmem>>, vector<1x8x8xf32>,
      %225 = vector.extract_strided_slice %197 {offsets = [0, 24], sizes = [8, 8], strides = [1, 1]} : vector<8x64xf32> to vector<8x8xf32>
      %226 = tpu.transpose %225, [1, 0] : vector<8x8xf32> -> vector<8x8xf32>
      %c3_125 = arith.constant 3 : index
      %c0_126 = arith.constant 0 : index
      %c0_127 = arith.constant 0 : index
      %227 = vector.load %arg21[%c3_125, %c0_126, %c0_127] : memref<4x8x8xf32, #tpu.memory_space<vmem>>, vector<1x8x8xf32>
      %228 = vector.shape_cast %227 : vector<1x8x8xf32> to vector<8x8xf32>
      %229 = vector.shape_cast %226 : vector<8x8xf32> to vector<1x8x8xf32>
      tpu.vector_store %arg21[%c3_125, %c0_126, %c0_127], %229 {strides = array<i32>} : memref<4x8x8xf32, #tpu.memory_space<vmem>>, vector<1x8x8xf32>,
      %230 = vector.extract_strided_slice %197 {offsets = [0, 56], sizes = [8, 8], strides = [1, 1]} : vector<8x64xf32> to vector<8x8xf32>
      %c3_128 = arith.constant 3 : index
      %c0_129 = arith.constant 0 : index
      %c0_130 = arith.constant 0 : index
      %231 = vector.load %arg22[%c3_128, %c0_129, %c0_130] : memref<4x8x8xf32, #tpu.memory_space<vmem>>, vector<1x8x8xf32>
      %232 = vector.shape_cast %231 : vector<1x8x8xf32> to vector<8x8xf32>
      %233 = vector.shape_cast %230 : vector<8x8xf32> to vector<1x8x8xf32>
      tpu.vector_store %arg22[%c3_128, %c0_129, %c0_130], %233 {strides = array<i32>} : memref<4x8x8xf32, #tpu.memory_space<vmem>>, vector<1x8x8xf32>,
    } else {
    }
    %cst = arith.constant dense<0.000000e+00> : vector<8xf32>
    %7 = vector.multi_reduction <add>, %1, %cst [1] : vector<8x32xf32> to vector<8xf32>
    %8 = vector.shape_cast %7 : vector<8xf32> to vector<8x1xf32>
    %cst_7 = arith.constant 3.200000e+01 : f32
    %9 = vector.broadcast %cst_7 : f32 to vector<8x1xf32>
    %10 = arith.divf %8, %9 : vector<8x1xf32>
    %11 = vector.broadcast %10 : vector<8x1xf32> to vector<8x32xf32>
    %12 = arith.subf %1, %11 : vector<8x32xf32>
    %13 = arith.mulf %12, %12 : vector<8x32xf32>
    %cst_8 = arith.constant dense<0.000000e+00> : vector<8xf32>
    %14 = vector.multi_reduction <add>, %13, %cst_8 [1] : vector<8x32xf32> to vector<8xf32>
    %15 = vector.shape_cast %14 : vector<8xf32> to vector<8x1xf32>
    %cst_9 = arith.constant 3.200000e+01 : f32
    %16 = vector.broadcast %cst_9 : f32 to vector<8x1xf32>
    %17 = arith.divf %15, %16 : vector<8x1xf32>
    %18 = vector.broadcast %10 : vector<8x1xf32> to vector<8x32xf32>
    %19 = arith.subf %1, %18 : vector<8x32xf32>
    %cst_10 = arith.constant 9.99999974E-6 : f32
    %20 = vector.broadcast %cst_10 : f32 to vector<8x1xf32>
    %21 = arith.addf %17, %20 : vector<8x1xf32>
    %22 = math.rsqrt %21 : vector<8x1xf32>
    %23 = vector.broadcast %22 : vector<8x1xf32> to vector<8x32xf32>
    %24 = arith.mulf %19, %23 : vector<8x32xf32>
    %25 = vector.broadcast %2 : vector<1x32xf32> to vector<8x32xf32>
    %26 = arith.mulf %24, %25 : vector<8x32xf32>
    %27 = vector.broadcast %3 : vector<1x32xf32> to vector<8x32xf32>
    %28 = arith.addf %26, %27 : vector<8x32xf32>
    %c0_11 = arith.constant 0 : index
    %c0_12 = arith.constant 0 : index
    %29 = vector.load %arg8[%c0_11, %c0_12] : memref<32x32xf32, #tpu.memory_space<vmem>>, vector<32x32xf32>
    %cst_13 = arith.constant dense<0.000000e+00> : vector<8x32xf32>
    %30 = tpu.matmul %28, %29, %cst_13 {dimension_numbers = #tpu.dot_dimension_numbers<[1], [0], [0], [1], [0, 0, 1, 1], [], []>} : vector<8x32xf32>, vector<32x32xf32>, vector<8x32xf32> -> vector<8x32xf32>
    %c0_14 = arith.constant 0 : index
    %c0_15 = arith.constant 0 : index
    %31 = vector.load %arg9[%c0_14, %c0_15] : memref<1x32xf32, #tpu.memory_space<vmem>>, vector<1x32xf32>
    %32 = vector.broadcast %31 : vector<1x32xf32> to vector<8x32xf32>
    %33 = arith.addf %30, %32 : vector<8x32xf32>
    %c0_16 = arith.constant 0 : index
    %c0_17 = arith.constant 0 : index
    %c0_18 = arith.constant 0 : index
    %34 = vector.load %arg4[%c0_16, %c0_17, %c0_18] : memref<1x1x8xf32, #tpu.memory_space<vmem>>, vector<1x1x8xf32>
    %35 = vector.shape_cast %34 : vector<1x1x8xf32> to vector<1x8xf32>
    %36 = vector.extract_strided_slice %33 {offsets = [0, 0], sizes = [8, 8], strides = [1, 1]} : vector<8x32xf32> to vector<8x8xf32>
    %c0_19 = arith.constant 0 : index
    %c0_20 = arith.constant 0 : index
    %c0_21 = arith.constant 0 : index
    %37 = vector.load %arg21[%c0_19, %c0_20, %c0_21] : memref<4x8x8xf32, #tpu.memory_space<vmem>>, vector<1x8x8xf32>
    %38 = vector.shape_cast %37 : vector<1x8x8xf32> to vector<8x8xf32>
    %cst_22 = arith.constant dense<0.000000e+00> : vector<8x8xf32>
    %39 = tpu.matmul %36, %38, %cst_22 {dimension_numbers = #tpu.dot_dimension_numbers<[1], [0], [0], [1], [0, 0, 1, 1], [], []>} : vector<8x8xf32>, vector<8x8xf32>, vector<8x8xf32> -> vector<8x8xf32>
    %40 = vector.broadcast %35 : vector<1x8xf32> to vector<8x8xf32>
    %41 = arith.addf %39, %40 : vector<8x8xf32>
    %cst_23 = arith.constant dense<0xFF800000> : vector<8xf32>
    %42 = vector.multi_reduction <maximumf>, %41, %cst_23 [1] : vector<8x8xf32> to vector<8xf32>
    %43 = vector.shape_cast %42 : vector<8xf32> to vector<8x1xf32>
    %44 = vector.broadcast %43 : vector<8x1xf32> to vector<8x8xf32>
    %45 = arith.subf %41, %44 : vector<8x8xf32>
    %46 = math.exp %45 : vector<8x8xf32>
    %cst_24 = arith.constant dense<0.000000e+00> : vector<8xf32>
    %47 = vector.multi_reduction <add>, %46, %cst_24 [1] : vector<8x8xf32> to vector<8xf32>
    %48 = vector.shape_cast %47 : vector<8xf32> to vector<8x1xf32>
    %c0_25 = arith.constant 0 : index
    %c0_26 = arith.constant 0 : index
    %c0_27 = arith.constant 0 : index
    %49 = vector.load %arg22[%c0_25, %c0_26, %c0_27] : memref<4x8x8xf32, #tpu.memory_space<vmem>>, vector<1x8x8xf32>
    %50 = vector.shape_cast %49 : vector<1x8x8xf32> to vector<8x8xf32>
    %cst_28 = arith.constant dense<0.000000e+00> : vector<8x8xf32>
    %51 = tpu.matmul %46, %50, %cst_28 {dimension_numbers = #tpu.dot_dimension_numbers<[1], [0], [0], [1], [0, 0, 1, 1], [], []>} : vector<8x8xf32>, vector<8x8xf32>, vector<8x8xf32> -> vector<8x8xf32>
    %52 = tpu.reciprocal %48 : vector<8x1xf32> -> vector<8x1xf32>
    %53 = vector.broadcast %52 : vector<8x1xf32> to vector<8x8xf32>
    %54 = arith.mulf %51, %53 : vector<8x8xf32>
    %c0_29 = arith.constant 0 : index
    %c0_30 = arith.constant 0 : index
    %55 = vector.load %arg23[%c0_29, %c0_30] : memref<8x32xf32, #tpu.memory_space<vmem>>, vector<8x8xf32>
    tpu.vector_store %arg23[%c0_29, %c0_30], %54 {strides = array<i32>} : memref<8x32xf32, #tpu.memory_space<vmem>>, vector<8x8xf32>,
    %56 = vector.extract_strided_slice %33 {offsets = [0, 8], sizes = [8, 8], strides = [1, 1]} : vector<8x32xf32> to vector<8x8xf32>
    %c1 = arith.constant 1 : index
    %c0_31 = arith.constant 0 : index
    %c0_32 = arith.constant 0 : index
    %57 = vector.load %arg21[%c1, %c0_31, %c0_32] : memref<4x8x8xf32, #tpu.memory_space<vmem>>, vector<1x8x8xf32>
    %58 = vector.shape_cast %57 : vector<1x8x8xf32> to vector<8x8xf32>
    %cst_33 = arith.constant dense<0.000000e+00> : vector<8x8xf32>
    %59 = tpu.matmul %56, %58, %cst_33 {dimension_numbers = #tpu.dot_dimension_numbers<[1], [0], [0], [1], [0, 0, 1, 1], [], []>} : vector<8x8xf32>, vector<8x8xf32>, vector<8x8xf32> -> vector<8x8xf32>
    %60 = vector.broadcast %35 : vector<1x8xf32> to vector<8x8xf32>
    %61 = arith.addf %59, %60 : vector<8x8xf32>
    %cst_34 = arith.constant dense<0xFF800000> : vector<8xf32>
    %62 = vector.multi_reduction <maximumf>, %61, %cst_34 [1] : vector<8x8xf32> to vector<8xf32>
    %63 = vector.shape_cast %62 : vector<8xf32> to vector<8x1xf32>
    %64 = vector.broadcast %63 : vector<8x1xf32> to vector<8x8xf32>
    %65 = arith.subf %61, %64 : vector<8x8xf32>
    %66 = math.exp %65 : vector<8x8xf32>
    %cst_35 = arith.constant dense<0.000000e+00> : vector<8xf32>
    %67 = vector.multi_reduction <add>, %66, %cst_35 [1] : vector<8x8xf32> to vector<8xf32>
    %68 = vector.shape_cast %67 : vector<8xf32> to vector<8x1xf32>
    %c1_36 = arith.constant 1 : index
    %c0_37 = arith.constant 0 : index
    %c0_38 = arith.constant 0 : index
    %69 = vector.load %arg22[%c1_36, %c0_37, %c0_38] : memref<4x8x8xf32, #tpu.memory_space<vmem>>, vector<1x8x8xf32>
    %70 = vector.shape_cast %69 : vector<1x8x8xf32> to vector<8x8xf32>
    %cst_39 = arith.constant dense<0.000000e+00> : vector<8x8xf32>
    %71 = tpu.matmul %66, %70, %cst_39 {dimension_numbers = #tpu.dot_dimension_numbers<[1], [0], [0], [1], [0, 0, 1, 1], [], []>} : vector<8x8xf32>, vector<8x8xf32>, vector<8x8xf32> -> vector<8x8xf32>
    %72 = tpu.reciprocal %68 : vector<8x1xf32> -> vector<8x1xf32>
    %73 = vector.broadcast %72 : vector<8x1xf32> to vector<8x8xf32>
    %74 = arith.mulf %71, %73 : vector<8x8xf32>
    %c0_40 = arith.constant 0 : index
    %c8 = arith.constant 8 : index
    %75 = vector.load %arg23[%c0_40, %c8] : memref<8x32xf32, #tpu.memory_space<vmem>>, vector<8x8xf32>
    tpu.vector_store %arg23[%c0_40, %c8], %74 {strides = array<i32>} : memref<8x32xf32, #tpu.memory_space<vmem>>, vector<8x8xf32>,
    %76 = vector.extract_strided_slice %33 {offsets = [0, 16], sizes = [8, 8], strides = [1, 1]} : vector<8x32xf32> to vector<8x8xf32>
    %c2 = arith.constant 2 : index
    %c0_41 = arith.constant 0 : index
    %c0_42 = arith.constant 0 : index
    %77 = vector.load %arg21[%c2, %c0_41, %c0_42] : memref<4x8x8xf32, #tpu.memory_space<vmem>>, vector<1x8x8xf32>
    %78 = vector.shape_cast %77 : vector<1x8x8xf32> to vector<8x8xf32>
    %cst_43 = arith.constant dense<0.000000e+00> : vector<8x8xf32>
    %79 = tpu.matmul %76, %78, %cst_43 {dimension_numbers = #tpu.dot_dimension_numbers<[1], [0], [0], [1], [0, 0, 1, 1], [], []>} : vector<8x8xf32>, vector<8x8xf32>, vector<8x8xf32> -> vector<8x8xf32>
    %80 = vector.broadcast %35 : vector<1x8xf32> to vector<8x8xf32>
    %81 = arith.addf %79, %80 : vector<8x8xf32>
    %cst_44 = arith.constant dense<0xFF800000> : vector<8xf32>
    %82 = vector.multi_reduction <maximumf>, %81, %cst_44 [1] : vector<8x8xf32> to vector<8xf32>
    %83 = vector.shape_cast %82 : vector<8xf32> to vector<8x1xf32>
    %84 = vector.broadcast %83 : vector<8x1xf32> to vector<8x8xf32>
    %85 = arith.subf %81, %84 : vector<8x8xf32>
    %86 = math.exp %85 : vector<8x8xf32>
    %cst_45 = arith.constant dense<0.000000e+00> : vector<8xf32>
    %87 = vector.multi_reduction <add>, %86, %cst_45 [1] : vector<8x8xf32> to vector<8xf32>
    %88 = vector.shape_cast %87 : vector<8xf32> to vector<8x1xf32>
    %c2_46 = arith.constant 2 : index
    %c0_47 = arith.constant 0 : index
    %c0_48 = arith.constant 0 : index
    %89 = vector.load %arg22[%c2_46, %c0_47, %c0_48] : memref<4x8x8xf32, #tpu.memory_space<vmem>>, vector<1x8x8xf32>
    %90 = vector.shape_cast %89 : vector<1x8x8xf32> to vector<8x8xf32>
    %cst_49 = arith.constant dense<0.000000e+00> : vector<8x8xf32>
    %91 = tpu.matmul %86, %90, %cst_49 {dimension_numbers = #tpu.dot_dimension_numbers<[1], [0], [0], [1], [0, 0, 1, 1], [], []>} : vector<8x8xf32>, vector<8x8xf32>, vector<8x8xf32> -> vector<8x8xf32>
    %92 = tpu.reciprocal %88 : vector<8x1xf32> -> vector<8x1xf32>
    %93 = vector.broadcast %92 : vector<8x1xf32> to vector<8x8xf32>
    %94 = arith.mulf %91, %93 : vector<8x8xf32>
    %c0_50 = arith.constant 0 : index
    %c16 = arith.constant 16 : index
    %95 = vector.load %arg23[%c0_50, %c16] : memref<8x32xf32, #tpu.memory_space<vmem>>, vector<8x8xf32>
    tpu.vector_store %arg23[%c0_50, %c16], %94 {strides = array<i32>} : memref<8x32xf32, #tpu.memory_space<vmem>>, vector<8x8xf32>,
    %96 = vector.extract_strided_slice %33 {offsets = [0, 24], sizes = [8, 8], strides = [1, 1]} : vector<8x32xf32> to vector<8x8xf32>
    %c3 = arith.constant 3 : index
    %c0_51 = arith.constant 0 : index
    %c0_52 = arith.constant 0 : index
    %97 = vector.load %arg21[%c3, %c0_51, %c0_52] : memref<4x8x8xf32, #tpu.memory_space<vmem>>, vector<1x8x8xf32>
    %98 = vector.shape_cast %97 : vector<1x8x8xf32> to vector<8x8xf32>
    %cst_53 = arith.constant dense<0.000000e+00> : vector<8x8xf32>
    %99 = tpu.matmul %96, %98, %cst_53 {dimension_numbers = #tpu.dot_dimension_numbers<[1], [0], [0], [1], [0, 0, 1, 1], [], []>} : vector<8x8xf32>, vector<8x8xf32>, vector<8x8xf32> -> vector<8x8xf32>
    %100 = vector.broadcast %35 : vector<1x8xf32> to vector<8x8xf32>
    %101 = arith.addf %99, %100 : vector<8x8xf32>
    %cst_54 = arith.constant dense<0xFF800000> : vector<8xf32>
    %102 = vector.multi_reduction <maximumf>, %101, %cst_54 [1] : vector<8x8xf32> to vector<8xf32>
    %103 = vector.shape_cast %102 : vector<8xf32> to vector<8x1xf32>
    %104 = vector.broadcast %103 : vector<8x1xf32> to vector<8x8xf32>
    %105 = arith.subf %101, %104 : vector<8x8xf32>
    %106 = math.exp %105 : vector<8x8xf32>
    %cst_55 = arith.constant dense<0.000000e+00> : vector<8xf32>
    %107 = vector.multi_reduction <add>, %106, %cst_55 [1] : vector<8x8xf32> to vector<8xf32>
    %108 = vector.shape_cast %107 : vector<8xf32> to vector<8x1xf32>
    %c3_56 = arith.constant 3 : index
    %c0_57 = arith.constant 0 : index
    %c0_58 = arith.constant 0 : index
    %109 = vector.load %arg22[%c3_56, %c0_57, %c0_58] : memref<4x8x8xf32, #tpu.memory_space<vmem>>, vector<1x8x8xf32>
    %110 = vector.shape_cast %109 : vector<1x8x8xf32> to vector<8x8xf32>
    %cst_59 = arith.constant dense<0.000000e+00> : vector<8x8xf32>
    %111 = tpu.matmul %106, %110, %cst_59 {dimension_numbers = #tpu.dot_dimension_numbers<[1], [0], [0], [1], [0, 0, 1, 1], [], []>} : vector<8x8xf32>, vector<8x8xf32>, vector<8x8xf32> -> vector<8x8xf32>
    %112 = tpu.reciprocal %108 : vector<8x1xf32> -> vector<8x1xf32>
    %113 = vector.broadcast %112 : vector<8x1xf32> to vector<8x8xf32>
    %114 = arith.mulf %111, %113 : vector<8x8xf32>
    %c0_60 = arith.constant 0 : index
    %c24 = arith.constant 24 : index
    %115 = vector.load %arg23[%c0_60, %c24] : memref<8x32xf32, #tpu.memory_space<vmem>>, vector<8x8xf32>
    tpu.vector_store %arg23[%c0_60, %c24], %114 {strides = array<i32>} : memref<8x32xf32, #tpu.memory_space<vmem>>, vector<8x8xf32>,
    %c0_61 = arith.constant 0 : index
    %c0_62 = arith.constant 0 : index
    %116 = vector.load %arg23[%c0_61, %c0_62] : memref<8x32xf32, #tpu.memory_space<vmem>>, vector<8x32xf32>
    %c0_63 = arith.constant 0 : index
    %c0_64 = arith.constant 0 : index
    %117 = vector.load %arg12[%c0_63, %c0_64] : memref<32x32xf32, #tpu.memory_space<vmem>>, vector<32x32xf32>
    %cst_65 = arith.constant dense<0.000000e+00> : vector<8x32xf32>
    %118 = tpu.matmul %116, %117, %cst_65 {dimension_numbers = #tpu.dot_dimension_numbers<[1], [0], [0], [1], [0, 0, 1, 1], [], []>} : vector<8x32xf32>, vector<32x32xf32>, vector<8x32xf32> -> vector<8x32xf32>
    %c0_66 = arith.constant 0 : index
    %c0_67 = arith.constant 0 : index
    %119 = vector.load %arg13[%c0_66, %c0_67] : memref<1x32xf32, #tpu.memory_space<vmem>>, vector<1x32xf32>
    %120 = vector.broadcast %119 : vector<1x32xf32> to vector<8x32xf32>
    %121 = arith.addf %118, %120 : vector<8x32xf32>
    %122 = arith.addf %1, %121 : vector<8x32xf32>
    %c0_68 = arith.constant 0 : index
    %c0_69 = arith.constant 0 : index
    %c0_70 = arith.constant 0 : index
    %123 = vector.load %arg5[%c0_68, %c0_69, %c0_70] : memref<1x8x1xf32, #tpu.memory_space<vmem>>, vector<1x8x1xf32>
    %124 = vector.shape_cast %123 : vector<1x8x1xf32> to vector<8x1xf32>
    %c0_71 = arith.constant 0 : index
    %c0_72 = arith.constant 0 : index
    %125 = vector.load %arg14[%c0_71, %c0_72] : memref<1x32xf32, #tpu.memory_space<vmem>>, vector<1x32xf32>
    %c0_73 = arith.constant 0 : index
    %c0_74 = arith.constant 0 : index
    %126 = vector.load %arg15[%c0_73, %c0_74] : memref<1x32xf32, #tpu.memory_space<vmem>>, vector<1x32xf32>
    %cst_75 = arith.constant dense<0.000000e+00> : vector<8xf32>
    %127 = vector.multi_reduction <add>, %122, %cst_75 [1] : vector<8x32xf32> to vector<8xf32>
    %128 = vector.shape_cast %127 : vector<8xf32> to vector<8x1xf32>
    %cst_76 = arith.constant 3.200000e+01 : f32
    %129 = vector.broadcast %cst_76 : f32 to vector<8x1xf32>
    %130 = arith.divf %128, %129 : vector<8x1xf32>
    %131 = vector.broadcast %130 : vector<8x1xf32> to vector<8x32xf32>
    %132 = arith.subf %122, %131 : vector<8x32xf32>
    %133 = arith.mulf %132, %132 : vector<8x32xf32>
    %cst_77 = arith.constant dense<0.000000e+00> : vector<8xf32>
    %134 = vector.multi_reduction <add>, %133, %cst_77 [1] : vector<8x32xf32> to vector<8xf32>
    %135 = vector.shape_cast %134 : vector<8xf32> to vector<8x1xf32>
    %cst_78 = arith.constant 3.200000e+01 : f32
    %136 = vector.broadcast %cst_78 : f32 to vector<8x1xf32>
    %137 = arith.divf %135, %136 : vector<8x1xf32>
    %138 = vector.broadcast %130 : vector<8x1xf32> to vector<8x32xf32>
    %139 = arith.subf %122, %138 : vector<8x32xf32>
    %cst_79 = arith.constant 9.99999974E-6 : f32
    %140 = vector.broadcast %cst_79 : f32 to vector<8x1xf32>
    %141 = arith.addf %137, %140 : vector<8x1xf32>
    %142 = math.rsqrt %141 : vector<8x1xf32>
    %143 = vector.broadcast %142 : vector<8x1xf32> to vector<8x32xf32>
    %144 = arith.mulf %139, %143 : vector<8x32xf32>
    %145 = vector.broadcast %125 : vector<1x32xf32> to vector<8x32xf32>
    %146 = arith.mulf %144, %145 : vector<8x32xf32>
    %147 = vector.broadcast %126 : vector<1x32xf32> to vector<8x32xf32>
    %148 = arith.addf %146, %147 : vector<8x32xf32>
    %c0_80 = arith.constant 0 : index
    %c0_81 = arith.constant 0 : index
    %149 = vector.load %arg16[%c0_80, %c0_81] : memref<32x64xf32, #tpu.memory_space<vmem>>, vector<32x64xf32>
    %cst_82 = arith.constant dense<0.000000e+00> : vector<8x64xf32>
    %150 = tpu.matmul %148, %149, %cst_82 {dimension_numbers = #tpu.dot_dimension_numbers<[1], [0], [0], [1], [0, 0, 1, 1], [], []>} : vector<8x32xf32>, vector<32x64xf32>, vector<8x64xf32> -> vector<8x64xf32>
    %c0_83 = arith.constant 0 : index
    %c0_84 = arith.constant 0 : index
    %151 = vector.load %arg17[%c0_83, %c0_84] : memref<1x64xf32, #tpu.memory_space<vmem>>, vector<1x64xf32>
    %152 = vector.broadcast %151 : vector<1x64xf32> to vector<8x64xf32>
    %153 = arith.addf %150, %152 : vector<8x64xf32>
    %cst_85 = arith.constant 0.000000e+00 : f32
    %154 = vector.broadcast %cst_85 : f32 to vector<8x64xf32>
    %155 = arith.maximumf %153, %154 : vector<8x64xf32>
    %156 = vector.broadcast %124 : vector<8x1xf32> to vector<8x64xf32>
    %157 = arith.mulf %155, %156 : vector<8x64xf32>
    %c0_86 = arith.constant 0 : index
    %c0_87 = arith.constant 0 : index
    %158 = vector.load %arg18[%c0_86, %c0_87] : memref<64x32xf32, #tpu.memory_space<vmem>>, vector<64x32xf32>
    %cst_88 = arith.constant dense<0.000000e+00> : vector<8x32xf32>
    %159 = tpu.matmul %157, %158, %cst_88 {dimension_numbers = #tpu.dot_dimension_numbers<[1], [0], [0], [1], [0, 0, 1, 1], [], []>} : vector<8x64xf32>, vector<64x32xf32>, vector<8x32xf32> -> vector<8x32xf32>
    %c0_89 = arith.constant 0 : index
    %c0_90 = arith.constant 0 : index
    %160 = vector.load %arg19[%c0_89, %c0_90] : memref<1x32xf32, #tpu.memory_space<vmem>>, vector<1x32xf32>
    %161 = vector.broadcast %160 : vector<1x32xf32> to vector<8x32xf32>
    %162 = arith.addf %159, %161 : vector<8x32xf32>
    %163 = vector.broadcast %124 : vector<8x1xf32> to vector<8x32xf32>
    %164 = arith.mulf %162, %163 : vector<8x32xf32>
    %165 = arith.addf %122, %164 : vector<8x32xf32>
    %c0_91 = arith.constant 0 : index
    %c0_92 = arith.constant 0 : index
    %c0_93 = arith.constant 0 : index
    %166 = vector.load %arg20[%c0_91, %c0_92, %c0_93] : memref<1x8x32xf32, #tpu.memory_space<vmem>>, vector<1x8x32xf32>
    %167 = vector.shape_cast %166 : vector<1x8x32xf32> to vector<8x32xf32>
    %168 = vector.shape_cast %165 : vector<8x32xf32> to vector<1x8x32xf32>
    tpu.vector_store %arg20[%c0_91, %c0_92, %c0_93], %168 {strides = array<i32>} : memref<1x8x32xf32, #tpu.memory_space<vmem>>, vector<1x8x32xf32>,
    return
  }
  func.func @transform_0(%arg0: i32, %arg1: i32) -> (i32, i32, i32) {
    %c0_i32 = arith.constant 0 : i32
    %c0_i32_0 = arith.constant 0 : i32
    return %arg0, %arg1, %c0_i32 : i32, i32, i32
  }
  func.func @transform_1(%arg0: i32, %arg1: i32) -> (i32, i32, i32) {
    %c0_i32 = arith.constant 0 : i32
    %c0_i32_0 = arith.constant 0 : i32
    %c0_i32_1 = arith.constant 0 : i32
    return %arg0, %c0_i32, %c0_i32_0 : i32, i32, i32
  }
  func.func @transform_2(%arg0: i32, %arg1: i32) -> (i32, i32, i32) {
    %c0_i32 = arith.constant 0 : i32
    %c0_i32_0 = arith.constant 0 : i32
    %c0_i32_1 = arith.constant 0 : i32
    return %arg0, %c0_i32, %c0_i32_0 : i32, i32, i32
  }
  func.func @transform_3(%arg0: i32, %arg1: i32) -> (i32, i32, i32) {
    %c0_i32 = arith.constant 0 : i32
    %c0_i32_0 = arith.constant 0 : i32
    return %arg0, %arg1, %c0_i32 : i32, i32, i32
  }
  func.func @transform_4(%arg0: i32, %arg1: i32) -> (i32, i32) {
    %c0_i32 = arith.constant 0 : i32
    %c0_i32_0 = arith.constant 0 : i32
    %c0_i32_1 = arith.constant 0 : i32
    return %c0_i32, %c0_i32_0 : i32, i32
  }
  func.func @transform_5(%arg0: i32, %arg1: i32) -> (i32, i32) {
    %c0_i32 = arith.constant 0 : i32
    %c0_i32_0 = arith.constant 0 : i32
    %c0_i32_1 = arith.constant 0 : i32
    return %c0_i32, %c0_i32_0 : i32, i32
  }
  func.func @transform_6(%arg0: i32, %arg1: i32) -> (i32, i32) {
    %c0_i32 = arith.constant 0 : i32
    %c0_i32_0 = arith.constant 0 : i32
    %c0_i32_1 = arith.constant 0 : i32
    return %c0_i32, %c0_i32_0 : i32, i32
  }
  func.func @transform_7(%arg0: i32, %arg1: i32) -> (i32, i32) {
    %c0_i32 = arith.constant 0 : i32
    %c0_i32_0 = arith.constant 0 : i32
    %c0_i32_1 = arith.constant 0 : i32
    return %c0_i32, %c0_i32_0 : i32, i32
  }
  func.func @transform_8(%arg0: i32, %arg1: i32) -> (i32, i32) {
    %c0_i32 = arith.constant 0 : i32
    %c0_i32_0 = arith.constant 0 : i32
    %c0_i32_1 = arith.constant 0 : i32
    return %c0_i32, %c0_i32_0 : i32, i32
  }
  func.func @transform_9(%arg0: i32, %arg1: i32) -> (i32, i32) {
    %c0_i32 = arith.constant 0 : i32
    %c0_i32_0 = arith.constant 0 : i32
    %c0_i32_1 = arith.constant 0 : i32
    return %c0_i32, %c0_i32_0 : i32, i32
  }
  func.func @transform_10(%arg0: i32, %arg1: i32) -> (i32, i32) {
    %c0_i32 = arith.constant 0 : i32
    %c0_i32_0 = arith.constant 0 : i32
    %c0_i32_1 = arith.constant 0 : i32
    return %c0_i32, %c0_i32_0 : i32, i32
  }
  func.func @transform_11(%arg0: i32, %arg1: i32) -> (i32, i32) {
    %c0_i32 = arith.constant 0 : i32
    %c0_i32_0 = arith.constant 0 : i32
    %c0_i32_1 = arith.constant 0 : i32
    return %c0_i32, %c0_i32_0 : i32, i32
  }
  func.func @transform_12(%arg0: i32, %arg1: i32) -> (i32, i32) {
    %c0_i32 = arith.constant 0 : i32
    %c0_i32_0 = arith.constant 0 : i32
    %c0_i32_1 = arith.constant 0 : i32
    return %c0_i32, %c0_i32_0 : i32, i32
  }
  func.func @transform_13(%arg0: i32, %arg1: i32) -> (i32, i32) {
    %c0_i32 = arith.constant 0 : i32
    %c0_i32_0 = arith.constant 0 : i32
    %c0_i32_1 = arith.constant 0 : i32
    return %c0_i32, %c0_i32_0 : i32, i32
  }
  func.func @transform_14(%arg0: i32, %arg1: i32) -> (i32, i32) {
    %c0_i32 = arith.constant 0 : i32
    %c0_i32_0 = arith.constant 0 : i32
    %c0_i32_1 = arith.constant 0 : i32
    return %c0_i32, %c0_i32_0 : i32, i32
  }
  func.func @transform_15(%arg0: i32, %arg1: i32) -> (i32, i32) {
    %c0_i32 = arith.constant 0 : i32
    %c0_i32_0 = arith.constant 0 : i32
    %c0_i32_1 = arith.constant 0 : i32
    return %c0_i32, %c0_i32_0 : i32, i32
  }
  func.func @transform_16(%arg0: i32, %arg1: i32) -> (i32, i32) {
    %c0_i32 = arith.constant 0 : i32
    %c0_i32_0 = arith.constant 0 : i32
    %c0_i32_1 = arith.constant 0 : i32
    return %c0_i32, %c0_i32_0 : i32, i32
  }
  func.func @transform_17(%arg0: i32, %arg1: i32) -> (i32, i32) {
    %c0_i32 = arith.constant 0 : i32
    %c0_i32_0 = arith.constant 0 : i32
    %c0_i32_1 = arith.constant 0 : i32
    return %c0_i32, %c0_i32_0 : i32, i32
  }
  func.func @transform_18(%arg0: i32, %arg1: i32) -> (i32, i32, i32) {
    %c0_i32 = arith.constant 0 : i32
    %c0_i32_0 = arith.constant 0 : i32
    return %arg0, %arg1, %c0_i32 : i32, i32, i32
  }
}

</mosaic_0001>

<llo_original>
// kernel: tpu_custom_call.1
$region0: #{tpu_custom_call.1}
  #allocation0 [shape = 'u32[]', space=smem, size = 0x4, offset = 0x4, fixed_abs, tag = 'smem constant byte address 0x4 - core index']
  #allocation1 [shape = 'u32[72,128]{1,0:T(1,128)}', space=vmem, size = 0x9000, scoped, tag = 'internal scratch']
  #allocation2 [shape = 'f32[4,8,8]{2,1,0:T(8,128)}', space=vmem, size = 0x4000, scoped, tag = 'scratch operand']
  #allocation3 [shape = 'f32[4,8,8]{2,1,0:T(8,128)}', space=vmem, size = 0x4000, scoped, tag = 'scratch operand']
  #allocation4 [shape = 'f32[8,32]{1,0:T(8,128)}', space=vmem, size = 0x1000, scoped, tag = 'scratch operand']
  %s0 = inlined_call_operand.hbm [shape: f32[2,8,32], index: 0, kind: input, shape index: {}]
  %s1 = inlined_call_operand.hbm [shape: f32[2,8,32], index: 1, kind: input, shape index: {}]
  %s2 = inlined_call_operand.hbm [shape: f32[2,1,8], index: 2, kind: input, shape index: {}]
  %s3 = inlined_call_operand.vmem [shape: f32[2,8,1], index: 3, kind: input, shape index: {}]
  %s4 = inlined_call_operand.vmem [shape: f32[1,32], index: 4, kind: input, shape index: {}]
  %s5 = inlined_call_operand.hbm [shape: f32[1,32], index: 5, kind: input, shape index: {}]
  %s6 = inlined_call_operand.vmem [shape: f32[32,32], index: 6, kind: input, shape index: {}]
  %s7 = inlined_call_operand.hbm [shape: f32[1,32], index: 7, kind: input, shape index: {}]
  %s8 = inlined_call_operand.vmem [shape: f32[32,64], index: 8, kind: input, shape index: {}]
  %s9 = inlined_call_operand.hbm [shape: f32[1,64], index: 9, kind: input, shape index: {}]
  %s10 = inlined_call_operand.vmem [shape: f32[32,32], index: 10, kind: input, shape index: {}]
  %s11 = inlined_call_operand.hbm [shape: f32[1,32], index: 11, kind: input, shape index: {}]
  %s12 = inlined_call_operand.hbm [shape: f32[1,32], index: 12, kind: input, shape index: {}]
  %s13 = inlined_call_operand.hbm [shape: f32[1,32], index: 13, kind: input, shape index: {}]
  %s14 = inlined_call_operand.hbm [shape: f32[32,64], index: 14, kind: input, shape index: {}]
  %s15 = inlined_call_operand.hbm [shape: f32[1,64], index: 15, kind: input, shape index: {}]
  %s16 = inlined_call_operand.vmem [shape: f32[64,32], index: 16, kind: input, shape index: {}]
  %s17 = inlined_call_operand.hbm [shape: f32[1,32], index: 17, kind: input, shape index: {}]
  %s18 = inlined_call_operand.hbm [shape: f32[2,8,32], index: 18, kind: output, shape index: {}]
  %s19 = sld [smem:[#allocation0]]
  $region157: #{tpu_custom_call.1} parent=0
    _
  %s21 = ssub.s32 1, %s19
  %s22 = scalar_select 0, %s21, %s19
  $region1: #{tpu_custom_call.1} parent=0
    #allocation5 [shape = 'u8[8192]{0}', space=vmem, size = 0x2000, scoped, tag = 'input window, operand 0']
    #allocation6 [shape = 's32[2]{0}', space=sflag, size = 0x8, scoped, tag = 'scoped memory for tpu_custom_call.1']
    #allocation7 [shape = 's32[2]{0}', space=sflag, size = 0x8, scoped, tag = 'scoped memory for tpu_custom_call.1']
    #allocation8 [shape = 'u8[8192]{0}', space=vmem, size = 0x2000, scoped, tag = 'input window, operand 1']
    #allocation9 [shape = 's32[2]{0}', space=sflag, size = 0x8, scoped, tag = 'scoped memory for tpu_custom_call.1']
    #allocation10 [shape = 'u8[1024]{0}', space=vmem, size = 0x400, scoped, tag = 'input window, operand 2']
    #allocation11 [shape = 'u8[512]{0}', space=vmem, size = 0x400, scoped, tag = 'input window, operand 5, single buffered']
    #allocation12 [shape = 's32[1]{0}', space=sflag, size = 0x4, scoped, tag = 'scoped memory for tpu_custom_call.1']
    #allocation13 [shape = 'u8[512]{0}', space=vmem, size = 0x400, scoped, tag = 'input window, operand 7, single buffered']
    #allocation14 [shape = 'u8[512]{0}', space=vmem, size = 0x400, scoped, tag = 'input window, operand 9, single buffered']
    #allocation15 [shape = 's32[1]{0}', space=sflag, size = 0x4, scoped, tag = 'scoped memory for tpu_custom_call.1']
    #allocation16 [shape = 'u8[512]{0}', space=vmem, size = 0x400, scoped, tag = 'input window, operand 11, single buffered']
    #allocation17 [shape = 'u8[512]{0}', space=vmem, size = 0x400, scoped, tag = 'input window, operand 12, single buffered']
    #allocation18 [shape = 's32[1]{0}', space=sflag, size = 0x4, scoped, tag = 'scoped memory for tpu_custom_call.1']
    #allocation19 [shape = 'u8[512]{0}', space=vmem, size = 0x400, scoped, tag = 'input window, operand 13, single buffered']
    #allocation20 [shape = 'u8[16384]{0}', space=vmem, size = 0x4000, scoped, tag = 'input window, operand 14, single buffered']
    #allocation21 [shape = 's32[1]{0}', space=sflag, size = 0x4, scoped, tag = 'scoped memory for tpu_custom_call.1']
    #allocation22 [shape = 'u8[512]{0}', space=vmem, size = 0x400, scoped, tag = 'input window, operand 15, single buffered']
    #allocation23 [shape = 'u8[512]{0}', space=vmem, size = 0x400, scoped, tag = 'input window, operand 17, single buffered']
    #allocation24 [shape = 's32[1]{0}', space=sflag, size = 0x4, scoped, tag = 'scoped memory for tpu_custom_call.1']
    #allocation25 [shape = 'u8[8192]{0}', space=vmem, size = 0x2000, scoped, tag = 'output window, operand 0']
    %23 = vsyncpa [#allocation6], 0
    %s24 = scalar_lea.sflag [#allocation6], 1
    %25 = vsyncpa %s24, 0
    %26 = vsyncpa [#allocation9], 0
    %s27 = scalar_lea.sflag [#allocation9], 1
    %28 = vsyncpa %s27, 0
    %29 = vsyncpa [#allocation12], 0
    %30 = vsyncpa [#allocation15], 0
    %31 = vsyncpa [#allocation18], 0
    %32 = vsyncpa [#allocation21], 0
    %33 = vsyncpa [#allocation24], 0
    %34 = vsyncpa [#allocation7], 0
    %s35 = scalar_lea.sflag [#allocation7], 1
    %36 = vsyncpa %s35, 0
    loop: start=0, step=1, limit=4
    $region2: #{tpu_custom_call.1} parent=1 // loop_pre_header
      _
    $region3: #{tpu_custom_call.1} parent=1 // loop_header
      %s38 = sphi 0, %s42
      %p39 = scmp.ge.s32.totalorder %s38, 4
      %s45 = sphi 0, %s57
      %s46 = sphi 0, %s53
      %s47 = sphi 0, %s45
      %s48 = sphi 0, %s46
      %s49 = sphi 0, %s47
      %s50 = sphi 0, %s48
      %s62 = sphi 0, %s64
      %s65 = sphi 0, %s62
      %s66 = sphi 0, %s65
      %s82 = sphi 0, %s66
      %s88 = sphi 0, %s90
      %s91 = sphi 0, %s88
      %s92 = sphi 0, %s91
      %s108 = sphi 0, %s92
      %s114 = sphi 0, %s116
      %s117 = sphi 0, %s114
      %s118 = sphi 0, %s117
      %s134 = sphi 0, %s118
      %s142 = sphi 0, %s144
      %s145 = sphi 0, %s142
      %s146 = sphi 0, %s145
      %s162 = sphi 0, %s146
      %s166 = sphi 0, %s166
      %s168 = sphi 0, %s166
      %s169 = sphi 0, %s168
      %s183 = sphi 0, %s169
      %s187 = sphi 0, %s187
      %s189 = sphi 0, %s187
      %s190 = sphi 0, %s189
      %s204 = sphi 0, %s190
      %s208 = sphi 0, %s208
      %s210 = sphi 0, %s208
      %s211 = sphi 0, %s210
      %s225 = sphi 0, %s211
      %s229 = sphi 0, %s229
      %s231 = sphi 0, %s229
      %s232 = sphi 0, %s231
      %s246 = sphi 0, %s232
      %s250 = sphi 0, %s250
      %s252 = sphi 0, %s250
      %s253 = sphi 0, %s252
      %s267 = sphi 0, %s253
      %s271 = sphi 0, %s271
      %s273 = sphi 0, %s271
      %s274 = sphi 0, %s273
      %s288 = sphi 0, %s274
      %s292 = sphi 0, %s292
      %s294 = sphi 0, %s292
      %s295 = sphi 0, %s294
      %s309 = sphi 0, %s295
      %s313 = sphi 0, %s313
      %s315 = sphi 0, %s313
      %s316 = sphi 0, %s315
      %s330 = sphi 0, %s316
      %s334 = sphi 0, %s334
      %s336 = sphi 0, %s334
      %s337 = sphi 0, %s336
      %s351 = sphi 0, %s337
      %s355 = sphi 0, %s355
      %s357 = sphi 0, %s355
      %s358 = sphi 0, %s357
      %s372 = sphi 0, %s358
      %s376 = sphi 0, %s376
      %s378 = sphi 0, %s376
      %s379 = sphi 0, %s378
      %s393 = sphi 0, %s379
      %s397 = sphi 0, %s397
      %s399 = sphi 0, %s397
      %s400 = sphi 0, %s399
      %s414 = sphi 0, %s400
      %s418 = sphi 0, %s418
      %s420 = sphi 0, %s418
      %s421 = sphi 0, %s420
      %s435 = sphi 0, %s421
      %s439 = sphi 0, %s439
      %s441 = sphi 0, %s439
      %s442 = sphi 0, %s441
      %s456 = sphi 0, %s442
      %s464 = sphi 0, %s466
      %s467 = sphi 0, %s464
      %s468 = sphi 0, %s467
      %s484 = sphi 0, %s468
    $region4: #{tpu_custom_call.1} parent=1 // loop_header_branch
      %41 = sbr.rel (%p39) target = $region8
    $region5: #{tpu_custom_call.1} parent=1 // loop_body
      %s43 = ssub.s32 %s38, 1
      %s44 = ssub.s32 %s38, 2
      %s51 = sadd.s32 1, %s46
      %p52 = scmp.ge.s32.totalorder %s51, 1
      %s53 = scalar_select %p52, 0, %s51
      %s54 = sadd.s32 1, %s45
      %s55 = scalar_select %p52, %s54, %s45
      %p56 = scmp.ge.s32.totalorder %s55, 2
      %s57 = scalar_select %p56, 0, %s55
      %s58 = ssub.s32 %s45, %s57
      %s59 = ssub.s32 %s46, %s53
      %s60 = sor.u32 %s58, %s59
      %p61 = scmp.eq.s32.totalorder %s60, 0
      %s63 = sadd.s32 %s62, 1
      %s64 = scalar_select %p61, %s62, %s63
      %p67 = pneg %p61
      %p68 = scmp.eq.s32.totalorder %s38, 1
      %p69 = por %p67, %p68
      %p70 = scmp.ne.s32.totalorder %s62, %s65
      %p71 = scmp.eq.s32.totalorder %s38, 0
      %p72 = por %p70, %p71
      %p73 = scmp.ne.s32.totalorder %s62, %s65
      %p74 = scmp.eq.s32.totalorder %s43, 1
      %p75 = por %p73, %p74
      %p76 = scmp.ne.s32.totalorder %s65, %s66
      %p77 = scmp.eq.s32.totalorder %s43, 0
      %p78 = por %p76, %p77
      %p79 = scmp.ne.s32.totalorder %s65, %s66
      %p80 = scmp.eq.s32.totalorder %s44, 1
      %p81 = por %p79, %p80
      %p83 = scmp.ne.s32.totalorder %s66, %s82
      %p84 = scmp.eq.s32.totalorder %s44, 0
      %p85 = por %p83, %p84
      %s86 = ssub.s32 %s45, %s57
      %p87 = scmp.eq.s32.totalorder %s86, 0
      %s89 = sadd.s32 %s88, 1
      %s90 = scalar_select %p87, %s88, %s89
      %p93 = pneg %p87
      %p94 = scmp.eq.s32.totalorder %s38, 1
      %p95 = por %p93, %p94
      %p96 = scmp.ne.s32.totalorder %s88, %s91
      %p97 = scmp.eq.s32.totalorder %s38, 0
      %p98 = por %p96, %p97
      %p99 = scmp.ne.s32.totalorder %s88, %s91
      %p100 = scmp.eq.s32.totalorder %s43, 1
      %p101 = por %p99, %p100
      %p102 = scmp.ne.s32.totalorder %s91, %s92
      %p103 = scmp.eq.s32.totalorder %s43, 0
      %p104 = por %p102, %p103
      %p105 = scmp.ne.s32.totalorder %s91, %s92
      %p106 = scmp.eq.s32.totalorder %s44, 1
      %p107 = por %p105, %p106
      %p109 = scmp.ne.s32.totalorder %s92, %s108
      %p110 = scmp.eq.s32.totalorder %s44, 0
      %p111 = por %p109, %p110
      %s112 = ssub.s32 %s45, %s57
      %p113 = scmp.eq.s32.totalorder %s112, 0
      %s115 = sadd.s32 %s114, 1
      %s116 = scalar_select %p113, %s114, %s115
      %p119 = pneg %p113
      %p120 = scmp.eq.s32.totalorder %s38, 1
      %p121 = por %p119, %p120
      %p122 = scmp.ne.s32.totalorder %s114, %s117
      %p123 = scmp.eq.s32.totalorder %s38, 0
      %p124 = por %p122, %p123
      %p125 = scmp.ne.s32.totalorder %s114, %s117
      %p126 = scmp.eq.s32.totalorder %s43, 1
      %p127 = por %p125, %p126
      %p128 = scmp.ne.s32.totalorder %s117, %s118
      %p129 = scmp.eq.s32.totalorder %s43, 0
      %p130 = por %p128, %p129
      %p131 = scmp.ne.s32.totalorder %s117, %s118
      %p132 = scmp.eq.s32.totalorder %s44, 1
      %p133 = por %p131, %p132
      %p135 = scmp.ne.s32.totalorder %s118, %s134
      %p136 = scmp.eq.s32.totalorder %s44, 0
      %p137 = por %p135, %p136
      %s138 = ssub.s32 %s45, %s57
      %s139 = ssub.s32 %s46, %s53
      %s140 = sor.u32 %s138, %s139
      %p141 = scmp.eq.s32.totalorder %s140, 0
      %s143 = sadd.s32 %s142, 1
      %s144 = scalar_select %p141, %s142, %s143
      %p147 = pneg %p141
      %p148 = scmp.eq.s32.totalorder %s38, 1
      %p149 = por %p147, %p148
      %p150 = scmp.ne.s32.totalorder %s142, %s145
      %p151 = scmp.eq.s32.totalorder %s38, 0
      %p152 = por %p150, %p151
      %p153 = scmp.ne.s32.totalorder %s142, %s145
      %p154 = scmp.eq.s32.totalorder %s43, 1
      %p155 = por %p153, %p154
      %p156 = scmp.ne.s32.totalorder %s145, %s146
      %p157 = scmp.eq.s32.totalorder %s43, 0
      %p158 = por %p156, %p157
      %p159 = scmp.ne.s32.totalorder %s145, %s146
      %p160 = scmp.eq.s32.totalorder %s44, 1
      %p161 = por %p159, %p160
      %p163 = scmp.ne.s32.totalorder %s146, %s162
      %p164 = scmp.eq.s32.totalorder %s44, 0
      %p165 = por %p163, %p164
      %s167 = sadd.s32 %s166, 1
      %p170 = scmp.eq.s32.totalorder %s38, 1
      %p171 = scmp.ne.s32.totalorder %s166, %s168
      %p172 = scmp.eq.s32.totalorder %s38, 0
      %p173 = por %p171, %p172
      %p174 = scmp.ne.s32.totalorder %s166, %s168
      %p175 = scmp.eq.s32.totalorder %s43, 1
      %p176 = por %p174, %p175
      %p177 = scmp.ne.s32.totalorder %s168, %s169
      %p178 = scmp.eq.s32.totalorder %s43, 0
      %p179 = por %p177, %p178
      %p180 = scmp.ne.s32.totalorder %s168, %s169
      %p181 = scmp.eq.s32.totalorder %s44, 1
      %p182 = por %p180, %p181
      %p184 = scmp.ne.s32.totalorder %s169, %s183
      %p185 = scmp.eq.s32.totalorder %s44, 0
      %p186 = por %p184, %p185
      %s188 = sadd.s32 %s187, 1
      %p191 = scmp.eq.s32.totalorder %s38, 1
      %p192 = scmp.ne.s32.totalorder %s187, %s189
      %p193 = scmp.eq.s32.totalorder %s38, 0
      %p194 = por %p192, %p193
      %p195 = scmp.ne.s32.totalorder %s187, %s189
      %p196 = scmp.eq.s32.totalorder %s43, 1
      %p197 = por %p195, %p196
      %p198 = scmp.ne.s32.totalorder %s189, %s190
      %p199 = scmp.eq.s32.totalorder %s43, 0
      %p200 = por %p198, %p199
      %p201 = scmp.ne.s32.totalorder %s189, %s190
      %p202 = scmp.eq.s32.totalorder %s44, 1
      %p203 = por %p201, %p202
      %p205 = scmp.ne.s32.totalorder %s190, %s204
      %p206 = scmp.eq.s32.totalorder %s44, 0
      %p207 = por %p205, %p206
      %s209 = sadd.s32 %s208, 1
      %p212 = scmp.eq.s32.totalorder %s38, 1
      %p213 = scmp.ne.s32.totalorder %s208, %s210
      %p214 = scmp.eq.s32.totalorder %s38, 0
      %p215 = por %p213, %p214
      %p216 = scmp.ne.s32.totalorder %s208, %s210
      %p217 = scmp.eq.s32.totalorder %s43, 1
      %p218 = por %p216, %p217
      %p219 = scmp.ne.s32.totalorder %s210, %s211
      %p220 = scmp.eq.s32.totalorder %s43, 0
      %p221 = por %p219, %p220
      %p222 = scmp.ne.s32.totalorder %s210, %s211
      %p223 = scmp.eq.s32.totalorder %s44, 1
      %p224 = por %p222, %p223
      %p226 = scmp.ne.s32.totalorder %s211, %s225
      %p227 = scmp.eq.s32.totalorder %s44, 0
      %p228 = por %p226, %p227
      %s230 = sadd.s32 %s229, 1
      %p233 = scmp.eq.s32.totalorder %s38, 1
      %p234 = scmp.ne.s32.totalorder %s229, %s231
      %p235 = scmp.eq.s32.totalorder %s38, 0
      %p236 = por %p234, %p235
      %p237 = scmp.ne.s32.totalorder %s229, %s231
      %p238 = scmp.eq.s32.totalorder %s43, 1
      %p239 = por %p237, %p238
      %p240 = scmp.ne.s32.totalorder %s231, %s232
      %p241 = scmp.eq.s32.totalorder %s43, 0
      %p242 = por %p240, %p241
      %p243 = scmp.ne.s32.totalorder %s231, %s232
      %p244 = scmp.eq.s32.totalorder %s44, 1
      %p245 = por %p243, %p244
      %p247 = scmp.ne.s32.totalorder %s232, %s246
      %p248 = scmp.eq.s32.totalorder %s44, 0
      %p249 = por %p247, %p248
      %s251 = sadd.s32 %s250, 1
      %p254 = scmp.eq.s32.totalorder %s38, 1
      %p255 = scmp.ne.s32.totalorder %s250, %s252
      %p256 = scmp.eq.s32.totalorder %s38, 0
      %p257 = por %p255, %p256
      %p258 = scmp.ne.s32.totalorder %s250, %s252
      %p259 = scmp.eq.s32.totalorder %s43, 1
      %p260 = por %p258, %p259
      %p261 = scmp.ne.s32.totalorder %s252, %s253
      %p262 = scmp.eq.s32.totalorder %s43, 0
      %p263 = por %p261, %p262
      %p264 = scmp.ne.s32.totalorder %s252, %s253
      %p265 = scmp.eq.s32.totalorder %s44, 1
      %p266 = por %p264, %p265
      %p268 = scmp.ne.s32.totalorder %s253, %s267
      %p269 = scmp.eq.s32.totalorder %s44, 0
      %p270 = por %p268, %p269
      %s272 = sadd.s32 %s271, 1
      %p275 = scmp.eq.s32.totalorder %s38, 1
      %p276 = scmp.ne.s32.totalorder %s271, %s273
      %p277 = scmp.eq.s32.totalorder %s38, 0
      %p278 = por %p276, %p277
      %p279 = scmp.ne.s32.totalorder %s271, %s273
      %p280 = scmp.eq.s32.totalorder %s43, 1
      %p281 = por %p279, %p280
      %p282 = scmp.ne.s32.totalorder %s273, %s274
      %p283 = scmp.eq.s32.totalorder %s43, 0
      %p284 = por %p282, %p283
      %p285 = scmp.ne.s32.totalorder %s273, %s274
      %p286 = scmp.eq.s32.totalorder %s44, 1
      %p287 = por %p285, %p286
      %p289 = scmp.ne.s32.totalorder %s274, %s288
      %p290 = scmp.eq.s32.totalorder %s44, 0
      %p291 = por %p289, %p290
      %s293 = sadd.s32 %s292, 1
      %p296 = scmp.eq.s32.totalorder %s38, 1
      %p297 = scmp.ne.s32.totalorder %s292, %s294
      %p298 = scmp.eq.s32.totalorder %s38, 0
      %p299 = por %p297, %p298
      %p300 = scmp.ne.s32.totalorder %s292, %s294
      %p301 = scmp.eq.s32.totalorder %s43, 1
      %p302 = por %p300, %p301
      %p303 = scmp.ne.s32.totalorder %s294, %s295
      %p304 = scmp.eq.s32.totalorder %s43, 0
      %p305 = por %p303, %p304
      %p306 = scmp.ne.s32.totalorder %s294, %s295
      %p307 = scmp.eq.s32.totalorder %s44, 1
      %p308 = por %p306, %p307
      %p310 = scmp.ne.s32.totalorder %s295, %s309
      %p311 = scmp.eq.s32.totalorder %s44, 0
      %p312 = por %p310, %p311
      %s314 = sadd.s32 %s313, 1
      %p317 = scmp.eq.s32.totalorder %s38, 1
      %p318 = scmp.ne.s32.totalorder %s313, %s315
      %p319 = scmp.eq.s32.totalorder %s38, 0
      %p320 = por %p318, %p319
      %p321 = scmp.ne.s32.totalorder %s313, %s315
      %p322 = scmp.eq.s32.totalorder %s43, 1
      %p323 = por %p321, %p322
      %p324 = scmp.ne.s32.totalorder %s315, %s316
      %p325 = scmp.eq.s32.totalorder %s43, 0
      %p326 = por %p324, %p325
      %p327 = scmp.ne.s32.totalorder %s315, %s316
      %p328 = scmp.eq.s32.totalorder %s44, 1
      %p329 = por %p327, %p328
      %p331 = scmp.ne.s32.totalorder %s316, %s330
      %p332 = scmp.eq.s32.totalorder %s44, 0
      %p333 = por %p331, %p332
      %s335 = sadd.s32 %s334, 1
      %p338 = scmp.eq.s32.totalorder %s38, 1
      %p339 = scmp.ne.s32.totalorder %s334, %s336
      %p340 = scmp.eq.s32.totalorder %s38, 0
      %p341 = por %p339, %p340
      %p342 = scmp.ne.s32.totalorder %s334, %s336
      %p343 = scmp.eq.s32.totalorder %s43, 1
      %p344 = por %p342, %p343
      %p345 = scmp.ne.s32.totalorder %s336, %s337
      %p346 = scmp.eq.s32.totalorder %s43, 0
      %p347 = por %p345, %p346
      %p348 = scmp.ne.s32.totalorder %s336, %s337
      %p349 = scmp.eq.s32.totalorder %s44, 1
      %p350 = por %p348, %p349
      %p352 = scmp.ne.s32.totalorder %s337, %s351
      %p353 = scmp.eq.s32.totalorder %s44, 0
      %p354 = por %p352, %p353
      %s356 = sadd.s32 %s355, 1
      %p359 = scmp.eq.s32.totalorder %s38, 1
      %p360 = scmp.ne.s32.totalorder %s355, %s357
      %p361 = scmp.eq.s32.totalorder %s38, 0
      %p362 = por %p360, %p361
      %p363 = scmp.ne.s32.totalorder %s355, %s357
      %p364 = scmp.eq.s32.totalorder %s43, 1
      %p365 = por %p363, %p364
      %p366 = scmp.ne.s32.totalorder %s357, %s358
      %p367 = scmp.eq.s32.totalorder %s43, 0
      %p368 = por %p366, %p367
      %p369 = scmp.ne.s32.totalorder %s357, %s358
      %p370 = scmp.eq.s32.totalorder %s44, 1
      %p371 = por %p369, %p370
      %p373 = scmp.ne.s32.totalorder %s358, %s372
      %p374 = scmp.eq.s32.totalorder %s44, 0
      %p375 = por %p373, %p374
      %s377 = sadd.s32 %s376, 1
      %p380 = scmp.eq.s32.totalorder %s38, 1
      %p381 = scmp.ne.s32.totalorder %s376, %s378
      %p382 = scmp.eq.s32.totalorder %s38, 0
      %p383 = por %p381, %p382
      %p384 = scmp.ne.s32.totalorder %s376, %s378
      %p385 = scmp.eq.s32.totalorder %s43, 1
      %p386 = por %p384, %p385
      %p387 = scmp.ne.s32.totalorder %s378, %s379
      %p388 = scmp.eq.s32.totalorder %s43, 0
      %p389 = por %p387, %p388
      %p390 = scmp.ne.s32.totalorder %s378, %s379
      %p391 = scmp.eq.s32.totalorder %s44, 1
      %p392 = por %p390, %p391
      %p394 = scmp.ne.s32.totalorder %s379, %s393
      %p395 = scmp.eq.s32.totalorder %s44, 0
      %p396 = por %p394, %p395
      %s398 = sadd.s32 %s397, 1
      %p401 = scmp.eq.s32.totalorder %s38, 1
      %p402 = scmp.ne.s32.totalorder %s397, %s399
      %p403 = scmp.eq.s32.totalorder %s38, 0
      %p404 = por %p402, %p403
      %p405 = scmp.ne.s32.totalorder %s397, %s399
      %p406 = scmp.eq.s32.totalorder %s43, 1
      %p407 = por %p405, %p406
      %p408 = scmp.ne.s32.totalorder %s399, %s400
      %p409 = scmp.eq.s32.totalorder %s43, 0
      %p410 = por %p408, %p409
      %p411 = scmp.ne.s32.totalorder %s399, %s400
      %p412 = scmp.eq.s32.totalorder %s44, 1
      %p413 = por %p411, %p412
      %p415 = scmp.ne.s32.totalorder %s400, %s414
      %p416 = scmp.eq.s32.totalorder %s44, 0
      %p417 = por %p415, %p416
      %s419 = sadd.s32 %s418, 1
      %p422 = scmp.eq.s32.totalorder %s38, 1
      %p423 = scmp.ne.s32.totalorder %s418, %s420
      %p424 = scmp.eq.s32.totalorder %s38, 0
      %p425 = por %p423, %p424
      %p426 = scmp.ne.s32.totalorder %s418, %s420
      %p427 = scmp.eq.s32.totalorder %s43, 1
      %p428 = por %p426, %p427
      %p429 = scmp.ne.s32.totalorder %s420, %s421
      %p430 = scmp.eq.s32.totalorder %s43, 0
      %p431 = por %p429, %p430
      %p432 = scmp.ne.s32.totalorder %s420, %s421
      %p433 = scmp.eq.s32.totalorder %s44, 1
      %p434 = por %p432, %p433
      %p436 = scmp.ne.s32.totalorder %s421, %s435
      %p437 = scmp.eq.s32.totalorder %s44, 0
      %p438 = por %p436, %p437
      %s440 = sadd.s32 %s439, 1
      %p443 = scmp.eq.s32.totalorder %s38, 1
      %p444 = scmp.ne.s32.totalorder %s439, %s441
      %p445 = scmp.eq.s32.totalorder %s38, 0
      %p446 = por %p444, %p445
      %p447 = scmp.ne.s32.totalorder %s439, %s441
      %p448 = scmp.eq.s32.totalorder %s43, 1
      %p449 = por %p447, %p448
      %p450 = scmp.ne.s32.totalorder %s441, %s442
      %p451 = scmp.eq.s32.totalorder %s43, 0
      %p452 = por %p450, %p451
      %p453 = scmp.ne.s32.totalorder %s441, %s442
      %p454 = scmp.eq.s32.totalorder %s44, 1
      %p455 = por %p453, %p454
      %p457 = scmp.ne.s32.totalorder %s442, %s456
      %p458 = scmp.eq.s32.totalorder %s44, 0
      %p459 = por %p457, %p458
      %s460 = ssub.s32 %s45, %s57
      %s461 = ssub.s32 %s46, %s53
      %s462 = sor.u32 %s460, %s461
      %p463 = scmp.eq.s32.totalorder %s462, 0
      %s465 = sadd.s32 %s464, 1
      %s466 = scalar_select %p463, %s464, %s465
      %p469 = pneg %p463
      %p470 = scmp.eq.s32.totalorder %s38, 1
      %p471 = por %p469, %p470
      %p472 = scmp.ne.s32.totalorder %s464, %s467
      %p473 = scmp.eq.s32.totalorder %s38, 0
      %p474 = por %p472, %p473
      %p475 = scmp.ne.s32.totalorder %s464, %s467
      %p476 = scmp.eq.s32.totalorder %s43, 1
      %p477 = por %p475, %p476
      %p478 = scmp.ne.s32.totalorder %s467, %s468
      %p479 = scmp.eq.s32.totalorder %s43, 0
      %p480 = por %p478, %p479
      %p481 = scmp.ne.s32.totalorder %s467, %s468
      %p482 = scmp.eq.s32.totalorder %s44, 1
      %p483 = por %p481, %p482
      %p485 = scmp.ne.s32.totalorder %s468, %s484
      %p486 = scmp.eq.s32.totalorder %s44, 0
      %p487 = por %p485, %p486
      %p488 = scmp.le.s32.totalorder 1, %s38
      %p489 = scmp.lt.s32.totalorder %s38, 3
      %p490 = pnand %p488, %p489
      %p491 = pneg %p490
      // Predicated region
      $region9: #{tpu_custom_call.1} parent=5 // pred_check
        _
      $region10: #{tpu_custom_call.1} parent=5 // pred_check_branch
        %493 = sbr.rel (%p490) target = $region12
      $region11: #{tpu_custom_call.1} parent=5 // pred_region
        %s494 = ssub.s32 %s38, 1
        // Predicated region
        $region13: #{tpu_custom_call.1} parent=11 // pred_check
          %p495 = pneg %p179
        $region14: #{tpu_custom_call.1} parent=11 // pred_check_branch
          %497 = sbr.rel (%p495) target = $region16
        $region15: #{tpu_custom_call.1} parent=11 // pred_region
          _
        $region16: #{tpu_custom_call.1} parent=11 // pred_fallthru
          _
        // Predicated region
        $region17: #{tpu_custom_call.1} parent=11 // pred_check
          %p498 = pneg %p200
        $region18: #{tpu_custom_call.1} parent=11 // pred_check_branch
          %500 = sbr.rel (%p498) target = $region20
        $region19: #{tpu_custom_call.1} parent=11 // pred_region
          %502 = vsyncadd [#allocation12], 0
          %s504 = sshll.u32 %s5, 4
          %s505 = int_to_ptr.hbm [resolvable:$true] %s504
          %s506 = sshll.u32 [#allocation11], 4
          %s507 = int_to_ptr.vmem [resolvable:$true] %s506
          %509 = dma.hbm_to_vmem [thread:$0]  %s505, 16, %s507, [#allocation12]
        $region20: #{tpu_custom_call.1} parent=11 // pred_fallthru
          _
        // Predicated region
        $region21: #{tpu_custom_call.1} parent=11 // pred_check
          %p510 = pneg %p221
        $region22: #{tpu_custom_call.1} parent=11 // pred_check_branch
          %512 = sbr.rel (%p510) target = $region24
        $region23: #{tpu_custom_call.1} parent=11 // pred_region
          _
        $region24: #{tpu_custom_call.1} parent=11 // pred_fallthru
          _
        // Predicated region
        $region25: #{tpu_custom_call.1} parent=11 // pred_check
          %p513 = pneg %p242
        $region26: #{tpu_custom_call.1} parent=11 // pred_check_branch
          %515 = sbr.rel (%p513) target = $region28
        $region27: #{tpu_custom_call.1} parent=11 // pred_region
          %517 = vsyncadd [#allocation12], 0
          %s519 = sshll.u32 %s7, 4
          %s520 = int_to_ptr.hbm [resolvable:$true] %s519
          %s521 = sshll.u32 [#allocation13], 4
          %s522 = int_to_ptr.vmem [resolvable:$true] %s521
          %524 = dma.hbm_to_vmem [thread:$0]  %s520, 16, %s522, [#allocation12]
        $region28: #{tpu_custom_call.1} parent=11 // pred_fallthru
          _
        // Predicated region
        $region29: #{tpu_custom_call.1} parent=11 // pred_check
          %p525 = pneg %p263
        $region30: #{tpu_custom_call.1} parent=11 // pred_check_branch
          %527 = sbr.rel (%p525) target = $region32
        $region31: #{tpu_custom_call.1} parent=11 // pred_region
          _
        $region32: #{tpu_custom_call.1} parent=11 // pred_fallthru
          _
        // Predicated region
        $region33: #{tpu_custom_call.1} parent=11 // pred_check
          %p528 = pneg %p284
        $region34: #{tpu_custom_call.1} parent=11 // pred_check_branch
          %530 = sbr.rel (%p528) target = $region36
        $region35: #{tpu_custom_call.1} parent=11 // pred_region
          %532 = vsyncadd [#allocation15], 0
          %s534 = sshll.u32 %s9, 4
          %s535 = int_to_ptr.hbm [resolvable:$true] %s534
          %s536 = sshll.u32 [#allocation14], 4
          %s537 = int_to_ptr.vmem [resolvable:$true] %s536
          %539 = dma.hbm_to_vmem [thread:$0]  %s535, 16, %s537, [#allocation15]
        $region36: #{tpu_custom_call.1} parent=11 // pred_fallthru
          _
        // Predicated region
        $region37: #{tpu_custom_call.1} parent=11 // pred_check
          %p540 = pneg %p305
        $region38: #{tpu_custom_call.1} parent=11 // pred_check_branch
          %542 = sbr.rel (%p540) target = $region40
        $region39: #{tpu_custom_call.1} parent=11 // pred_region
          _
        $region40: #{tpu_custom_call.1} parent=11 // pred_fallthru
          _
        // Predicated region
        $region41: #{tpu_custom_call.1} parent=11 // pred_check
          %p543 = pneg %p326
        $region42: #{tpu_custom_call.1} parent=11 // pred_check_branch
          %545 = sbr.rel (%p543) target = $region44
        $region43: #{tpu_custom_call.1} parent=11 // pred_region
          %547 = vsyncadd [#allocation15], 0
          %s549 = sshll.u32 %s11, 4
          %s550 = int_to_ptr.hbm [resolvable:$true] %s549
          %s551 = sshll.u32 [#allocation16], 4
          %s552 = int_to_ptr.vmem [resolvable:$true] %s551
          %554 = dma.hbm_to_vmem [thread:$0]  %s550, 16, %s552, [#allocation15]
        $region44: #{tpu_custom_call.1} parent=11 // pred_fallthru
          _
        // Predicated region
        $region45: #{tpu_custom_call.1} parent=11 // pred_check
          %p555 = pneg %p347
        $region46: #{tpu_custom_call.1} parent=11 // pred_check_branch
          %557 = sbr.rel (%p555) target = $region48
        $region47: #{tpu_custom_call.1} parent=11 // pred_region
          %559 = vsyncadd [#allocation18], 0
          %s561 = sshll.u32 %s12, 4
          %s562 = int_to_ptr.hbm [resolvable:$true] %s561
          %s563 = sshll.u32 [#allocation17], 4
          %s564 = int_to_ptr.vmem [resolvable:$true] %s563
          %566 = dma.hbm_to_vmem [thread:$0]  %s562, 16, %s564, [#allocation18]
        $region48: #{tpu_custom_call.1} parent=11 // pred_fallthru
          _
        // Predicated region
        $region49: #{tpu_custom_call.1} parent=11 // pred_check
          %p567 = pneg %p368
        $region50: #{tpu_custom_call.1} parent=11 // pred_check_branch
          %569 = sbr.rel (%p567) target = $region52
        $region51: #{tpu_custom_call.1} parent=11 // pred_region
          %571 = vsyncadd [#allocation18], 0
          %s573 = sshll.u32 %s13, 4
          %s574 = int_to_ptr.hbm [resolvable:$true] %s573
          %s575 = sshll.u32 [#allocation19], 4
          %s576 = int_to_ptr.vmem [resolvable:$true] %s575
          %578 = dma.hbm_to_vmem [thread:$0]  %s574, 16, %s576, [#allocation18]
        $region52: #{tpu_custom_call.1} parent=11 // pred_fallthru
          _
        // Predicated region
        $region53: #{tpu_custom_call.1} parent=11 // pred_check
          %p579 = pneg %p389
        $region54: #{tpu_custom_call.1} parent=11 // pred_check_branch
          %581 = sbr.rel (%p579) target = $region56
        $region55: #{tpu_custom_call.1} parent=11 // pred_region
          %583 = vsyncadd [#allocation21], 0
          %s584 = sshll.u32 %s14, 4
          %s585 = int_to_ptr.hbm [resolvable:$true] %s584
          %s586 = sshll.u32 [#allocation20], 4
          %s587 = int_to_ptr.vmem [resolvable:$true] %s586
          %592 = dma.hbm_to_vmem [thread:$0]  %s585, 512, %s587, [#allocation21], 128, 128, 8
        $region56: #{tpu_custom_call.1} parent=11 // pred_fallthru
          _
        // Predicated region
        $region57: #{tpu_custom_call.1} parent=11 // pred_check
          %p593 = pneg %p410
        $region58: #{tpu_custom_call.1} parent=11 // pred_check_branch
          %595 = sbr.rel (%p593) target = $region60
        $region59: #{tpu_custom_call.1} parent=11 // pred_region
          %597 = vsyncadd [#allocation21], 0
          %s599 = sshll.u32 %s15, 4
          %s600 = int_to_ptr.hbm [resolvable:$true] %s599
          %s601 = sshll.u32 [#allocation22], 4
          %s602 = int_to_ptr.vmem [resolvable:$true] %s601
          %604 = dma.hbm_to_vmem [thread:$0]  %s600, 16, %s602, [#allocation21]
        $region60: #{tpu_custom_call.1} parent=11 // pred_fallthru
          _
        // Predicated region
        $region61: #{tpu_custom_call.1} parent=11 // pred_check
          %p605 = pneg %p431
        $region62: #{tpu_custom_call.1} parent=11 // pred_check_branch
          %607 = sbr.rel (%p605) target = $region64
        $region63: #{tpu_custom_call.1} parent=11 // pred_region
          _
        $region64: #{tpu_custom_call.1} parent=11 // pred_fallthru
          _
        // Predicated region
        $region65: #{tpu_custom_call.1} parent=11 // pred_check
          %p608 = pneg %p452
        $region66: #{tpu_custom_call.1} parent=11 // pred_check_branch
          %610 = sbr.rel (%p608) target = $region68
        $region67: #{tpu_custom_call.1} parent=11 // pred_region
          %612 = vsyncadd [#allocation24], 0
          %s614 = sshll.u32 %s17, 4
          %s615 = int_to_ptr.hbm [resolvable:$true] %s614
          %s616 = sshll.u32 [#allocation23], 4
          %s617 = int_to_ptr.vmem [resolvable:$true] %s616
          %619 = dma.hbm_to_vmem [thread:$0]  %s615, 16, %s617, [#allocation24]
        $region68: #{tpu_custom_call.1} parent=11 // pred_fallthru
          _
      $region12: #{tpu_custom_call.1} parent=5 // pred_fallthru
        _
      %p620 = scmp.lt.s32.totalorder %s38, 2
      // Predicated region
      $region69: #{tpu_custom_call.1} parent=5 // pred_check
        %p621 = pneg %p620
      $region70: #{tpu_custom_call.1} parent=5 // pred_check_branch
        %623 = sbr.rel (%p621) target = $region72
      $region71: #{tpu_custom_call.1} parent=5 // pred_region
        // Predicated region
        $region73: #{tpu_custom_call.1} parent=71 // pred_check
          %p624 = pneg %p72
        $region74: #{tpu_custom_call.1} parent=71 // pred_check_branch
          %626 = sbr.rel (%p624) target = $region76
        $region75: #{tpu_custom_call.1} parent=71 // pred_region
          %s627 = sand.u32 %s62, 1
          %s628 = scalar_lea.sflag [#allocation6], %s627
          %s629 = sand.u32 %s62, 1
          %s630 = smul.addr %s629, 8
          %s631 = scalar_lea.vmem [#allocation5], %s630
          %633 = vsyncadd %s628, 0
          %s634 = sadd.s32 %s46, %s45
          %s635 = smul.addr %s634, 8
          %s636 = scalar_lea.hbm %s0, %s635
          %s638 = sshll.u32 %s636, 4
          %s639 = int_to_ptr.hbm [resolvable:$true] %s638
          %s640 = sshll.u32 %s631, 4
          %s641 = int_to_ptr.vmem [resolvable:$true] %s640
          %643 = dma.hbm_to_vmem [thread:$0]  %s639, 128, %s641, %s628
        $region76: #{tpu_custom_call.1} parent=71 // pred_fallthru
          _
        // Predicated region
        $region77: #{tpu_custom_call.1} parent=71 // pred_check
          %p644 = pneg %p98
        $region78: #{tpu_custom_call.1} parent=71 // pred_check_branch
          %646 = sbr.rel (%p644) target = $region80
        $region79: #{tpu_custom_call.1} parent=71 // pred_region
          %s647 = sand.u32 %s38, 1
          %s648 = scalar_lea.sflag [#allocation9], %s647
          %s649 = sand.u32 %s88, 1
          %s650 = smul.addr %s649, 8
          %s651 = scalar_lea.vmem [#allocation8], %s650
          %653 = vsyncadd %s648, 0
          %s654 = smul.addr %s45, 8
          %s655 = scalar_lea.hbm %s1, %s654
          %s657 = sshll.u32 %s655, 4
          %s658 = int_to_ptr.hbm [resolvable:$true] %s657
          %s659 = sshll.u32 %s651, 4
          %s660 = int_to_ptr.vmem [resolvable:$true] %s659
          %662 = dma.hbm_to_vmem [thread:$0]  %s658, 128, %s660, %s648
        $region80: #{tpu_custom_call.1} parent=71 // pred_fallthru
          _
        // Predicated region
        $region81: #{tpu_custom_call.1} parent=71 // pred_check
          %p663 = pneg %p124
        $region82: #{tpu_custom_call.1} parent=71 // pred_check_branch
          %665 = sbr.rel (%p663) target = $region84
        $region83: #{tpu_custom_call.1} parent=71 // pred_region
          %s666 = sand.u32 %s38, 1
          %s667 = scalar_lea.sflag [#allocation9], %s666
          %s668 = sand.u32 %s114, 1
          %s669 = scalar_lea.vmem [#allocation10], %s668
          %671 = vsyncadd %s667, 0
          %s672 = scalar_lea.hbm %s2, %s45
          %s674 = sshll.u32 %s672, 4
          %s675 = int_to_ptr.hbm [resolvable:$true] %s674
          %s676 = sshll.u32 %s669, 4
          %s677 = int_to_ptr.vmem [resolvable:$true] %s676
          %679 = dma.hbm_to_vmem [thread:$0]  %s675, 16, %s677, %s667
        $region84: #{tpu_custom_call.1} parent=71 // pred_fallthru
          _
        // Predicated region
        $region85: #{tpu_custom_call.1} parent=71 // pred_check
          %p680 = pneg %p152
        $region86: #{tpu_custom_call.1} parent=71 // pred_check_branch
          %682 = sbr.rel (%p680) target = $region88
        $region87: #{tpu_custom_call.1} parent=71 // pred_region
          %p683 = scmp.lt.s32.totalorder %s45, 1
          %s684 = scalar_select %p683, %s45, 1
          %p685 = scmp.lt.s32.totalorder %s46, 0
          %s686 = scalar_select %p685, %s46, 0
          %s687 = sadd.s32 %s686, %s684
          %s688 = smul.addr %s687, 8
          %s689 = scalar_lea.vmem %s3, %s688
        $region88: #{tpu_custom_call.1} parent=71 // pred_fallthru
          _
      $region72: #{tpu_custom_call.1} parent=5 // pred_fallthru
        _
      %p690 = scmp.le.s32.totalorder 1, %s38
      %p691 = scmp.lt.s32.totalorder %s38, 3
      %p692 = pnand %p690, %p691
      %p693 = pneg %p692
      // Predicated region
      $region89: #{tpu_custom_call.1} parent=5 // pred_check
        _
      $region90: #{tpu_custom_call.1} parent=5 // pred_check_branch
        %695 = sbr.rel (%p692) target = $region92
      $region91: #{tpu_custom_call.1} parent=5 // pred_region
        %s696 = ssub.s32 %s38, 1
        %s697 = sand.u32 %s65, 1
        %s698 = scalar_lea.sflag [#allocation6], %s697
        %s699 = sand.u32 %s65, 1
        %s700 = smul.addr %s699, 8
        %s701 = scalar_lea.vmem [#allocation5], %s700
        // Predicated region
        $region93: #{tpu_custom_call.1} parent=91 // pred_check
          %p702 = pneg %p78
        $region94: #{tpu_custom_call.1} parent=91 // pred_check_branch
          %704 = sbr.rel (%p702) target = $region96
        $region95: #{tpu_custom_call.1} parent=91 // pred_region
          %706 = dma.done %s698, 128
        $region96: #{tpu_custom_call.1} parent=91 // pred_fallthru
          _
        %s707 = sand.u32 %s43, 1
        %s708 = scalar_lea.sflag [#allocation9], %s707
        %s709 = sand.u32 %s91, 1
        %s710 = smul.addr %s709, 8
        %s711 = scalar_lea.vmem [#allocation8], %s710
        // Predicated region
        $region97: #{tpu_custom_call.1} parent=91 // pred_check
          %p712 = pneg %p104
        $region98: #{tpu_custom_call.1} parent=91 // pred_check_branch
          %714 = sbr.rel (%p712) target = $region100
        $region99: #{tpu_custom_call.1} parent=91 // pred_region
          %716 = dma.done %s708, 128
        $region100: #{tpu_custom_call.1} parent=91 // pred_fallthru
          _
        %s717 = sand.u32 %s43, 1
        %s718 = scalar_lea.sflag [#allocation9], %s717
        %s719 = sand.u32 %s117, 1
        %s720 = scalar_lea.vmem [#allocation10], %s719
        // Predicated region
        $region101: #{tpu_custom_call.1} parent=91 // pred_check
          %p721 = pneg %p130
        $region102: #{tpu_custom_call.1} parent=91 // pred_check_branch
          %723 = sbr.rel (%p721) target = $region104
        $region103: #{tpu_custom_call.1} parent=91 // pred_region
          %725 = dma.done %s718, 16
        $region104: #{tpu_custom_call.1} parent=91 // pred_fallthru
          _
        // Predicated region
        $region105: #{tpu_custom_call.1} parent=91 // pred_check
          %p726 = pneg %p200
        $region106: #{tpu_custom_call.1} parent=91 // pred_check_branch
          %728 = sbr.rel (%p726) target = $region108
        $region107: #{tpu_custom_call.1} parent=91 // pred_region
          %730 = dma.done [#allocation12], 16
        $region108: #{tpu_custom_call.1} parent=91 // pred_fallthru
          _
        // Predicated region
        $region109: #{tpu_custom_call.1} parent=91 // pred_check
          %p731 = pneg %p242
        $region110: #{tpu_custom_call.1} parent=91 // pred_check_branch
          %733 = sbr.rel (%p731) target = $region112
        $region111: #{tpu_custom_call.1} parent=91 // pred_region
          %735 = dma.done [#allocation12], 16
        $region112: #{tpu_custom_call.1} parent=91 // pred_fallthru
          _
        // Predicated region
        $region113: #{tpu_custom_call.1} parent=91 // pred_check
          %p736 = pneg %p284
        $region114: #{tpu_custom_call.1} parent=91 // pred_check_branch
          %738 = sbr.rel (%p736) target = $region116
        $region115: #{tpu_custom_call.1} parent=91 // pred_region
          %740 = dma.done [#allocation15], 16
        $region116: #{tpu_custom_call.1} parent=91 // pred_fallthru
          _
        // Predicated region
        $region117: #{tpu_custom_call.1} parent=91 // pred_check
          %p741 = pneg %p326
        $region118: #{tpu_custom_call.1} parent=91 // pred_check_branch
          %743 = sbr.rel (%p741) target = $region120
        $region119: #{tpu_custom_call.1} parent=91 // pred_region
          %745 = dma.done [#allocation15], 16
        $region120: #{tpu_custom_call.1} parent=91 // pred_fallthru
          _
        // Predicated region
        $region121: #{tpu_custom_call.1} parent=91 // pred_check
          %p746 = pneg %p347
        $region122: #{tpu_custom_call.1} parent=91 // pred_check_branch
          %748 = sbr.rel (%p746) target = $region124
        $region123: #{tpu_custom_call.1} parent=91 // pred_region
          %750 = dma.done [#allocation18], 16
        $region124: #{tpu_custom_call.1} parent=91 // pred_fallthru
          _
        // Predicated region
        $region125: #{tpu_custom_call.1} parent=91 // pred_check
          %p751 = pneg %p368
        $region126: #{tpu_custom_call.1} parent=91 // pred_check_branch
          %753 = sbr.rel (%p751) target = $region128
        $region127: #{tpu_custom_call.1} parent=91 // pred_region
          %755 = dma.done [#allocation18], 16
        $region128: #{tpu_custom_call.1} parent=91 // pred_fallthru
          _
        // Predicated region
        $region129: #{tpu_custom_call.1} parent=91 // pred_check
          %p756 = pneg %p389
        $region130: #{tpu_custom_call.1} parent=91 // pred_check_branch
          %758 = sbr.rel (%p756) target = $region132
        $region131: #{tpu_custom_call.1} parent=91 // pred_region
          %760 = dma.done [#allocation21], 512
        $region132: #{tpu_custom_call.1} parent=91 // pred_fallthru
          _
        // Predicated region
        $region133: #{tpu_custom_call.1} parent=91 // pred_check
          %p761 = pneg %p410
        $region134: #{tpu_custom_call.1} parent=91 // pred_check_branch
          %763 = sbr.rel (%p761) target = $region136
        $region135: #{tpu_custom_call.1} parent=91 // pred_region
          %765 = dma.done [#allocation21], 16
        $region136: #{tpu_custom_call.1} parent=91 // pred_fallthru
          _
        // Predicated region
        $region137: #{tpu_custom_call.1} parent=91 // pred_check
          %p766 = pneg %p452
        $region138: #{tpu_custom_call.1} parent=91 // pred_check_branch
          %768 = sbr.rel (%p766) target = $region140
        $region139: #{tpu_custom_call.1} parent=91 // pred_region
          %770 = dma.done [#allocation24], 16
        $region140: #{tpu_custom_call.1} parent=91 // pred_fallthru
          _
        %s771 = sand.u32 %s65, 1
        %s772 = scalar_lea.sflag [#allocation6], %s771
        %s773 = sand.u32 %s65, 1
        %s774 = smul.addr %s773, 8
        %s775 = scalar_lea.vmem [#allocation5], %s774
        %p776 = pneg %p78
        %p777 = pneg %p75
        %s778 = sand.u32 %s43, 1
        %s779 = scalar_lea.sflag [#allocation9], %s778
        %s780 = sand.u32 %s91, 1
        %s781 = smul.addr %s780, 8
        %s782 = scalar_lea.vmem [#allocation8], %s781
        %p783 = pneg %p104
        %p784 = pneg %p101
        %s785 = sand.u32 %s43, 1
        %s786 = scalar_lea.sflag [#allocation9], %s785
        %s787 = sand.u32 %s117, 1
        %s788 = scalar_lea.vmem [#allocation10], %s787
        %p789 = pneg %p130
        %p790 = pneg %p127
        %p791 = scmp.lt.s32.totalorder %s47, 1
        %s792 = scalar_select %p791, %s47, 1
        %p793 = scmp.lt.s32.totalorder %s48, 0
        %s794 = scalar_select %p793, %s48, 0
        %s795 = sadd.s32 %s794, %s792
        %s796 = smul.addr %s795, 8
        %s797 = scalar_lea.vmem %s3, %s796
        %p798 = pneg %p158
        %p799 = pneg %p155
        %p800 = pneg %p179
        %p801 = pneg %p176
        %p802 = pneg %p200
        %p803 = pneg %p197
        %p804 = pneg %p221
        %p805 = pneg %p218
        %p806 = pneg %p242
        %p807 = pneg %p239
        %p808 = pneg %p263
        %p809 = pneg %p260
        %p810 = pneg %p284
        %p811 = pneg %p281
        %p812 = pneg %p305
        %p813 = pneg %p302
        %p814 = pneg %p326
        %p815 = pneg %p323
        %p816 = pneg %p347
        %p817 = pneg %p344
        %p818 = pneg %p368
        %p819 = pneg %p365
        %p820 = pneg %p389
        %p821 = pneg %p386
        %p822 = pneg %p410
        %p823 = pneg %p407
        %p824 = pneg %p431
        %p825 = pneg %p428
        %p826 = pneg %p452
        %p827 = pneg %p449
        %p828 = pneg %p480
        %p829 = pneg %p477
        %s830 = sand.u32 %s467, 1
        %s831 = scalar_lea.sflag [#allocation7], %s830
        %s832 = sand.u32 %s467, 1
        %s833 = smul.addr %s832, 8
        %s834 = scalar_lea.vmem [#allocation25], %s833
        %p835 = scmp.lt.s32.totalorder %s47, 1
        %s836 = scalar_select %p835, %s47, 1
        %p837 = scmp.lt.s32.totalorder %s48, 0
        %s838 = scalar_select %p837, %s48, 0
        %s839 = sadd.s32 %s838, %s836
        %s840 = smul.addr %s839, 8
        %s841 = scalar_lea.vmem %s3, %s840
        %v842 = vld [vmem:[%s701] sm:$0xff]
        %v843 = vld [vmem:[%s4] sm:$0x1]
        %v844 = vld [vmem:[#allocation11] sm:$0x1]
        %p845 = scmp.eq.s32.totalorder %s48, 0
        // Predicated region
        $region141: #{tpu_custom_call.1} parent=91 // pred_check
          %p846 = pneg %p845
        $region142: #{tpu_custom_call.1} parent=91 // pred_check_branch
          %848 = sbr.rel (%p846) target = $region144
        $region143: #{tpu_custom_call.1} parent=91 // pred_region
          %v849 = vld [vmem:[%s711] sm:$0xff]
          %vm850 = vcmask 261120
          %v851 = vsel %vm850, %v849, 0.0
          %852 = vadd.xlane.f32.xlu0 %v851
          %v853 = vpop.xlane.xlu0 %852
          %v854 = vrcp.pop 32.0
          %v855 = vmul.f32 32.0, %v854
          %v856 = vsub.f32 1.0, %v855
          %v857 = vmul.f32 %v854, %v856
          %v858 = vadd.f32 %v854, %v857
          %vm859 = vweird.f32 %v854
          %v860 = vsel %vm859, %v854, %v858
          %v861 = vmul.f32 %v853, %v860
          %v862 = vsub.f32 %v849, %v861
          %v863 = vmul.f32 %v862, %v862
          %v864 = vsel %vm850, %v863, 0.0
          %865 = vadd.xlane.f32.xlu0 %v864
          %v866 = vpop.xlane.xlu0 %865
          %v867 = vmul.f32 %v866, %v860
          %v868 = vadd.f32 %v867, 1e-05
          %v869 = vrsqrt.pop %v868
          %v870 = vmul.f32 %v869, %v868
          %v871 = vmul.f32 %v870, %v869
          %v872 = vmul.f32 0.5, %v871
          %v873 = vsub.f32 1.5, %v872
          %v874 = vmul.f32 %v869, %v873
          %vm875 = vweird.f32 %v868
          %vm876 = vweird.f32 %v869
          %vm877 = vmor %vm875, %vm876
          %v878 = vsel %vm877, %v869, %v874
          %v879 = vmul.f32 %v862, %v878
          %v881 = vperm.slane %v843, 0
          %v883 = vmul.f32 %v879, %v881
          %v885 = vperm.slane %v844, 0
          %v887 = vadd.f32 %v883, %v885
          %v888 = vld [vmem:[%s8] sm:$0xff]
          %v889 = vld [vmem:[%s8 + $0x8] sm:$0xff]
          %v890 = vld [vmem:[%s8 + $0x10] sm:$0xff]
          %v891 = vld [vmem:[%s8 + $0x18] sm:$0xff]
          %v892 = vld [vmem:[#allocation14] sm:$0x1]
          %v894 = vperm.slane %v892, 0
          %v897 = vsel %vm850, %v887, 0
          %899 = vmatpush.msra.mxu0 0.0
          %900 = vmatpush.msra.mxu0 0.0
          %901 = vmatpush.msra.mxu0 0.0
          %902 = vmatpush.msra.mxu0 0.0
          %903 = vmatpush.msra.mxu0 0.0
          %904 = vmatpush.msra.mxu0 0.0
          %905 = vmatpush.msra.mxu0 0.0
          %906 = vmatpush.msra.mxu0 0.0
          %907 = vmatpush.msra.mxu0 0.0
          %908 = vmatpush.msra.mxu0 0.0
          %909 = vmatpush.msra.mxu0 0.0
          %910 = vmatpush.msra.mxu0 0.0
          %911 = vmatpush.msra.mxu0 %v891
          %912 = vmatpush.msra.mxu0 %v890
          %913 = vmatpush.msra.mxu0 %v889
          %914 = vmatpush.msra.mxu0 %v888
          %915 = vmatmul.f32.gmra.mxu0 %v897
          %v916 = vpop.f32.mrf.mxu0
          %v917 = vadd.f32 %v894, %v916
          %918 = vdwg.mxu0
          %919 = vxpose.xlu0.b32.start [1/16] %v917, 128
          %920 = vxpose.xlu0.b32.cont [2/16] 0.0, 128
          %921 = vxpose.xlu0.b32.cont [3/16] 0.0, 128
          %922 = vxpose.xlu0.b32.cont [4/16] 0.0, 128
          %923 = vxpose.xlu0.b32.cont [5/16] 0.0, 128
          %924 = vxpose.xlu0.b32.cont [6/16] 0.0, 128
          %925 = vxpose.xlu0.b32.cont [7/16] 0.0, 128
          %926 = vxpose.xlu0.b32.cont [8/16] 0.0, 128
          %927 = vxpose.xlu0.b32.cont [9/16] 0.0, 128
          %928 = vxpose.xlu0.b32.cont [10/16] 0.0, 128
          %929 = vxpose.xlu0.b32.cont [11/16] 0.0, 128
          %930 = vxpose.xlu0.b32.cont [12/16] 0.0, 128
          %931 = vxpose.xlu0.b32.cont [13/16] 0.0, 128
          %932 = vxpose.xlu0.b32.cont [14/16] 0.0, 128
          %933 = vxpose.xlu0.b32.cont [15/16] 0.0, 128
          %934 = vxpose.xlu0.b32.end [16/16] 0.0, 128
          %v935 = vpop.trf.xlu0
          %v936 = vpop.trf.xlu0
          %v937 = vpop.trf.xlu0
          %v938 = vpop.trf.xlu0
          %v939 = vpop.trf.xlu0
          %v940 = vpop.trf.xlu0
          %v941 = vpop.trf.xlu0
          %v942 = vpop.trf.xlu0
          %v943 = vpop.trf.xlu0
          %v944 = vpop.trf.xlu0
          %v945 = vpop.trf.xlu0
          %v946 = vpop.trf.xlu0
          %v947 = vpop.trf.xlu0
          %v948 = vpop.trf.xlu0
          %v949 = vpop.trf.xlu0
          %v950 = vpop.trf.xlu0
          %vm951 = vcmask 64512
          %952 = vst.msk [vmem:[#allocation2] sm:$0xff] %vm951, %v935
          %954 = vrot.lane.b32.xlu0 %v917, 96
          %v955 = vpop.permute.xlu0 %954
          %957 = vst.msk [vmem:[#allocation3] sm:$0xff] %vm951, %v955
          %958 = vrot.lane.b32.xlu0 %v917, 120
          %v959 = vpop.permute.xlu0 %958
          %961 = vxpose.xlu0.b32.start [1/16] %v959, 128
          %962 = vxpose.xlu0.b32.cont [2/16] 0.0, 128
          %963 = vxpose.xlu0.b32.cont [3/16] 0.0, 128
          %964 = vxpose.xlu0.b32.cont [4/16] 0.0, 128
          %965 = vxpose.xlu0.b32.cont [5/16] 0.0, 128
          %966 = vxpose.xlu0.b32.cont [6/16] 0.0, 128
          %967 = vxpose.xlu0.b32.cont [7/16] 0.0, 128
          %968 = vxpose.xlu0.b32.cont [8/16] 0.0, 128
          %969 = vxpose.xlu0.b32.cont [9/16] 0.0, 128
          %970 = vxpose.xlu0.b32.cont [10/16] 0.0, 128
          %971 = vxpose.xlu0.b32.cont [11/16] 0.0, 128
          %972 = vxpose.xlu0.b32.cont [12/16] 0.0, 128
          %973 = vxpose.xlu0.b32.cont [13/16] 0.0, 128
          %974 = vxpose.xlu0.b32.cont [14/16] 0.0, 128
          %975 = vxpose.xlu0.b32.cont [15/16] 0.0, 128
          %976 = vxpose.xlu0.b32.end [16/16] 0.0, 128
          %v977 = vpop.trf.xlu0
          %v978 = vpop.trf.xlu0
          %v979 = vpop.trf.xlu0
          %v980 = vpop.trf.xlu0
          %v981 = vpop.trf.xlu0
          %v982 = vpop.trf.xlu0
          %v983 = vpop.trf.xlu0
          %v984 = vpop.trf.xlu0
          %v985 = vpop.trf.xlu0
          %v986 = vpop.trf.xlu0
          %v987 = vpop.trf.xlu0
          %v988 = vpop.trf.xlu0
          %v989 = vpop.trf.xlu0
          %v990 = vpop.trf.xlu0
          %v991 = vpop.trf.xlu0
          %v992 = vpop.trf.xlu0
          %s993 = scalar_lea.vmem [#allocation2], 8
          %994 = vst.msk [vmem:[%s993] sm:$0xff] %vm951, %v977
          %995 = vrot.lane.b32.xlu0 %v917, 88
          %v996 = vpop.permute.xlu0 %995
          %s998 = scalar_lea.vmem [#allocation3], 8
          %999 = vst.msk [vmem:[%s998] sm:$0xff] %vm951, %v996
          %1000 = vrot.lane.b32.xlu0 %v917, 112
          %v1001 = vpop.permute.xlu0 %1000
          %1003 = vxpose.xlu0.b32.start [1/16] %v1001, 128
          %1004 = vxpose.xlu0.b32.cont [2/16] 0.0, 128
          %1005 = vxpose.xlu0.b32.cont [3/16] 0.0, 128
          %1006 = vxpose.xlu0.b32.cont [4/16] 0.0, 128
          %1007 = vxpose.xlu0.b32.cont [5/16] 0.0, 128
          %1008 = vxpose.xlu0.b32.cont [6/16] 0.0, 128
          %1009 = vxpose.xlu0.b32.cont [7/16] 0.0, 128
          %1010 = vxpose.xlu0.b32.cont [8/16] 0.0, 128
          %1011 = vxpose.xlu0.b32.cont [9/16] 0.0, 128
          %1012 = vxpose.xlu0.b32.cont [10/16] 0.0, 128
          %1013 = vxpose.xlu0.b32.cont [11/16] 0.0, 128
          %1014 = vxpose.xlu0.b32.cont [12/16] 0.0, 128
          %1015 = vxpose.xlu0.b32.cont [13/16] 0.0, 128
          %1016 = vxpose.xlu0.b32.cont [14/16] 0.0, 128
          %1017 = vxpose.xlu0.b32.cont [15/16] 0.0, 128
          %1018 = vxpose.xlu0.b32.end [16/16] 0.0, 128
          %v1019 = vpop.trf.xlu0
          %v1020 = vpop.trf.xlu0
          %v1021 = vpop.trf.xlu0
          %v1022 = vpop.trf.xlu0
          %v1023 = vpop.trf.xlu0
          %v1024 = vpop.trf.xlu0
          %v1025 = vpop.trf.xlu0
          %v1026 = vpop.trf.xlu0
          %v1027 = vpop.trf.xlu0
          %v1028 = vpop.trf.xlu0
          %v1029 = vpop.trf.xlu0
          %v1030 = vpop.trf.xlu0
          %v1031 = vpop.trf.xlu0
          %v1032 = vpop.trf.xlu0
          %v1033 = vpop.trf.xlu0
          %v1034 = vpop.trf.xlu0
          %s1035 = scalar_lea.vmem [#allocation2], 16
          %1036 = vst.msk [vmem:[%s1035] sm:$0xff] %vm951, %v1019
          %1037 = vrot.lane.b32.xlu0 %v917, 80
          %v1038 = vpop.permute.xlu0 %1037
          %s1040 = scalar_lea.vmem [#allocation3], 16
          %1041 = vst.msk [vmem:[%s1040] sm:$0xff] %vm951, %v1038
          %1042 = vrot.lane.b32.xlu0 %v917, 104
          %v1043 = vpop.permute.xlu0 %1042
          %1045 = vxpose.xlu0.b32.start [1/16] %v1043, 128
          %1046 = vxpose.xlu0.b32.cont [2/16] 0.0, 128
          %1047 = vxpose.xlu0.b32.cont [3/16] 0.0, 128
          %1048 = vxpose.xlu0.b32.cont [4/16] 0.0, 128
          %1049 = vxpose.xlu0.b32.cont [5/16] 0.0, 128
          %1050 = vxpose.xlu0.b32.cont [6/16] 0.0, 128
          %1051 = vxpose.xlu0.b32.cont [7/16] 0.0, 128
          %1052 = vxpose.xlu0.b32.cont [8/16] 0.0, 128
          %1053 = vxpose.xlu0.b32.cont [9/16] 0.0, 128
          %1054 = vxpose.xlu0.b32.cont [10/16] 0.0, 128
          %1055 = vxpose.xlu0.b32.cont [11/16] 0.0, 128
          %1056 = vxpose.xlu0.b32.cont [12/16] 0.0, 128
          %1057 = vxpose.xlu0.b32.cont [13/16] 0.0, 128
          %1058 = vxpose.xlu0.b32.cont [14/16] 0.0, 128
          %1059 = vxpose.xlu0.b32.cont [15/16] 0.0, 128
          %1060 = vxpose.xlu0.b32.end [16/16] 0.0, 128
          %v1061 = vpop.trf.xlu0
          %v1062 = vpop.trf.xlu0
          %v1063 = vpop.trf.xlu0
          %v1064 = vpop.trf.xlu0
          %v1065 = vpop.trf.xlu0
          %v1066 = vpop.trf.xlu0
          %v1067 = vpop.trf.xlu0
          %v1068 = vpop.trf.xlu0
          %v1069 = vpop.trf.xlu0
          %v1070 = vpop.trf.xlu0
          %v1071 = vpop.trf.xlu0
          %v1072 = vpop.trf.xlu0
          %v1073 = vpop.trf.xlu0
          %v1074 = vpop.trf.xlu0
          %v1075 = vpop.trf.xlu0
          %v1076 = vpop.trf.xlu0
          %s1077 = scalar_lea.vmem [#allocation2], 24
          %1078 = vst.msk [vmem:[%s1077] sm:$0xff] %vm951, %v1061
          %1079 = vrot.lane.b32.xlu0 %v917, 72
          %v1080 = vpop.permute.xlu0 %1079
          %s1082 = scalar_lea.vmem [#allocation3], 24
          %1083 = vst.msk [vmem:[%s1082] sm:$0xff] %vm951, %v1080
        $region144: #{tpu_custom_call.1} parent=91 // pred_fallthru
          _
        %vm1084 = vcmask 261120
        %v1085 = vsel %vm1084, %v842, 0.0
        %1086 = vadd.xlane.f32.xlu0 %v1085
        %v1087 = vpop.xlane.xlu0 %1086
        %v1088 = vrcp.pop 32.0
        %v1089 = vmul.f32 32.0, %v1088
        %v1090 = vsub.f32 1.0, %v1089
        %v1091 = vmul.f32 %v1088, %v1090
        %v1092 = vadd.f32 %v1088, %v1091
        %vm1093 = vweird.f32 %v1088
        %v1094 = vsel %vm1093, %v1088, %v1092
        %v1095 = vmul.f32 %v1087, %v1094
        %v1096 = vsub.f32 %v842, %v1095
        %v1097 = vmul.f32 %v1096, %v1096
        %v1098 = vsel %vm1084, %v1097, 0.0
        %1099 = vadd.xlane.f32.xlu0 %v1098
        %v1100 = vpop.xlane.xlu0 %1099
        %v1101 = vmul.f32 %v1100, %v1094
        %v1102 = vadd.f32 %v1101, 1e-05
        %v1103 = vrsqrt.pop %v1102
        %v1104 = vmul.f32 %v1103, %v1102
        %v1105 = vmul.f32 %v1104, %v1103
        %v1106 = vmul.f32 0.5, %v1105
        %v1107 = vsub.f32 1.5, %v1106
        %v1108 = vmul.f32 %v1103, %v1107
        %vm1109 = vweird.f32 %v1102
        %vm1110 = vweird.f32 %v1103
        %vm1111 = vmor %vm1109, %vm1110
        %v1112 = vsel %vm1111, %v1103, %v1108
        %v1113 = vmul.f32 %v1096, %v1112
        %v1115 = vperm.slane %v843, 0
        %v1117 = vmul.f32 %v1113, %v1115
        %v1119 = vperm.slane %v844, 0
        %v1121 = vadd.f32 %v1117, %v1119
        %v1122 = vld [vmem:[%s6] sm:$0xff]
        %v1123 = vld [vmem:[%s6 + $0x8] sm:$0xff]
        %v1124 = vld [vmem:[%s6 + $0x10] sm:$0xff]
        %v1125 = vld [vmem:[%s6 + $0x18] sm:$0xff]
        %v1126 = vld [vmem:[#allocation13] sm:$0x1]
        %v1128 = vperm.slane %v1126, 0
        %v1131 = vsel %vm1084, %v1121, 0
        %1133 = vmatpush.msra.mxu0 0.0
        %1134 = vmatpush.msra.mxu0 0.0
        %1135 = vmatpush.msra.mxu0 0.0
        %1136 = vmatpush.msra.mxu0 0.0
        %1137 = vmatpush.msra.mxu0 0.0
        %1138 = vmatpush.msra.mxu0 0.0
        %1139 = vmatpush.msra.mxu0 0.0
        %1140 = vmatpush.msra.mxu0 0.0
        %1141 = vmatpush.msra.mxu0 0.0
        %1142 = vmatpush.msra.mxu0 0.0
        %1143 = vmatpush.msra.mxu0 0.0
        %1144 = vmatpush.msra.mxu0 0.0
        %1145 = vmatpush.msra.mxu0 %v1125
        %1146 = vmatpush.msra.mxu0 %v1124
        %1147 = vmatpush.msra.mxu0 %v1123
        %1148 = vmatpush.msra.mxu0 %v1122
        %1149 = vmatmul.f32.gmra.mxu0 %v1131
        %v1150 = vpop.f32.mrf.mxu0
        %v1151 = vadd.f32 %v1128, %v1150
        %1152 = vdwg.mxu0
        %v1153 = vld [vmem:[%s720] sm:$0x1]
        %v1154 = vld [vmem:[#allocation2] sm:$0xff]
        %v1156 = vperm.slane %v1153, 0
        %vm1158 = vcmask 64512
        %v1160 = vsel %vm1158, %v1151, 0
        %1162 = vmatpush.msra.mxu0 0.0
        %1163 = vmatpush.msra.mxu0 0.0
        %1164 = vmatpush.msra.mxu0 0.0
        %1165 = vmatpush.msra.mxu0 0.0
        %1166 = vmatpush.msra.mxu0 0.0
        %1167 = vmatpush.msra.mxu0 0.0
        %1168 = vmatpush.msra.mxu0 0.0
        %1169 = vmatpush.msra.mxu0 0.0
        %1170 = vmatpush.msra.mxu0 0.0
        %1171 = vmatpush.msra.mxu0 0.0
        %1172 = vmatpush.msra.mxu0 0.0
        %1173 = vmatpush.msra.mxu0 0.0
        %1174 = vmatpush.msra.mxu0 0.0
        %1175 = vmatpush.msra.mxu0 0.0
        %1176 = vmatpush.msra.mxu0 0.0
        %1177 = vmatpush.msra.mxu0 %v1154
        %1178 = vmatmul.f32.gmra.mxu0 %v1160
        %v1179 = vpop.f32.mrf.mxu0
        %v1180 = vadd.f32 %v1156, %v1179
        %1181 = vdwg.mxu0
        %v1182 = vsel %vm1158, %v1180, -inf
        %1183 = vmax.xlane.f32.xlu0 %v1182
        %v1184 = vpop.xlane.xlu0 %1183
        %v1185 = vsub.f32 %v1180, %v1184
        %v1186 = vmul.f32 %v1185, 1.442695
        %v1187 = vpow.pop %v1186
        %v1188 = vsel %vm1158, %v1187, 0.0
        %1189 = vadd.xlane.f32.xlu0 %v1188
        %v1190 = vpop.xlane.xlu0 %1189
        %v1191 = vld [vmem:[#allocation3] sm:$0xff]
        %v1193 = vsel %vm1158, %v1187, 0
        %1195 = vmatpush.msra.mxu0 0.0
        %1196 = vmatpush.msra.mxu0 0.0
        %1197 = vmatpush.msra.mxu0 0.0
        %1198 = vmatpush.msra.mxu0 0.0
        %1199 = vmatpush.msra.mxu0 0.0
        %1200 = vmatpush.msra.mxu0 0.0
        %1201 = vmatpush.msra.mxu0 0.0
        %1202 = vmatpush.msra.mxu0 0.0
        %1203 = vmatpush.msra.mxu0 0.0
        %1204 = vmatpush.msra.mxu0 0.0
        %1205 = vmatpush.msra.mxu0 0.0
        %1206 = vmatpush.msra.mxu0 0.0
        %1207 = vmatpush.msra.mxu0 0.0
        %1208 = vmatpush.msra.mxu0 0.0
        %1209 = vmatpush.msra.mxu0 0.0
        %1210 = vmatpush.msra.mxu0 %v1191
        %1211 = vmatmul.f32.gmra.mxu0 %v1193
        %v1212 = vpop.f32.mrf.mxu0
        %v1213 = vadd.f32 0.0, %v1212
        %1214 = vdwg.mxu0
        %v1215 = vrcp.pop %v1190
        %v1216 = vmul.f32 %v1190, %v1215
        %v1217 = vsub.f32 1.0, %v1216
        %v1218 = vmul.f32 %v1215, %v1217
        %v1219 = vadd.f32 %v1215, %v1218
        %vm1220 = vweird.f32 %v1190
        %vm1221 = vweird.f32 %v1215
        %vm1222 = vmor %vm1220, %vm1221
        %v1223 = vsel %vm1222, %v1215, %v1219
        %v1224 = vand.u32 2147483647, %v1190
        %vm1225 = vcmp.eq.f32.partialorder %v1224, 8.507059e+37
        %v1226 = vand.u32 %v1190, 2147483648
        %v1227 = vor.u32 1.1754944e-38, %v1226
        %v1228 = vsel %vm1225, %v1227, %v1223
        %v1229 = vmul.f32 %v1213, %v1228
        %1230 = vst.msk [vmem:[#allocation4] sm:$0xff] %vm1158, %v1229
        %s1231 = scalar_lea.vmem [#allocation2], 8
        %v1232 = vld [vmem:[%s1231] sm:$0xff]
        %1233 = vrot.lane.b32.xlu0 %v1151, 120
        %v1234 = vpop.permute.xlu0 %1233
        %v1235 = vsel %vm1158, %v1234, 0
        %1237 = vmatpush.msra.mxu0 0.0
        %1238 = vmatpush.msra.mxu0 0.0
        %1239 = vmatpush.msra.mxu0 0.0
        %1240 = vmatpush.msra.mxu0 0.0
        %1241 = vmatpush.msra.mxu0 0.0
        %1242 = vmatpush.msra.mxu0 0.0
        %1243 = vmatpush.msra.mxu0 0.0
        %1244 = vmatpush.msra.mxu0 0.0
        %1245 = vmatpush.msra.mxu0 0.0
        %1246 = vmatpush.msra.mxu0 0.0
        %1247 = vmatpush.msra.mxu0 0.0
        %1248 = vmatpush.msra.mxu0 0.0
        %1249 = vmatpush.msra.mxu0 0.0
        %1250 = vmatpush.msra.mxu0 0.0
        %1251 = vmatpush.msra.mxu0 0.0
        %1252 = vmatpush.msra.mxu0 %v1232
        %1253 = vmatmul.f32.gmra.mxu0 %v1235
        %v1254 = vpop.f32.mrf.mxu0
        %v1255 = vadd.f32 %v1156, %v1254
        %1256 = vdwg.mxu0
        %v1257 = vsel %vm1158, %v1255, -inf
        %1258 = vmax.xlane.f32.xlu0 %v1257
        %v1259 = vpop.xlane.xlu0 %1258
        %v1260 = vsub.f32 %v1255, %v1259
        %v1261 = vmul.f32 %v1260, 1.442695
        %v1262 = vpow.pop %v1261
        %v1263 = vsel %vm1158, %v1262, 0.0
        %1264 = vadd.xlane.f32.xlu0 %v1263
        %v1265 = vpop.xlane.xlu0 %1264
        %s1266 = scalar_lea.vmem [#allocation3], 8
        %v1267 = vld [vmem:[%s1266] sm:$0xff]
        %v1269 = vsel %vm1158, %v1262, 0
        %1271 = vmatpush.msra.mxu0 0.0
        %1272 = vmatpush.msra.mxu0 0.0
        %1273 = vmatpush.msra.mxu0 0.0
        %1274 = vmatpush.msra.mxu0 0.0
        %1275 = vmatpush.msra.mxu0 0.0
        %1276 = vmatpush.msra.mxu0 0.0
        %1277 = vmatpush.msra.mxu0 0.0
        %1278 = vmatpush.msra.mxu0 0.0
        %1279 = vmatpush.msra.mxu0 0.0
        %1280 = vmatpush.msra.mxu0 0.0
        %1281 = vmatpush.msra.mxu0 0.0
        %1282 = vmatpush.msra.mxu0 0.0
        %1283 = vmatpush.msra.mxu0 0.0
        %1284 = vmatpush.msra.mxu0 0.0
        %1285 = vmatpush.msra.mxu0 0.0
        %1286 = vmatpush.msra.mxu0 %v1267
        %1287 = vmatmul.f32.gmra.mxu0 %v1269
        %v1288 = vpop.f32.mrf.mxu0
        %v1289 = vadd.f32 0.0, %v1288
        %1290 = vdwg.mxu0
        %v1291 = vrcp.pop %v1265
        %v1292 = vmul.f32 %v1265, %v1291
        %v1293 = vsub.f32 1.0, %v1292
        %v1294 = vmul.f32 %v1291, %v1293
        %v1295 = vadd.f32 %v1291, %v1294
        %vm1296 = vweird.f32 %v1265
        %vm1297 = vweird.f32 %v1291
        %vm1298 = vmor %vm1296, %vm1297
        %v1299 = vsel %vm1298, %v1291, %v1295
        %v1300 = vand.u32 2147483647, %v1265
        %vm1301 = vcmp.eq.f32.partialorder %v1300, 8.507059e+37
        %v1302 = vand.u32 %v1265, 2147483648
        %v1303 = vor.u32 1.1754944e-38, %v1302
        %v1304 = vsel %vm1301, %v1303, %v1299
        %v1305 = vmul.f32 %v1289, %v1304
        %1307 = vrot.lane.b32.xlu0 %v1305, 8
        %v1308 = vpop.permute.xlu0 %1307
        %vm1310 = vcmask 130112
        %1311 = vst.msk [vmem:[#allocation4] sm:$0xff] %vm1310, %v1308
        %s1312 = scalar_lea.vmem [#allocation2], 16
        %v1313 = vld [vmem:[%s1312] sm:$0xff]
        %1314 = vrot.lane.b32.xlu0 %v1151, 112
        %v1315 = vpop.permute.xlu0 %1314
        %v1316 = vsel %vm1158, %v1315, 0
        %1318 = vmatpush.msra.mxu0 0.0
        %1319 = vmatpush.msra.mxu0 0.0
        %1320 = vmatpush.msra.mxu0 0.0
        %1321 = vmatpush.msra.mxu0 0.0
        %1322 = vmatpush.msra.mxu0 0.0
        %1323 = vmatpush.msra.mxu0 0.0
        %1324 = vmatpush.msra.mxu0 0.0
        %1325 = vmatpush.msra.mxu0 0.0
        %1326 = vmatpush.msra.mxu0 0.0
        %1327 = vmatpush.msra.mxu0 0.0
        %1328 = vmatpush.msra.mxu0 0.0
        %1329 = vmatpush.msra.mxu0 0.0
        %1330 = vmatpush.msra.mxu0 0.0
        %1331 = vmatpush.msra.mxu0 0.0
        %1332 = vmatpush.msra.mxu0 0.0
        %1333 = vmatpush.msra.mxu0 %v1313
        %1334 = vmatmul.f32.gmra.mxu0 %v1316
        %v1335 = vpop.f32.mrf.mxu0
        %v1336 = vadd.f32 %v1156, %v1335
        %1337 = vdwg.mxu0
        %v1338 = vsel %vm1158, %v1336, -inf
        %1339 = vmax.xlane.f32.xlu0 %v1338
        %v1340 = vpop.xlane.xlu0 %1339
        %v1341 = vsub.f32 %v1336, %v1340
        %v1342 = vmul.f32 %v1341, 1.442695
        %v1343 = vpow.pop %v1342
        %v1344 = vsel %vm1158, %v1343, 0.0
        %1345 = vadd.xlane.f32.xlu0 %v1344
        %v1346 = vpop.xlane.xlu0 %1345
        %s1347 = scalar_lea.vmem [#allocation3], 16
        %v1348 = vld [vmem:[%s1347] sm:$0xff]
        %v1350 = vsel %vm1158, %v1343, 0
        %1352 = vmatpush.msra.mxu0 0.0
        %1353 = vmatpush.msra.mxu0 0.0
        %1354 = vmatpush.msra.mxu0 0.0
        %1355 = vmatpush.msra.mxu0 0.0
        %1356 = vmatpush.msra.mxu0 0.0
        %1357 = vmatpush.msra.mxu0 0.0
        %1358 = vmatpush.msra.mxu0 0.0
        %1359 = vmatpush.msra.mxu0 0.0
        %1360 = vmatpush.msra.mxu0 0.0
        %1361 = vmatpush.msra.mxu0 0.0
        %1362 = vmatpush.msra.mxu0 0.0
        %1363 = vmatpush.msra.mxu0 0.0
        %1364 = vmatpush.msra.mxu0 0.0
        %1365 = vmatpush.msra.mxu0 0.0
        %1366 = vmatpush.msra.mxu0 0.0
        %1367 = vmatpush.msra.mxu0 %v1348
        %1368 = vmatmul.f32.gmra.mxu0 %v1350
        %v1369 = vpop.f32.mrf.mxu0
        %v1370 = vadd.f32 0.0, %v1369
        %1371 = vdwg.mxu0
        %v1372 = vrcp.pop %v1346
        %v1373 = vmul.f32 %v1346, %v1372
        %v1374 = vsub.f32 1.0, %v1373
        %v1375 = vmul.f32 %v1372, %v1374
        %v1376 = vadd.f32 %v1372, %v1375
        %vm1377 = vweird.f32 %v1346
        %vm1378 = vweird.f32 %v1372
        %vm1379 = vmor %vm1377, %vm1378
        %v1380 = vsel %vm1379, %v1372, %v1376
        %v1381 = vand.u32 2147483647, %v1346
        %vm1382 = vcmp.eq.f32.partialorder %v1381, 8.507059e+37
        %v1383 = vand.u32 %v1346, 2147483648
        %v1384 = vor.u32 1.1754944e-38, %v1383
        %v1385 = vsel %vm1382, %v1384, %v1380
        %v1386 = vmul.f32 %v1370, %v1385
        %1388 = vrot.lane.b32.xlu0 %v1386, 16
        %v1389 = vpop.permute.xlu0 %1388
        %vm1391 = vcmask 195712
        %1392 = vst.msk [vmem:[#allocation4] sm:$0xff] %vm1391, %v1389
        %s1393 = scalar_lea.vmem [#allocation2], 24
        %v1394 = vld [vmem:[%s1393] sm:$0xff]
        %1395 = vrot.lane.b32.xlu0 %v1151, 104
        %v1396 = vpop.permute.xlu0 %1395
        %v1397 = vsel %vm1158, %v1396, 0
        %1399 = vmatpush.msra.mxu0 0.0
        %1400 = vmatpush.msra.mxu0 0.0
        %1401 = vmatpush.msra.mxu0 0.0
        %1402 = vmatpush.msra.mxu0 0.0
        %1403 = vmatpush.msra.mxu0 0.0
        %1404 = vmatpush.msra.mxu0 0.0
        %1405 = vmatpush.msra.mxu0 0.0
        %1406 = vmatpush.msra.mxu0 0.0
        %1407 = vmatpush.msra.mxu0 0.0
        %1408 = vmatpush.msra.mxu0 0.0
        %1409 = vmatpush.msra.mxu0 0.0
        %1410 = vmatpush.msra.mxu0 0.0
        %1411 = vmatpush.msra.mxu0 0.0
        %1412 = vmatpush.msra.mxu0 0.0
        %1413 = vmatpush.msra.mxu0 0.0
        %1414 = vmatpush.msra.mxu0 %v1394
        %1415 = vmatmul.f32.gmra.mxu0 %v1397
        %v1416 = vpop.f32.mrf.mxu0
        %v1417 = vadd.f32 %v1156, %v1416
        %1418 = vdwg.mxu0
        %v1419 = vsel %vm1158, %v1417, -inf
        %1420 = vmax.xlane.f32.xlu0 %v1419
        %v1421 = vpop.xlane.xlu0 %1420
        %v1422 = vsub.f32 %v1417, %v1421
        %v1423 = vmul.f32 %v1422, 1.442695
        %v1424 = vpow.pop %v1423
        %v1425 = vsel %vm1158, %v1424, 0.0
        %1426 = vadd.xlane.f32.xlu0 %v1425
        %v1427 = vpop.xlane.xlu0 %1426
        %s1428 = scalar_lea.vmem [#allocation3], 24
        %v1429 = vld [vmem:[%s1428] sm:$0xff]
        %v1431 = vsel %vm1158, %v1424, 0
        %1433 = vmatpush.msra.mxu0 0.0
        %1434 = vmatpush.msra.mxu0 0.0
        %1435 = vmatpush.msra.mxu0 0.0
        %1436 = vmatpush.msra.mxu0 0.0
        %1437 = vmatpush.msra.mxu0 0.0
        %1438 = vmatpush.msra.mxu0 0.0
        %1439 = vmatpush.msra.mxu0 0.0
        %1440 = vmatpush.msra.mxu0 0.0
        %1441 = vmatpush.msra.mxu0 0.0
        %1442 = vmatpush.msra.mxu0 0.0
        %1443 = vmatpush.msra.mxu0 0.0
        %1444 = vmatpush.msra.mxu0 0.0
        %1445 = vmatpush.msra.mxu0 0.0
        %1446 = vmatpush.msra.mxu0 0.0
        %1447 = vmatpush.msra.mxu0 0.0
        %1448 = vmatpush.msra.mxu0 %v1429
        %1449 = vmatmul.f32.gmra.mxu0 %v1431
        %v1450 = vpop.f32.mrf.mxu0
        %v1451 = vadd.f32 0.0, %v1450
        %1452 = vdwg.mxu0
        %v1453 = vrcp.pop %v1427
        %v1454 = vmul.f32 %v1427, %v1453
        %v1455 = vsub.f32 1.0, %v1454
        %v1456 = vmul.f32 %v1453, %v1455
        %v1457 = vadd.f32 %v1453, %v1456
        %vm1458 = vweird.f32 %v1427
        %vm1459 = vweird.f32 %v1453
        %vm1460 = vmor %vm1458, %vm1459
        %v1461 = vsel %vm1460, %v1453, %v1457
        %v1462 = vand.u32 2147483647, %v1427
        %vm1463 = vcmp.eq.f32.partialorder %v1462, 8.507059e+37
        %v1464 = vand.u32 %v1427, 2147483648
        %v1465 = vor.u32 1.1754944e-38, %v1464
        %v1466 = vsel %vm1463, %v1465, %v1461
        %v1467 = vmul.f32 %v1451, %v1466
        %1469 = vrot.lane.b32.xlu0 %v1467, 24
        %v1470 = vpop.permute.xlu0 %1469
        %vm1472 = vcmask 261312
        %1473 = vst.msk [vmem:[#allocation4] sm:$0xff] %vm1472, %v1470
        %v1474 = vld [vmem:[#allocation4] sm:$0xff]
        %v1475 = vld [vmem:[%s10] sm:$0xff]
        %v1476 = vld [vmem:[%s10 + $0x8] sm:$0xff]
        %v1477 = vld [vmem:[%s10 + $0x10] sm:$0xff]
        %v1478 = vld [vmem:[%s10 + $0x18] sm:$0xff]
        %v1479 = vld [vmem:[#allocation16] sm:$0x1]
        %v1481 = vperm.slane %v1479, 0
        %v1484 = vsel %vm1084, %v1474, 0
        %1486 = vmatpush.msra.mxu0 0.0
        %1487 = vmatpush.msra.mxu0 0.0
        %1488 = vmatpush.msra.mxu0 0.0
        %1489 = vmatpush.msra.mxu0 0.0
        %1490 = vmatpush.msra.mxu0 0.0
        %1491 = vmatpush.msra.mxu0 0.0
        %1492 = vmatpush.msra.mxu0 0.0
        %1493 = vmatpush.msra.mxu0 0.0
        %1494 = vmatpush.msra.mxu0 0.0
        %1495 = vmatpush.msra.mxu0 0.0
        %1496 = vmatpush.msra.mxu0 0.0
        %1497 = vmatpush.msra.mxu0 0.0
        %1498 = vmatpush.msra.mxu0 %v1478
        %1499 = vmatpush.msra.mxu0 %v1477
        %1500 = vmatpush.msra.mxu0 %v1476
        %1501 = vmatpush.msra.mxu0 %v1475
        %1502 = vmatmul.f32.gmra.mxu0 %v1484
        %v1503 = vpop.f32.mrf.mxu0
        %v1504 = vadd.f32 %v1481, %v1503
        %1505 = vdwg.mxu0
        %v1506 = vadd.f32 %v842, %v1504
        %v1507 = vld [vmem:[%s841] sm:$0xff]
        %v1508 = vld [vmem:[#allocation17] sm:$0x1]
        %v1509 = vld [vmem:[#allocation19] sm:$0x1]
        %v1510 = vsel %vm1084, %v1506, 0.0
        %1511 = vadd.xlane.f32.xlu0 %v1510
        %v1512 = vpop.xlane.xlu0 %1511
        %v1513 = vmul.f32 %v1512, %v1094
        %v1514 = vsub.f32 %v1506, %v1513
        %v1515 = vmul.f32 %v1514, %v1514
        %v1516 = vsel %vm1084, %v1515, 0.0
        %1517 = vadd.xlane.f32.xlu0 %v1516
        %v1518 = vpop.xlane.xlu0 %1517
        %v1519 = vmul.f32 %v1518, %v1094
        %v1520 = vadd.f32 %v1519, 1e-05
        %v1521 = vrsqrt.pop %v1520
        %v1522 = vmul.f32 %v1521, %v1520
        %v1523 = vmul.f32 %v1522, %v1521
        %v1524 = vmul.f32 0.5, %v1523
        %v1525 = vsub.f32 1.5, %v1524
        %v1526 = vmul.f32 %v1521, %v1525
        %vm1527 = vweird.f32 %v1520
        %vm1528 = vweird.f32 %v1521
        %vm1529 = vmor %vm1527, %vm1528
        %v1530 = vsel %vm1529, %v1521, %v1526
        %v1531 = vmul.f32 %v1514, %v1530
        %v1533 = vperm.slane %v1508, 0
        %v1535 = vmul.f32 %v1531, %v1533
        %v1537 = vperm.slane %v1509, 0
        %v1539 = vadd.f32 %v1535, %v1537
        %v1540 = vld [vmem:[#allocation20] sm:$0xff]
        %v1541 = vld [vmem:[#allocation20 + $0x8] sm:$0xff]
        %v1542 = vld [vmem:[#allocation20 + $0x10] sm:$0xff]
        %v1543 = vld [vmem:[#allocation20 + $0x18] sm:$0xff]
        %v1544 = vld [vmem:[#allocation22] sm:$0x1]
        %v1546 = vperm.slane %v1544, 0
        %v1549 = vsel %vm1084, %v1539, 0
        %1551 = vmatpush.msra.mxu0 0.0
        %1552 = vmatpush.msra.mxu0 0.0
        %1553 = vmatpush.msra.mxu0 0.0
        %1554 = vmatpush.msra.mxu0 0.0
        %1555 = vmatpush.msra.mxu0 0.0
        %1556 = vmatpush.msra.mxu0 0.0
        %1557 = vmatpush.msra.mxu0 0.0
        %1558 = vmatpush.msra.mxu0 0.0
        %1559 = vmatpush.msra.mxu0 0.0
        %1560 = vmatpush.msra.mxu0 0.0
        %1561 = vmatpush.msra.mxu0 0.0
        %1562 = vmatpush.msra.mxu0 0.0
        %1563 = vmatpush.msra.mxu0 %v1543
        %1564 = vmatpush.msra.mxu0 %v1542
        %1565 = vmatpush.msra.mxu0 %v1541
        %1566 = vmatpush.msra.mxu0 %v1540
        %1567 = vmatmul.f32.gmra.mxu0 %v1549
        %v1568 = vpop.f32.mrf.mxu0
        %v1569 = vadd.f32 %v1546, %v1568
        %1570 = vdwg.mxu0
        %v1571 = vmax.f32 %v1569, 0.0
        %1573 = vset.pattern.permute.xlu0 0
        %1574 = vperm.xlu0 %1573, %v1507
        %v1575 = vpop.permute.xlu0 %1574
        %v1577 = vmul.f32 %v1571, %v1575
        %v1578 = vld [vmem:[%s16] sm:$0xff]
        %v1579 = vld [vmem:[%s16 + $0x8] sm:$0xff]
        %v1580 = vld [vmem:[%s16 + $0x10] sm:$0xff]
        %v1581 = vld [vmem:[%s16 + $0x18] sm:$0xff]
        %v1582 = vld [vmem:[%s16 + $0x20] sm:$0xff]
        %v1583 = vld [vmem:[%s16 + $0x28] sm:$0xff]
        %v1584 = vld [vmem:[%s16 + $0x30] sm:$0xff]
        %v1585 = vld [vmem:[%s16 + $0x38] sm:$0xff]
        %v1586 = vld [vmem:[#allocation23] sm:$0x1]
        %v1588 = vperm.slane %v1586, 0
        %vm1590 = vcmask 523264
        %v1592 = vsel %vm1590, %v1577, 0
        %1594 = vmatpush.msra.mxu0 0.0
        %1595 = vmatpush.msra.mxu0 0.0
        %1596 = vmatpush.msra.mxu0 0.0
        %1597 = vmatpush.msra.mxu0 0.0
        %1598 = vmatpush.msra.mxu0 0.0
        %1599 = vmatpush.msra.mxu0 0.0
        %1600 = vmatpush.msra.mxu0 0.0
        %1601 = vmatpush.msra.mxu0 0.0
        %1602 = vmatpush.msra.mxu0 %v1585
        %1603 = vmatpush.msra.mxu0 %v1584
        %1604 = vmatpush.msra.mxu0 %v1583
        %1605 = vmatpush.msra.mxu0 %v1582
        %1606 = vmatpush.msra.mxu0 %v1581
        %1607 = vmatpush.msra.mxu0 %v1580
        %1608 = vmatpush.msra.mxu0 %v1579
        %1609 = vmatpush.msra.mxu0 %v1578
        %1610 = vmatmul.f32.gmra.mxu0 %v1592
        %v1611 = vpop.f32.mrf.mxu0
        %v1612 = vadd.f32 %v1588, %v1611
        %1613 = vdwg.mxu0
        %v1614 = vmul.f32 %v1612, %v1575
        %v1615 = vadd.f32 %v1506, %v1614
        %1616 = vst.msk [vmem:[%s834] sm:$0xff] %vm1084, %v1615
        %s1617 = sand.u32 %s467, 1
        %s1618 = scalar_lea.sflag [#allocation7], %s1617
        %s1619 = sand.u32 %s467, 1
        %s1620 = smul.addr %s1619, 8
        %s1621 = scalar_lea.vmem [#allocation25], %s1620
        // Predicated region
        $region145: #{tpu_custom_call.1} parent=91 // pred_check
          %p1622 = pneg %p477
        $region146: #{tpu_custom_call.1} parent=91 // pred_check_branch
          %1624 = sbr.rel (%p1622) target = $region148
        $region147: #{tpu_custom_call.1} parent=91 // pred_region
          %1626 = vsyncadd %s1618, 0
          %s1627 = sadd.s32 %s48, %s47
          %s1628 = smul.addr %s1627, 8
          %s1629 = scalar_lea.hbm %s18, %s1628
          %s1631 = sshll.u32 %s1621, 4
          %s1632 = int_to_ptr.vmem [resolvable:$true] %s1631
          %s1633 = sshll.u32 %s1629, 4
          %s1634 = int_to_ptr.hbm [resolvable:$true] %s1633
          %1636 = dma.vmem_to_hbm [thread:$0]  %s1632, 128, %s1634, %s1618
        $region148: #{tpu_custom_call.1} parent=91 // pred_fallthru
          _
      $region92: #{tpu_custom_call.1} parent=5 // pred_fallthru
        _
      %p1637 = scmp.le.s32.totalorder 2, %s38
      // Predicated region
      $region149: #{tpu_custom_call.1} parent=5 // pred_check
        %p1638 = pneg %p1637
      $region150: #{tpu_custom_call.1} parent=5 // pred_check_branch
        %1640 = sbr.rel (%p1638) target = $region152
      $region151: #{tpu_custom_call.1} parent=5 // pred_region
        %s1641 = ssub.s32 %s38, 2
        // Predicated region
        $region153: #{tpu_custom_call.1} parent=151 // pred_check
          %p1642 = pneg %p483
        $region154: #{tpu_custom_call.1} parent=151 // pred_check_branch
          %1644 = sbr.rel (%p1642) target = $region156
        $region155: #{tpu_custom_call.1} parent=151 // pred_region
          %s1645 = sand.u32 %s468, 1
          %s1646 = scalar_lea.sflag [#allocation7], %s1645
          %s1647 = sand.u32 %s468, 1
          %s1648 = smul.addr %s1647, 8
          %s1649 = scalar_lea.vmem [#allocation25], %s1648
          %1651 = dma.done %s1646, 128
        $region156: #{tpu_custom_call.1} parent=151 // pred_fallthru
          _
      $region152: #{tpu_custom_call.1} parent=5 // pred_fallthru
        _
    $region6: #{tpu_custom_call.1} parent=1 // loop_footer
      %s42 = sadd.s32 1, %s38
    $region7: #{tpu_custom_call.1} parent=1 // loop_footer_branch
      %37 = sbr.rel target = $region3
    $region8: #{tpu_custom_call.1} parent=1 // loop_exit
      _
    %1652 = vsyncpa [#allocation6], 1
    %s1653 = scalar_lea.sflag [#allocation6], 1
    %1654 = vsyncpa %s1653, 1
    %1655 = vsyncpa [#allocation9], 1
    %s1656 = scalar_lea.sflag [#allocation9], 1
    %1657 = vsyncpa %s1656, 1
    %1658 = vsyncpa [#allocation12], 1
    %1659 = vsyncpa [#allocation15], 1
    %1660 = vsyncpa [#allocation18], 1
    %1661 = vsyncpa [#allocation21], 1
    %1662 = vsyncpa [#allocation24], 1
    %1663 = vsyncpa [#allocation7], 1
    %s1664 = scalar_lea.sflag [#allocation7], 1
    %1665 = vsyncpa %s1664, 1

// kernel: tpu_custom_call.1
$region0: #{tpu_custom_call.1}
  #allocation0 [shape = 'u32[]', space=smem, size = 0x4, offset = 0x4, fixed_abs, tag = 'smem constant byte address 0x4 - core index']
  #allocation1 [shape = 'u32[72,128]{1,0:T(1,128)}', space=vmem, size = 0x9000, scoped, tag = 'internal scratch']
  #allocation2 [shape = 'f32[4,8,8]{2,1,0:T(8,128)}', space=vmem, size = 0x4000, scoped, tag = 'scratch operand']
  #allocation3 [shape = 'f32[4,8,8]{2,1,0:T(8,128)}', space=vmem, size = 0x4000, scoped, tag = 'scratch operand']
  #allocation4 [shape = 'f32[8,32]{1,0:T(8,128)}', space=vmem, size = 0x1000, scoped, tag = 'scratch operand']
  %s0 = inlined_call_operand.hbm [shape: f32[2,8,32], index: 0, kind: input, shape index: {}]
  %s1 = inlined_call_operand.hbm [shape: f32[2,8,32], index: 1, kind: input, shape index: {}]
  %s2 = inlined_call_operand.hbm [shape: f32[2,1,8], index: 2, kind: input, shape index: {}]
  %s3 = inlined_call_operand.vmem [shape: f32[2,8,1], index: 3, kind: input, shape index: {}]
  %s4 = inlined_call_operand.vmem [shape: f32[1,32], index: 4, kind: input, shape index: {}]
  %s5 = inlined_call_operand.hbm [shape: f32[1,32], index: 5, kind: input, shape index: {}]
  %s6 = inlined_call_operand.vmem [shape: f32[32,32], index: 6, kind: input, shape index: {}]
  %s7 = inlined_call_operand.hbm [shape: f32[1,32], index: 7, kind: input, shape index: {}]
  %s8 = inlined_call_operand.vmem [shape: f32[32,64], index: 8, kind: input, shape index: {}]
  %s9 = inlined_call_operand.hbm [shape: f32[1,64], index: 9, kind: input, shape index: {}]
  %s10 = inlined_call_operand.vmem [shape: f32[32,32], index: 10, kind: input, shape index: {}]
  %s11 = inlined_call_operand.hbm [shape: f32[1,32], index: 11, kind: input, shape index: {}]
  %s12 = inlined_call_operand.hbm [shape: f32[1,32], index: 12, kind: input, shape index: {}]
  %s13 = inlined_call_operand.hbm [shape: f32[1,32], index: 13, kind: input, shape index: {}]
  %s14 = inlined_call_operand.hbm [shape: f32[32,64], index: 14, kind: input, shape index: {}]
  %s15 = inlined_call_operand.hbm [shape: f32[1,64], index: 15, kind: input, shape index: {}]
  %s16 = inlined_call_operand.vmem [shape: f32[64,32], index: 16, kind: input, shape index: {}]
  %s17 = inlined_call_operand.hbm [shape: f32[1,32], index: 17, kind: input, shape index: {}]
  %s18 = inlined_call_operand.hbm [shape: f32[2,8,32], index: 18, kind: output, shape index: {}]
  %s19 = sld [smem:[#allocation0]]
  $region157: #{tpu_custom_call.1} parent=0
    _
  %s21 = ssub.s32 1, %s19
  %s22 = scalar_select 0, %s21, %s19
  $region1: #{tpu_custom_call.1} parent=0
    #allocation5 [shape = 'u8[8192]{0}', space=vmem, size = 0x2000, scoped, tag = 'input window, operand 0']
    #allocation6 [shape = 's32[2]{0}', space=sflag, size = 0x8, scoped, tag = 'scoped memory for tpu_custom_call.1']
    #allocation7 [shape = 's32[2]{0}', space=sflag, size = 0x8, scoped, tag = 'scoped memory for tpu_custom_call.1']
    #allocation8 [shape = 'u8[8192]{0}', space=vmem, size = 0x2000, scoped, tag = 'input window, operand 1']
    #allocation9 [shape = 's32[2]{0}', space=sflag, size = 0x8, scoped, tag = 'scoped memory for tpu_custom_call.1']
    #allocation10 [shape = 'u8[1024]{0}', space=vmem, size = 0x400, scoped, tag = 'input window, operand 2']
    #allocation11 [shape = 'u8[512]{0}', space=vmem, size = 0x400, scoped, tag = 'input window, operand 5, single buffered']
    #allocation12 [shape = 's32[1]{0}', space=sflag, size = 0x4, scoped, tag = 'scoped memory for tpu_custom_call.1']
    #allocation13 [shape = 'u8[512]{0}', space=vmem, size = 0x400, scoped, tag = 'input window, operand 7, single buffered']
    #allocation14 [shape = 'u8[512]{0}', space=vmem, size = 0x400, scoped, tag = 'input window, operand 9, single buffered']
    #allocation15 [shape = 's32[1]{0}', space=sflag, size = 0x4, scoped, tag = 'scoped memory for tpu_custom_call.1']
    #allocation16 [shape = 'u8[512]{0}', space=vmem, size = 0x400, scoped, tag = 'input window, operand 11, single buffered']
    #allocation17 [shape = 'u8[512]{0}', space=vmem, size = 0x400, scoped, tag = 'input window, operand 12, single buffered']
    #allocation18 [shape = 's32[1]{0}', space=sflag, size = 0x4, scoped, tag = 'scoped memory for tpu_custom_call.1']
    #allocation19 [shape = 'u8[512]{0}', space=vmem, size = 0x400, scoped, tag = 'input window, operand 13, single buffered']
    #allocation20 [shape = 'u8[16384]{0}', space=vmem, size = 0x4000, scoped, tag = 'input window, operand 14, single buffered']
    #allocation21 [shape = 's32[1]{0}', space=sflag, size = 0x4, scoped, tag = 'scoped memory for tpu_custom_call.1']
    #allocation22 [shape = 'u8[512]{0}', space=vmem, size = 0x400, scoped, tag = 'input window, operand 15, single buffered']
    #allocation23 [shape = 'u8[512]{0}', space=vmem, size = 0x400, scoped, tag = 'input window, operand 17, single buffered']
    #allocation24 [shape = 's32[1]{0}', space=sflag, size = 0x4, scoped, tag = 'scoped memory for tpu_custom_call.1']
    #allocation25 [shape = 'u8[8192]{0}', space=vmem, size = 0x2000, scoped, tag = 'output window, operand 0']
    %23 = vsyncpa [#allocation6], 0
    %s24 = scalar_lea.sflag [#allocation6], 1
    %25 = vsyncpa %s24, 0
    %26 = vsyncpa [#allocation9], 0
    %s27 = scalar_lea.sflag [#allocation9], 1
    %28 = vsyncpa %s27, 0
    %29 = vsyncpa [#allocation12], 0
    %30 = vsyncpa [#allocation15], 0
    %31 = vsyncpa [#allocation18], 0
    %32 = vsyncpa [#allocation21], 0
    %33 = vsyncpa [#allocation24], 0
    %34 = vsyncpa [#allocation7], 0
    %s35 = scalar_lea.sflag [#allocation7], 1
    %36 = vsyncpa %s35, 0
    loop: start=0, step=1, limit=4
    $region2: #{tpu_custom_call.1} parent=1 // loop_pre_header
      _
    $region3: #{tpu_custom_call.1} parent=1 // loop_header
      %s38 = sphi 0, %s42
      %p39 = scmp.ge.s32.totalorder %s38, 4
      %s45 = sphi 0, %s57
      %s46 = sphi 0, %s53
      %s47 = sphi 0, %s45
      %s48 = sphi 0, %s46
      %s49 = sphi 0, %s47
      %s50 = sphi 0, %s48
      %s62 = sphi 0, %s64
      %s65 = sphi 0, %s62
      %s66 = sphi 0, %s65
      %s82 = sphi 0, %s66
      %s88 = sphi 0, %s90
      %s91 = sphi 0, %s88
      %s92 = sphi 0, %s91
      %s108 = sphi 0, %s92
      %s114 = sphi 0, %s116
      %s117 = sphi 0, %s114
      %s118 = sphi 0, %s117
      %s134 = sphi 0, %s118
      %s142 = sphi 0, %s144
      %s145 = sphi 0, %s142
      %s146 = sphi 0, %s145
      %s162 = sphi 0, %s146
      %s166 = sphi 0, %s166
      %s168 = sphi 0, %s166
      %s169 = sphi 0, %s168
      %s183 = sphi 0, %s169
      %s187 = sphi 0, %s187
      %s189 = sphi 0, %s187
      %s190 = sphi 0, %s189
      %s204 = sphi 0, %s190
      %s208 = sphi 0, %s208
      %s210 = sphi 0, %s208
      %s211 = sphi 0, %s210
      %s225 = sphi 0, %s211
      %s229 = sphi 0, %s229
      %s231 = sphi 0, %s229
      %s232 = sphi 0, %s231
      %s246 = sphi 0, %s232
      %s250 = sphi 0, %s250
      %s252 = sphi 0, %s250
      %s253 = sphi 0, %s252
      %s267 = sphi 0, %s253
      %s271 = sphi 0, %s271
      %s273 = sphi 0, %s271
      %s274 = sphi 0, %s273
      %s288 = sphi 0, %s274
      %s292 = sphi 0, %s292
      %s294 = sphi 0, %s292
      %s295 = sphi 0, %s294
      %s309 = sphi 0, %s295
      %s313 = sphi 0, %s313
      %s315 = sphi 0, %s313
      %s316 = sphi 0, %s315
      %s330 = sphi 0, %s316
      %s334 = sphi 0, %s334
      %s336 = sphi 0, %s334
      %s337 = sphi 0, %s336
      %s351 = sphi 0, %s337
      %s355 = sphi 0, %s355
      %s357 = sphi 0, %s355
      %s358 = sphi 0, %s357
      %s372 = sphi 0, %s358
      %s376 = sphi 0, %s376
      %s378 = sphi 0, %s376
      %s379 = sphi 0, %s378
      %s393 = sphi 0, %s379
      %s397 = sphi 0, %s397
      %s399 = sphi 0, %s397
      %s400 = sphi 0, %s399
      %s414 = sphi 0, %s400
      %s418 = sphi 0, %s418
      %s420 = sphi 0, %s418
      %s421 = sphi 0, %s420
      %s435 = sphi 0, %s421
      %s439 = sphi 0, %s439
      %s441 = sphi 0, %s439
      %s442 = sphi 0, %s441
      %s456 = sphi 0, %s442
      %s464 = sphi 0, %s466
      %s467 = sphi 0, %s464
      %s468 = sphi 0, %s467
      %s484 = sphi 0, %s468
    $region4: #{tpu_custom_call.1} parent=1 // loop_header_branch
      %41 = sbr.rel (%p39) target = $region8
    $region5: #{tpu_custom_call.1} parent=1 // loop_body
      %s43 = ssub.s32 %s38, 1
      %s44 = ssub.s32 %s38, 2
      %s51 = sadd.s32 1, %s46
      %p52 = scmp.ge.s32.totalorder %s51, 1
      %s53 = scalar_select %p52, 0, %s51
      %s54 = sadd.s32 1, %s45
      %s55 = scalar_select %p52, %s54, %s45
      %p56 = scmp.ge.s32.totalorder %s55, 2
      %s57 = scalar_select %p56, 0, %s55
      %s58 = ssub.s32 %s45, %s57
      %s59 = ssub.s32 %s46, %s53
      %s60 = sor.u32 %s58, %s59
      %p61 = scmp.eq.s32.totalorder %s60, 0
      %s63 = sadd.s32 %s62, 1
      %s64 = scalar_select %p61, %s62, %s63
      %p67 = pneg %p61
      %p68 = scmp.eq.s32.totalorder %s38, 1
      %p69 = por %p67, %p68
      %p70 = scmp.ne.s32.totalorder %s62, %s65
      %p71 = scmp.eq.s32.totalorder %s38, 0
      %p72 = por %p70, %p71
      %p73 = scmp.ne.s32.totalorder %s62, %s65
      %p74 = scmp.eq.s32.totalorder %s43, 1
      %p75 = por %p73, %p74
      %p76 = scmp.ne.s32.totalorder %s65, %s66
      %p77 = scmp.eq.s32.totalorder %s43, 0
      %p78 = por %p76, %p77
      %p79 = scmp.ne.s32.totalorder %s65, %s66
      %p80 = scmp.eq.s32.totalorder %s44, 1
      %p81 = por %p79, %p80
      %p83 = scmp.ne.s32.totalorder %s66, %s82
      %p84 = scmp.eq.s32.totalorder %s44, 0
      %p85 = por %p83, %p84
      %s86 = ssub.s32 %s45, %s57
      %p87 = scmp.eq.s32.totalorder %s86, 0
      %s89 = sadd.s32 %s88, 1
      %s90 = scalar_select %p87, %s88, %s89
      %p93 = pneg %p87
      %p94 = scmp.eq.s32.totalorder %s38, 1
      %p95 = por %p93, %p94
      %p96 = scmp.ne.s32.totalorder %s88, %s91
      %p97 = scmp.eq.s32.totalorder %s38, 0
      %p98 = por %p96, %p97
      %p99 = scmp.ne.s32.totalorder %s88, %s91
      %p100 = scmp.eq.s32.totalorder %s43, 1
      %p101 = por %p99, %p100
      %p102 = scmp.ne.s32.totalorder %s91, %s92
      %p103 = scmp.eq.s32.totalorder %s43, 0
      %p104 = por %p102, %p103
      %p105 = scmp.ne.s32.totalorder %s91, %s92
      %p106 = scmp.eq.s32.totalorder %s44, 1
      %p107 = por %p105, %p106
      %p109 = scmp.ne.s32.totalorder %s92, %s108
      %p110 = scmp.eq.s32.totalorder %s44, 0
      %p111 = por %p109, %p110
      %s112 = ssub.s32 %s45, %s57
      %p113 = scmp.eq.s32.totalorder %s112, 0
      %s115 = sadd.s32 %s114, 1
      %s116 = scalar_select %p113, %s114, %s115
      %p119 = pneg %p113
      %p120 = scmp.eq.s32.totalorder %s38, 1
      %p121 = por %p119, %p120
      %p122 = scmp.ne.s32.totalorder %s114, %s117
      %p123 = scmp.eq.s32.totalorder %s38, 0
      %p124 = por %p122, %p123
      %p125 = scmp.ne.s32.totalorder %s114, %s117
      %p126 = scmp.eq.s32.totalorder %s43, 1
      %p127 = por %p125, %p126
      %p128 = scmp.ne.s32.totalorder %s117, %s118
      %p129 = scmp.eq.s32.totalorder %s43, 0
      %p130 = por %p128, %p129
      %p131 = scmp.ne.s32.totalorder %s117, %s118
      %p132 = scmp.eq.s32.totalorder %s44, 1
      %p133 = por %p131, %p132
      %p135 = scmp.ne.s32.totalorder %s118, %s134
      %p136 = scmp.eq.s32.totalorder %s44, 0
      %p137 = por %p135, %p136
      %s138 = ssub.s32 %s45, %s57
      %s139 = ssub.s32 %s46, %s53
      %s140 = sor.u32 %s138, %s139
      %p141 = scmp.eq.s32.totalorder %s140, 0
      %s143 = sadd.s32 %s142, 1
      %s144 = scalar_select %p141, %s142, %s143
      %p147 = pneg %p141
      %p148 = scmp.eq.s32.totalorder %s38, 1
      %p149 = por %p147, %p148
      %p150 = scmp.ne.s32.totalorder %s142, %s145
      %p151 = scmp.eq.s32.totalorder %s38, 0
      %p152 = por %p150, %p151
      %p153 = scmp.ne.s32.totalorder %s142, %s145
      %p154 = scmp.eq.s32.totalorder %s43, 1
      %p155 = por %p153, %p154
      %p156 = scmp.ne.s32.totalorder %s145, %s146
      %p157 = scmp.eq.s32.totalorder %s43, 0
      %p158 = por %p156, %p157
      %p159 = scmp.ne.s32.totalorder %s145, %s146
      %p160 = scmp.eq.s32.totalorder %s44, 1
      %p161 = por %p159, %p160
      %p163 = scmp.ne.s32.totalorder %s146, %s162
      %p164 = scmp.eq.s32.totalorder %s44, 0
      %p165 = por %p163, %p164
      %s167 = sadd.s32 %s166, 1
      %p170 = scmp.eq.s32.totalorder %s38, 1
      %p171 = scmp.ne.s32.totalorder %s166, %s168
      %p172 = scmp.eq.s32.totalorder %s38, 0
      %p173 = por %p171, %p172
      %p174 = scmp.ne.s32.totalorder %s166, %s168
      %p175 = scmp.eq.s32.totalorder %s43, 1
      %p176 = por %p174, %p175
      %p177 = scmp.ne.s32.totalorder %s168, %s169
      %p178 = scmp.eq.s32.totalorder %s43, 0
      %p179 = por %p177, %p178
      %p180 = scmp.ne.s32.totalorder %s168, %s169
      %p181 = scmp.eq.s32.totalorder %s44, 1
      %p182 = por %p180, %p181
      %p184 = scmp.ne.s32.totalorder %s169, %s183
      %p185 = scmp.eq.s32.totalorder %s44, 0
      %p186 = por %p184, %p185
      %s188 = sadd.s32 %s187, 1
      %p191 = scmp.eq.s32.totalorder %s38, 1
      %p192 = scmp.ne.s32.totalorder %s187, %s189
      %p193 = scmp.eq.s32.totalorder %s38, 0
      %p194 = por %p192, %p193
      %p195 = scmp.ne.s32.totalorder %s187, %s189
      %p196 = scmp.eq.s32.totalorder %s43, 1
      %p197 = por %p195, %p196
      %p198 = scmp.ne.s32.totalorder %s189, %s190
      %p199 = scmp.eq.s32.totalorder %s43, 0
      %p200 = por %p198, %p199
      %p201 = scmp.ne.s32.totalorder %s189, %s190
      %p202 = scmp.eq.s32.totalorder %s44, 1
      %p203 = por %p201, %p202
      %p205 = scmp.ne.s32.totalorder %s190, %s204
      %p206 = scmp.eq.s32.totalorder %s44, 0
      %p207 = por %p205, %p206
      %s209 = sadd.s32 %s208, 1
      %p212 = scmp.eq.s32.totalorder %s38, 1
      %p213 = scmp.ne.s32.totalorder %s208, %s210
      %p214 = scmp.eq.s32.totalorder %s38, 0
      %p215 = por %p213, %p214
      %p216 = scmp.ne.s32.totalorder %s208, %s210
      %p217 = scmp.eq.s32.totalorder %s43, 1
      %p218 = por %p216, %p217
      %p219 = scmp.ne.s32.totalorder %s210, %s211
      %p220 = scmp.eq.s32.totalorder %s43, 0
      %p221 = por %p219, %p220
      %p222 = scmp.ne.s32.totalorder %s210, %s211
      %p223 = scmp.eq.s32.totalorder %s44, 1
      %p224 = por %p222, %p223
      %p226 = scmp.ne.s32.totalorder %s211, %s225
      %p227 = scmp.eq.s32.totalorder %s44, 0
      %p228 = por %p226, %p227
      %s230 = sadd.s32 %s229, 1
      %p233 = scmp.eq.s32.totalorder %s38, 1
      %p234 = scmp.ne.s32.totalorder %s229, %s231
      %p235 = scmp.eq.s32.totalorder %s38, 0
      %p236 = por %p234, %p235
      %p237 = scmp.ne.s32.totalorder %s229, %s231
      %p238 = scmp.eq.s32.totalorder %s43, 1
      %p239 = por %p237, %p238
      %p240 = scmp.ne.s32.totalorder %s231, %s232
      %p241 = scmp.eq.s32.totalorder %s43, 0
      %p242 = por %p240, %p241
      %p243 = scmp.ne.s32.totalorder %s231, %s232
      %p244 = scmp.eq.s32.totalorder %s44, 1
      %p245 = por %p243, %p244
      %p247 = scmp.ne.s32.totalorder %s232, %s246
      %p248 = scmp.eq.s32.totalorder %s44, 0
      %p249 = por %p247, %p248
      %s251 = sadd.s32 %s250, 1
      %p254 = scmp.eq.s32.totalorder %s38, 1
      %p255 = scmp.ne.s32.totalorder %s250, %s252
      %p256 = scmp.eq.s32.totalorder %s38, 0
      %p257 = por %p255, %p256
      %p258 = scmp.ne.s32.totalorder %s250, %s252
      %p259 = scmp.eq.s32.totalorder %s43, 1
      %p260 = por %p258, %p259
      %p261 = scmp.ne.s32.totalorder %s252, %s253
      %p262 = scmp.eq.s32.totalorder %s43, 0
      %p263 = por %p261, %p262
      %p264 = scmp.ne.s32.totalorder %s252, %s253
      %p265 = scmp.eq.s32.totalorder %s44, 1
      %p266 = por %p264, %p265
      %p268 = scmp.ne.s32.totalorder %s253, %s267
      %p269 = scmp.eq.s32.totalorder %s44, 0
      %p270 = por %p268, %p269
      %s272 = sadd.s32 %s271, 1
      %p275 = scmp.eq.s32.totalorder %s38, 1
      %p276 = scmp.ne.s32.totalorder %s271, %s273
      %p277 = scmp.eq.s32.totalorder %s38, 0
      %p278 = por %p276, %p277
      %p279 = scmp.ne.s32.totalorder %s271, %s273
      %p280 = scmp.eq.s32.totalorder %s43, 1
      %p281 = por %p279, %p280
      %p282 = scmp.ne.s32.totalorder %s273, %s274
      %p283 = scmp.eq.s32.totalorder %s43, 0
      %p284 = por %p282, %p283
      %p285 = scmp.ne.s32.totalorder %s273, %s274
      %p286 = scmp.eq.s32.totalorder %s44, 1
      %p287 = por %p285, %p286
      %p289 = scmp.ne.s32.totalorder %s274, %s288
      %p290 = scmp.eq.s32.totalorder %s44, 0
      %p291 = por %p289, %p290
      %s293 = sadd.s32 %s292, 1
      %p296 = scmp.eq.s32.totalorder %s38, 1
      %p297 = scmp.ne.s32.totalorder %s292, %s294
      %p298 = scmp.eq.s32.totalorder %s38, 0
      %p299 = por %p297, %p298
      %p300 = scmp.ne.s32.totalorder %s292, %s294
      %p301 = scmp.eq.s32.totalorder %s43, 1
      %p302 = por %p300, %p301
      %p303 = scmp.ne.s32.totalorder %s294, %s295
      %p304 = scmp.eq.s32.totalorder %s43, 0
      %p305 = por %p303, %p304
      %p306 = scmp.ne.s32.totalorder %s294, %s295
      %p307 = scmp.eq.s32.totalorder %s44, 1
      %p308 = por %p306, %p307
      %p310 = scmp.ne.s32.totalorder %s295, %s309
      %p311 = scmp.eq.s32.totalorder %s44, 0
      %p312 = por %p310, %p311
      %s314 = sadd.s32 %s313, 1
      %p317 = scmp.eq.s32.totalorder %s38, 1
      %p318 = scmp.ne.s32.totalorder %s313, %s315
      %p319 = scmp.eq.s32.totalorder %s38, 0
      %p320 = por %p318, %p319
      %p321 = scmp.ne.s32.totalorder %s313, %s315
      %p322 = scmp.eq.s32.totalorder %s43, 1
      %p323 = por %p321, %p322
      %p324 = scmp.ne.s32.totalorder %s315, %s316
      %p325 = scmp.eq.s32.totalorder %s43, 0
      %p326 = por %p324, %p325
      %p327 = scmp.ne.s32.totalorder %s315, %s316
      %p328 = scmp.eq.s32.totalorder %s44, 1
      %p329 = por %p327, %p328
      %p331 = scmp.ne.s32.totalorder %s316, %s330
      %p332 = scmp.eq.s32.totalorder %s44, 0
      %p333 = por %p331, %p332
      %s335 = sadd.s32 %s334, 1
      %p338 = scmp.eq.s32.totalorder %s38, 1
      %p339 = scmp.ne.s32.totalorder %s334, %s336
      %p340 = scmp.eq.s32.totalorder %s38, 0
      %p341 = por %p339, %p340
      %p342 = scmp.ne.s32.totalorder %s334, %s336
      %p343 = scmp.eq.s32.totalorder %s43, 1
      %p344 = por %p342, %p343
      %p345 = scmp.ne.s32.totalorder %s336, %s337
      %p346 = scmp.eq.s32.totalorder %s43, 0
      %p347 = por %p345, %p346
      %p348 = scmp.ne.s32.totalorder %s336, %s337
      %p349 = scmp.eq.s32.totalorder %s44, 1
      %p350 = por %p348, %p349
      %p352 = scmp.ne.s32.totalorder %s337, %s351
      %p353 = scmp.eq.s32.totalorder %s44, 0
      %p354 = por %p352, %p353
      %s356 = sadd.s32 %s355, 1
      %p359 = scmp.eq.s32.totalorder %s38, 1
      %p360 = scmp.ne.s32.totalorder %s355, %s357
      %p361 = scmp.eq.s32.totalorder %s38, 0
      %p362 = por %p360, %p361
      %p363 = scmp.ne.s32.totalorder %s355, %s357
      %p364 = scmp.eq.s32.totalorder %s43, 1
      %p365 = por %p363, %p364
      %p366 = scmp.ne.s32.totalorder %s357, %s358
      %p367 = scmp.eq.s32.totalorder %s43, 0
      %p368 = por %p366, %p367
      %p369 = scmp.ne.s32.totalorder %s357, %s358
      %p370 = scmp.eq.s32.totalorder %s44, 1
      %p371 = por %p369, %p370
      %p373 = scmp.ne.s32.totalorder %s358, %s372
      %p374 = scmp.eq.s32.totalorder %s44, 0
      %p375 = por %p373, %p374
      %s377 = sadd.s32 %s376, 1
      %p380 = scmp.eq.s32.totalorder %s38, 1
      %p381 = scmp.ne.s32.totalorder %s376, %s378
      %p382 = scmp.eq.s32.totalorder %s38, 0
      %p383 = por %p381, %p382
      %p384 = scmp.ne.s32.totalorder %s376, %s378
      %p385 = scmp.eq.s32.totalorder %s43, 1
      %p386 = por %p384, %p385
      %p387 = scmp.ne.s32.totalorder %s378, %s379
      %p388 = scmp.eq.s32.totalorder %s43, 0
      %p389 = por %p387, %p388
      %p390 = scmp.ne.s32.totalorder %s378, %s379
      %p391 = scmp.eq.s32.totalorder %s44, 1
      %p392 = por %p390, %p391
      %p394 = scmp.ne.s32.totalorder %s379, %s393
      %p395 = scmp.eq.s32.totalorder %s44, 0
      %p396 = por %p394, %p395
      %s398 = sadd.s32 %s397, 1
      %p401 = scmp.eq.s32.totalorder %s38, 1
      %p402 = scmp.ne.s32.totalorder %s397, %s399
      %p403 = scmp.eq.s32.totalorder %s38, 0
      %p404 = por %p402, %p403
      %p405 = scmp.ne.s32.totalorder %s397, %s399
      %p406 = scmp.eq.s32.totalorder %s43, 1
      %p407 = por %p405, %p406
      %p408 = scmp.ne.s32.totalorder %s399, %s400
      %p409 = scmp.eq.s32.totalorder %s43, 0
      %p410 = por %p408, %p409
      %p411 = scmp.ne.s32.totalorder %s399, %s400
      %p412 = scmp.eq.s32.totalorder %s44, 1
      %p413 = por %p411, %p412
      %p415 = scmp.ne.s32.totalorder %s400, %s414
      %p416 = scmp.eq.s32.totalorder %s44, 0
      %p417 = por %p415, %p416
      %s419 = sadd.s32 %s418, 1
      %p422 = scmp.eq.s32.totalorder %s38, 1
      %p423 = scmp.ne.s32.totalorder %s418, %s420
      %p424 = scmp.eq.s32.totalorder %s38, 0
      %p425 = por %p423, %p424
      %p426 = scmp.ne.s32.totalorder %s418, %s420
      %p427 = scmp.eq.s32.totalorder %s43, 1
      %p428 = por %p426, %p427
      %p429 = scmp.ne.s32.totalorder %s420, %s421
      %p430 = scmp.eq.s32.totalorder %s43, 0
      %p431 = por %p429, %p430
      %p432 = scmp.ne.s32.totalorder %s420, %s421
      %p433 = scmp.eq.s32.totalorder %s44, 1
      %p434 = por %p432, %p433
      %p436 = scmp.ne.s32.totalorder %s421, %s435
      %p437 = scmp.eq.s32.totalorder %s44, 0
      %p438 = por %p436, %p437
      %s440 = sadd.s32 %s439, 1
      %p443 = scmp.eq.s32.totalorder %s38, 1
      %p444 = scmp.ne.s32.totalorder %s439, %s441
      %p445 = scmp.eq.s32.totalorder %s38, 0
      %p446 = por %p444, %p445
      %p447 = scmp.ne.s32.totalorder %s439, %s441
      %p448 = scmp.eq.s32.totalorder %s43, 1
      %p449 = por %p447, %p448
      %p450 = scmp.ne.s32.totalorder %s441, %s442
      %p451 = scmp.eq.s32.totalorder %s43, 0
      %p452 = por %p450, %p451
      %p453 = scmp.ne.s32.totalorder %s441, %s442
      %p454 = scmp.eq.s32.totalorder %s44, 1
      %p455 = por %p453, %p454
      %p457 = scmp.ne.s32.totalorder %s442, %s456
      %p458 = scmp.eq.s32.totalorder %s44, 0
      %p459 = por %p457, %p458
      %s460 = ssub.s32 %s45, %s57
      %s461 = ssub.s32 %s46, %s53
      %s462 = sor.u32 %s460, %s461
      %p463 = scmp.eq.s32.totalorder %s462, 0
      %s465 = sadd.s32 %s464, 1
      %s466 = scalar_select %p463, %s464, %s465
      %p469 = pneg %p463
      %p470 = scmp.eq.s32.totalorder %s38, 1
      %p471 = por %p469, %p470
      %p472 = scmp.ne.s32.totalorder %s464, %s467
      %p473 = scmp.eq.s32.totalorder %s38, 0
      %p474 = por %p472, %p473
      %p475 = scmp.ne.s32.totalorder %s464, %s467
      %p476 = scmp.eq.s32.totalorder %s43, 1
      %p477 = por %p475, %p476
      %p478 = scmp.ne.s32.totalorder %s467, %s468
      %p479 = scmp.eq.s32.totalorder %s43, 0
      %p480 = por %p478, %p479
      %p481 = scmp.ne.s32.totalorder %s467, %s468
      %p482 = scmp.eq.s32.totalorder %s44, 1
      %p483 = por %p481, %p482
      %p485 = scmp.ne.s32.totalorder %s468, %s484
      %p486 = scmp.eq.s32.totalorder %s44, 0
      %p487 = por %p485, %p486
      %p488 = scmp.le.s32.totalorder 1, %s38
      %p489 = scmp.lt.s32.totalorder %s38, 3
      %p490 = pnand %p488, %p489
      %p491 = pneg %p490
      // Predicated region
      $region9: #{tpu_custom_call.1} parent=5 // pred_check
        _
      $region10: #{tpu_custom_call.1} parent=5 // pred_check_branch
        %493 = sbr.rel (%p490) target = $region12
      $region11: #{tpu_custom_call.1} parent=5 // pred_region
        %s494 = ssub.s32 %s38, 1
        // Predicated region
        $region13: #{tpu_custom_call.1} parent=11 // pred_check
          %p495 = pneg %p179
        $region14: #{tpu_custom_call.1} parent=11 // pred_check_branch
          %497 = sbr.rel (%p495) target = $region16
        $region15: #{tpu_custom_call.1} parent=11 // pred_region
          _
        $region16: #{tpu_custom_call.1} parent=11 // pred_fallthru
          _
        // Predicated region
        $region17: #{tpu_custom_call.1} parent=11 // pred_check
          %p498 = pneg %p200
        $region18: #{tpu_custom_call.1} parent=11 // pred_check_branch
          %500 = sbr.rel (%p498) target = $region20
        $region19: #{tpu_custom_call.1} parent=11 // pred_region
          %502 = vsyncadd [#allocation12], 0
          %s504 = sshll.u32 %s5, 4
          %s505 = int_to_ptr.hbm [resolvable:$true] %s504
          %s506 = sshll.u32 [#allocation11], 4
          %s507 = int_to_ptr.vmem [resolvable:$true] %s506
          %509 = dma.hbm_to_vmem [thread:$0]  %s505, 16, %s507, [#allocation12]
        $region20: #{tpu_custom_call.1} parent=11 // pred_fallthru
          _
        // Predicated region
        $region21: #{tpu_custom_call.1} parent=11 // pred_check
          %p510 = pneg %p221
        $region22: #{tpu_custom_call.1} parent=11 // pred_check_branch
          %512 = sbr.rel (%p510) target = $region24
        $region23: #{tpu_custom_call.1} parent=11 // pred_region
          _
        $region24: #{tpu_custom_call.1} parent=11 // pred_fallthru
          _
        // Predicated region
        $region25: #{tpu_custom_call.1} parent=11 // pred_check
          %p513 = pneg %p242
        $region26: #{tpu_custom_call.1} parent=11 // pred_check_branch
          %515 = sbr.rel (%p513) target = $region28
        $region27: #{tpu_custom_call.1} parent=11 // pred_region
          %517 = vsyncadd [#allocation12], 0
          %s519 = sshll.u32 %s7, 4
          %s520 = int_to_ptr.hbm [resolvable:$true] %s519
          %s521 = sshll.u32 [#allocation13], 4
          %s522 = int_to_ptr.vmem [resolvable:$true] %s521
          %524 = dma.hbm_to_vmem [thread:$0]  %s520, 16, %s522, [#allocation12]
        $region28: #{tpu_custom_call.1} parent=11 // pred_fallthru
          _
        // Predicated region
        $region29: #{tpu_custom_call.1} parent=11 // pred_check
          %p525 = pneg %p263
        $region30: #{tpu_custom_call.1} parent=11 // pred_check_branch
          %527 = sbr.rel (%p525) target = $region32
        $region31: #{tpu_custom_call.1} parent=11 // pred_region
          _
        $region32: #{tpu_custom_call.1} parent=11 // pred_fallthru
          _
        // Predicated region
        $region33: #{tpu_custom_call.1} parent=11 // pred_check
          %p528 = pneg %p284
        $region34: #{tpu_custom_call.1} parent=11 // pred_check_branch
          %530 = sbr.rel (%p528) target = $region36
        $region35: #{tpu_custom_call.1} parent=11 // pred_region
          %532 = vsyncadd [#allocation15], 0
          %s534 = sshll.u32 %s9, 4
          %s535 = int_to_ptr.hbm [resolvable:$true] %s534
          %s536 = sshll.u32 [#allocation14], 4
          %s537 = int_to_ptr.vmem [resolvable:$true] %s536
          %539 = dma.hbm_to_vmem [thread:$0]  %s535, 16, %s537, [#allocation15]
        $region36: #{tpu_custom_call.1} parent=11 // pred_fallthru
          _
        // Predicated region
        $region37: #{tpu_custom_call.1} parent=11 // pred_check
          %p540 = pneg %p305
        $region38: #{tpu_custom_call.1} parent=11 // pred_check_branch
          %542 = sbr.rel (%p540) target = $region40
        $region39: #{tpu_custom_call.1} parent=11 // pred_region
          _
        $region40: #{tpu_custom_call.1} parent=11 // pred_fallthru
          _
        // Predicated region
        $region41: #{tpu_custom_call.1} parent=11 // pred_check
          %p543 = pneg %p326
        $region42: #{tpu_custom_call.1} parent=11 // pred_check_branch
          %545 = sbr.rel (%p543) target = $region44
        $region43: #{tpu_custom_call.1} parent=11 // pred_region
          %547 = vsyncadd [#allocation15], 0
          %s549 = sshll.u32 %s11, 4
          %s550 = int_to_ptr.hbm [resolvable:$true] %s549
          %s551 = sshll.u32 [#allocation16], 4
          %s552 = int_to_ptr.vmem [resolvable:$true] %s551
          %554 = dma.hbm_to_vmem [thread:$0]  %s550, 16, %s552, [#allocation15]
        $region44: #{tpu_custom_call.1} parent=11 // pred_fallthru
          _
        // Predicated region
        $region45: #{tpu_custom_call.1} parent=11 // pred_check
          %p555 = pneg %p347
        $region46: #{tpu_custom_call.1} parent=11 // pred_check_branch
          %557 = sbr.rel (%p555) target = $region48
        $region47: #{tpu_custom_call.1} parent=11 // pred_region
          %559 = vsyncadd [#allocation18], 0
          %s561 = sshll.u32 %s12, 4
          %s562 = int_to_ptr.hbm [resolvable:$true] %s561
          %s563 = sshll.u32 [#allocation17], 4
          %s564 = int_to_ptr.vmem [resolvable:$true] %s563
          %566 = dma.hbm_to_vmem [thread:$0]  %s562, 16, %s564, [#allocation18]
        $region48: #{tpu_custom_call.1} parent=11 // pred_fallthru
          _
        // Predicated region
        $region49: #{tpu_custom_call.1} parent=11 // pred_check
          %p567 = pneg %p368
        $region50: #{tpu_custom_call.1} parent=11 // pred_check_branch
          %569 = sbr.rel (%p567) target = $region52
        $region51: #{tpu_custom_call.1} parent=11 // pred_region
          %571 = vsyncadd [#allocation18], 0
          %s573 = sshll.u32 %s13, 4
          %s574 = int_to_ptr.hbm [resolvable:$true] %s573
          %s575 = sshll.u32 [#allocation19], 4
          %s576 = int_to_ptr.vmem [resolvable:$true] %s575
          %578 = dma.hbm_to_vmem [thread:$0]  %s574, 16, %s576, [#allocation18]
        $region52: #{tpu_custom_call.1} parent=11 // pred_fallthru
          _
        // Predicated region
        $region53: #{tpu_custom_call.1} parent=11 // pred_check
          %p579 = pneg %p389
        $region54: #{tpu_custom_call.1} parent=11 // pred_check_branch
          %581 = sbr.rel (%p579) target = $region56
        $region55: #{tpu_custom_call.1} parent=11 // pred_region
          %583 = vsyncadd [#allocation21], 0
          %s584 = sshll.u32 %s14, 4
          %s585 = int_to_ptr.hbm [resolvable:$true] %s584
          %s586 = sshll.u32 [#allocation20], 4
          %s587 = int_to_ptr.vmem [resolvable:$true] %s586
          %592 = dma.hbm_to_vmem [thread:$0]  %s585, 512, %s587, [#allocation21], 128, 128, 8
        $region56: #{tpu_custom_call.1} parent=11 // pred_fallthru
          _
        // Predicated region
        $region57: #{tpu_custom_call.1} parent=11 // pred_check
          %p593 = pneg %p410
        $region58: #{tpu_custom_call.1} parent=11 // pred_check_branch
          %595 = sbr.rel (%p593) target = $region60
        $region59: #{tpu_custom_call.1} parent=11 // pred_region
          %597 = vsyncadd [#allocation21], 0
          %s599 = sshll.u32 %s15, 4
          %s600 = int_to_ptr.hbm [resolvable:$true] %s599
          %s601 = sshll.u32 [#allocation22], 4
          %s602 = int_to_ptr.vmem [resolvable:$true] %s601
          %604 = dma.hbm_to_vmem [thread:$0]  %s600, 16, %s602, [#allocation21]
        $region60: #{tpu_custom_call.1} parent=11 // pred_fallthru
          _
        // Predicated region
        $region61: #{tpu_custom_call.1} parent=11 // pred_check
          %p605 = pneg %p431
        $region62: #{tpu_custom_call.1} parent=11 // pred_check_branch
          %607 = sbr.rel (%p605) target = $region64
        $region63: #{tpu_custom_call.1} parent=11 // pred_region
          _
        $region64: #{tpu_custom_call.1} parent=11 // pred_fallthru
          _
        // Predicated region
        $region65: #{tpu_custom_call.1} parent=11 // pred_check
          %p608 = pneg %p452
        $region66: #{tpu_custom_call.1} parent=11 // pred_check_branch
          %610 = sbr.rel (%p608) target = $region68
        $region67: #{tpu_custom_call.1} parent=11 // pred_region
          %612 = vsyncadd [#allocation24], 0
          %s614 = sshll.u32 %s17, 4
          %s615 = int_to_ptr.hbm [resolvable:$true] %s614
          %s616 = sshll.u32 [#allocation23], 4
          %s617 = int_to_ptr.vmem [resolvable:$true] %s616
          %619 = dma.hbm_to_vmem [thread:$0]  %s615, 16, %s617, [#allocation24]
        $region68: #{tpu_custom_call.1} parent=11 // pred_fallthru
          _
      $region12: #{tpu_custom_call.1} parent=5 // pred_fallthru
        _
      %p620 = scmp.lt.s32.totalorder %s38, 2
      // Predicated region
      $region69: #{tpu_custom_call.1} parent=5 // pred_check
        %p621 = pneg %p620
      $region70: #{tpu_custom_call.1} parent=5 // pred_check_branch
        %623 = sbr.rel (%p621) target = $region72
      $region71: #{tpu_custom_call.1} parent=5 // pred_region
        // Predicated region
        $region73: #{tpu_custom_call.1} parent=71 // pred_check
          %p624 = pneg %p72
        $region74: #{tpu_custom_call.1} parent=71 // pred_check_branch
          %626 = sbr.rel (%p624) target = $region76
        $region75: #{tpu_custom_call.1} parent=71 // pred_region
          %s627 = sand.u32 %s62, 1
          %s628 = scalar_lea.sflag [#allocation6], %s627
          %s629 = sand.u32 %s62, 1
          %s630 = smul.addr %s629, 8
          %s631 = scalar_lea.vmem [#allocation5], %s630
          %633 = vsyncadd %s628, 0
          %s634 = sadd.s32 %s46, %s45
          %s635 = smul.addr %s634, 8
          %s636 = scalar_lea.hbm %s0, %s635
          %s638 = sshll.u32 %s636, 4
          %s639 = int_to_ptr.hbm [resolvable:$true] %s638
          %s640 = sshll.u32 %s631, 4
          %s641 = int_to_ptr.vmem [resolvable:$true] %s640
          %643 = dma.hbm_to_vmem [thread:$0]  %s639, 128, %s641, %s628
        $region76: #{tpu_custom_call.1} parent=71 // pred_fallthru
          _
        // Predicated region
        $region77: #{tpu_custom_call.1} parent=71 // pred_check
          %p644 = pneg %p98
        $region78: #{tpu_custom_call.1} parent=71 // pred_check_branch
          %646 = sbr.rel (%p644) target = $region80
        $region79: #{tpu_custom_call.1} parent=71 // pred_region
          %s647 = sand.u32 %s38, 1
          %s648 = scalar_lea.sflag [#allocation9], %s647
          %s649 = sand.u32 %s88, 1
          %s650 = smul.addr %s649, 8
          %s651 = scalar_lea.vmem [#allocation8], %s650
          %653 = vsyncadd %s648, 0
          %s654 = smul.addr %s45, 8
          %s655 = scalar_lea.hbm %s1, %s654
          %s657 = sshll.u32 %s655, 4
          %s658 = int_to_ptr.hbm [resolvable:$true] %s657
          %s659 = sshll.u32 %s651, 4
          %s660 = int_to_ptr.vmem [resolvable:$true] %s659
          %662 = dma.hbm_to_vmem [thread:$0]  %s658, 128, %s660, %s648
        $region80: #{tpu_custom_call.1} parent=71 // pred_fallthru
          _
        // Predicated region
        $region81: #{tpu_custom_call.1} parent=71 // pred_check
          %p663 = pneg %p124
        $region82: #{tpu_custom_call.1} parent=71 // pred_check_branch
          %665 = sbr.rel (%p663) target = $region84
        $region83: #{tpu_custom_call.1} parent=71 // pred_region
          %s666 = sand.u32 %s38, 1
          %s667 = scalar_lea.sflag [#allocation9], %s666
          %s668 = sand.u32 %s114, 1
          %s669 = scalar_lea.vmem [#allocation10], %s668
          %671 = vsyncadd %s667, 0
          %s672 = scalar_lea.hbm %s2, %s45
          %s674 = sshll.u32 %s672, 4
          %s675 = int_to_ptr.hbm [resolvable:$true] %s674
          %s676 = sshll.u32 %s669, 4
          %s677 = int_to_ptr.vmem [resolvable:$true] %s676
          %679 = dma.hbm_to_vmem [thread:$0]  %s675, 16, %s677, %s667
        $region84: #{tpu_custom_call.1} parent=71 // pred_fallthru
          _
        // Predicated region
        $region85: #{tpu_custom_call.1} parent=71 // pred_check
          %p680 = pneg %p152
        $region86: #{tpu_custom_call.1} parent=71 // pred_check_branch
          %682 = sbr.rel (%p680) target = $region88
        $region87: #{tpu_custom_call.1} parent=71 // pred_region
          %p683 = scmp.lt.s32.totalorder %s45, 1
          %s684 = scalar_select %p683, %s45, 1
          %p685 = scmp.lt.s32.totalorder %s46, 0
          %s686 = scalar_select %p685, %s46, 0
          %s687 = sadd.s32 %s686, %s684
          %s688 = smul.addr %s687, 8
          %s689 = scalar_lea.vmem %s3, %s688
        $region88: #{tpu_custom_call.1} parent=71 // pred_fallthru
          _
      $region72: #{tpu_custom_call.1} parent=5 // pred_fallthru
        _
      %p690 = scmp.le.s32.totalorder 1, %s38
      %p691 = scmp.lt.s32.totalorder %s38, 3
      %p692 = pnand %p690, %p691
      %p693 = pneg %p692
      // Predicated region
      $region89: #{tpu_custom_call.1} parent=5 // pred_check
        _
      $region90: #{tpu_custom_call.1} parent=5 // pred_check_branch
        %695 = sbr.rel (%p692) target = $region92
      $region91: #{tpu_custom_call.1} parent=5 // pred_region
        %s696 = ssub.s32 %s38, 1
        %s697 = sand.u32 %s65, 1
        %s698 = scalar_lea.sflag [#allocation6], %s697
        %s699 = sand.u32 %s65, 1
        %s700 = smul.addr %s699, 8
        %s701 = scalar_lea.vmem [#allocation5], %s700
        // Predicated region
        $region93: #{tpu_custom_call.1} parent=91 // pred_check
          %p702 = pneg %p78
        $region94: #{tpu_custom_call.1} parent=91 // pred_check_branch
          %704 = sbr.rel (%p702) target = $region96
        $region95: #{tpu_custom_call.1} parent=91 // pred_region
          %706 = dma.done %s698, 128
        $region96: #{tpu_custom_call.1} parent=91 // pred_fallthru
          _
        %s707 = sand.u32 %s43, 1
        %s708 = scalar_lea.sflag [#allocation9], %s707
        %s709 = sand.u32 %s91, 1
        %s710 = smul.addr %s709, 8
        %s711 = scalar_lea.vmem [#allocation8], %s710
        // Predicated region
        $region97: #{tpu_custom_call.1} parent=91 // pred_check
          %p712 = pneg %p104
        $region98: #{tpu_custom_call.1} parent=91 // pred_check_branch
          %714 = sbr.rel (%p712) target = $region100
        $region99: #{tpu_custom_call.1} parent=91 // pred_region
          %716 = dma.done %s708, 128
        $region100: #{tpu_custom_call.1} parent=91 // pred_fallthru
          _
        %s717 = sand.u32 %s43, 1
        %s718 = scalar_lea.sflag [#allocation9], %s717
        %s719 = sand.u32 %s117, 1
        %s720 = scalar_lea.vmem [#allocation10], %s719
        // Predicated region
        $region101: #{tpu_custom_call.1} parent=91 // pred_check
          %p721 = pneg %p130
        $region102: #{tpu_custom_call.1} parent=91 // pred_check_branch
          %723 = sbr.rel (%p721) target = $region104
        $region103: #{tpu_custom_call.1} parent=91 // pred_region
          %725 = dma.done %s718, 16
        $region104: #{tpu_custom_call.1} parent=91 // pred_fallthru
          _
        // Predicated region
        $region105: #{tpu_custom_call.1} parent=91 // pred_check
          %p726 = pneg %p200
        $region106: #{tpu_custom_call.1} parent=91 // pred_check_branch
          %728 = sbr.rel (%p726) target = $region108
        $region107: #{tpu_custom_call.1} parent=91 // pred_region
          %730 = dma.done [#allocation12], 16
        $region108: #{tpu_custom_call.1} parent=91 // pred_fallthru
          _
        // Predicated region
        $region109: #{tpu_custom_call.1} parent=91 // pred_check
          %p731 = pneg %p242
        $region110: #{tpu_custom_call.1} parent=91 // pred_check_branch
          %733 = sbr.rel (%p731) target = $region112
        $region111: #{tpu_custom_call.1} parent=91 // pred_region
          %735 = dma.done [#allocation12], 16
        $region112: #{tpu_custom_call.1} parent=91 // pred_fallthru
          _
        // Predicated region
        $region113: #{tpu_custom_call.1} parent=91 // pred_check
          %p736 = pneg %p284
        $region114: #{tpu_custom_call.1} parent=91 // pred_check_branch
          %738 = sbr.rel (%p736) target = $region116
        $region115: #{tpu_custom_call.1} parent=91 // pred_region
          %740 = dma.done [#allocation15], 16
        $region116: #{tpu_custom_call.1} parent=91 // pred_fallthru
          _
        // Predicated region
        $region117: #{tpu_custom_call.1} parent=91 // pred_check
          %p741 = pneg %p326
        $region118: #{tpu_custom_call.1} parent=91 // pred_check_branch
          %743 = sbr.rel (%p741) target = $region120
        $region119: #{tpu_custom_call.1} parent=91 // pred_region
          %745 = dma.done [#allocation15], 16
        $region120: #{tpu_custom_call.1} parent=91 // pred_fallthru
          _
        // Predicated region
        $region121: #{tpu_custom_call.1} parent=91 // pred_check
          %p746 = pneg %p347
        $region122: #{tpu_custom_call.1} parent=91 // pred_check_branch
          %748 = sbr.rel (%p746) target = $region124
        $region123: #{tpu_custom_call.1} parent=91 // pred_region
          %750 = dma.done [#allocation18], 16
        $region124: #{tpu_custom_call.1} parent=91 // pred_fallthru
          _
        // Predicated region
        $region125: #{tpu_custom_call.1} parent=91 // pred_check
          %p751 = pneg %p368
        $region126: #{tpu_custom_call.1} parent=91 // pred_check_branch
          %753 = sbr.rel (%p751) target = $region128
        $region127: #{tpu_custom_call.1} parent=91 // pred_region
          %755 = dma.done [#allocation18], 16
        $region128: #{tpu_custom_call.1} parent=91 // pred_fallthru
          _
        // Predicated region
        $region129: #{tpu_custom_call.1} parent=91 // pred_check
          %p756 = pneg %p389
        $region130: #{tpu_custom_call.1} parent=91 // pred_check_branch
          %758 = sbr.rel (%p756) target = $region132
        $region131: #{tpu_custom_call.1} parent=91 // pred_region
          %760 = dma.done [#allocation21], 512
        $region132: #{tpu_custom_call.1} parent=91 // pred_fallthru
          _
        // Predicated region
        $region133: #{tpu_custom_call.1} parent=91 // pred_check
          %p761 = pneg %p410
        $region134: #{tpu_custom_call.1} parent=91 // pred_check_branch
          %763 = sbr.rel (%p761) target = $region136
        $region135: #{tpu_custom_call.1} parent=91 // pred_region
          %765 = dma.done [#allocation21], 16
        $region136: #{tpu_custom_call.1} parent=91 // pred_fallthru
          _
        // Predicated region
        $region137: #{tpu_custom_call.1} parent=91 // pred_check
          %p766 = pneg %p452
        $region138: #{tpu_custom_call.1} parent=91 // pred_check_branch
          %768 = sbr.rel (%p766) target = $region140
        $region139: #{tpu_custom_call.1} parent=91 // pred_region
          %770 = dma.done [#allocation24], 16
        $region140: #{tpu_custom_call.1} parent=91 // pred_fallthru
          _
        %s771 = sand.u32 %s65, 1
        %s772 = scalar_lea.sflag [#allocation6], %s771
        %s773 = sand.u32 %s65, 1
        %s774 = smul.addr %s773, 8
        %s775 = scalar_lea.vmem [#allocation5], %s774
        %p776 = pneg %p78
        %p777 = pneg %p75
        %s778 = sand.u32 %s43, 1
        %s779 = scalar_lea.sflag [#allocation9], %s778
        %s780 = sand.u32 %s91, 1
        %s781 = smul.addr %s780, 8
        %s782 = scalar_lea.vmem [#allocation8], %s781
        %p783 = pneg %p104
        %p784 = pneg %p101
        %s785 = sand.u32 %s43, 1
        %s786 = scalar_lea.sflag [#allocation9], %s785
        %s787 = sand.u32 %s117, 1
        %s788 = scalar_lea.vmem [#allocation10], %s787
        %p789 = pneg %p130
        %p790 = pneg %p127
        %p791 = scmp.lt.s32.totalorder %s47, 1
        %s792 = scalar_select %p791, %s47, 1
        %p793 = scmp.lt.s32.totalorder %s48, 0
        %s794 = scalar_select %p793, %s48, 0
        %s795 = sadd.s32 %s794, %s792
        %s796 = smul.addr %s795, 8
        %s797 = scalar_lea.vmem %s3, %s796
        %p798 = pneg %p158
        %p799 = pneg %p155
        %p800 = pneg %p179
        %p801 = pneg %p176
        %p802 = pneg %p200
        %p803 = pneg %p197
        %p804 = pneg %p221
        %p805 = pneg %p218
        %p806 = pneg %p242
        %p807 = pneg %p239
        %p808 = pneg %p263
        %p809 = pneg %p260
        %p810 = pneg %p284
        %p811 = pneg %p281
        %p812 = pneg %p305
        %p813 = pneg %p302
        %p814 = pneg %p326
        %p815 = pneg %p323
        %p816 = pneg %p347
        %p817 = pneg %p344
        %p818 = pneg %p368
        %p819 = pneg %p365
        %p820 = pneg %p389
        %p821 = pneg %p386
        %p822 = pneg %p410
        %p823 = pneg %p407
        %p824 = pneg %p431
        %p825 = pneg %p428
        %p826 = pneg %p452
        %p827 = pneg %p449
        %p828 = pneg %p480
        %p829 = pneg %p477
        %s830 = sand.u32 %s467, 1
        %s831 = scalar_lea.sflag [#allocation7], %s830
        %s832 = sand.u32 %s467, 1
        %s833 = smul.addr %s832, 8
        %s834 = scalar_lea.vmem [#allocation25], %s833
        %p835 = scmp.lt.s32.totalorder %s47, 1
        %s836 = scalar_select %p835, %s47, 1
        %p837 = scmp.lt.s32.totalorder %s48, 0
        %s838 = scalar_select %p837, %s48, 0
        %s839 = sadd.s32 %s838, %s836
        %s840 = smul.addr %s839, 8
        %s841 = scalar_lea.vmem %s3, %s840
        %v842 = vld [vmem:[%s701] sm:$0xff]
        %v843 = vld [vmem:[%s4] sm:$0x1]
        %v844 = vld [vmem:[#allocation11] sm:$0x1]
        %p845 = scmp.eq.s32.totalorder %s48, 0
        // Predicated region
        $region141: #{tpu_custom_call.1} parent=91 // pred_check
          %p846 = pneg %p845
        $region142: #{tpu_custom_call.1} parent=91 // pred_check_branch
          %848 = sbr.rel (%p846) target = $region144
        $region143: #{tpu_custom_call.1} parent=91 // pred_region
          %v849 = vld [vmem:[%s711] sm:$0xff]
          %vm850 = vcmask 261120
          %v851 = vsel %vm850, %v849, 0.0
          %852 = vadd.xlane.f32.xlu0 %v851
          %v853 = vpop.xlane.xlu0 %852
          %v854 = vrcp.pop 32.0
          %v855 = vmul.f32 32.0, %v854
          %v856 = vsub.f32 1.0, %v855
          %v857 = vmul.f32 %v854, %v856
          %v858 = vadd.f32 %v854, %v857
          %vm859 = vweird.f32 %v854
          %v860 = vsel %vm859, %v854, %v858
          %v861 = vmul.f32 %v853, %v860
          %v862 = vsub.f32 %v849, %v861
          %v863 = vmul.f32 %v862, %v862
          %v864 = vsel %vm850, %v863, 0.0
          %865 = vadd.xlane.f32.xlu0 %v864
          %v866 = vpop.xlane.xlu0 %865
          %v867 = vmul.f32 %v866, %v860
          %v868 = vadd.f32 %v867, 1e-05
          %v869 = vrsqrt.pop %v868
          %v870 = vmul.f32 %v869, %v868
          %v871 = vmul.f32 %v870, %v869
          %v872 = vmul.f32 0.5, %v871
          %v873 = vsub.f32 1.5, %v872
          %v874 = vmul.f32 %v869, %v873
          %vm875 = vweird.f32 %v868
          %vm876 = vweird.f32 %v869
          %vm877 = vmor %vm875, %vm876
          %v878 = vsel %vm877, %v869, %v874
          %v879 = vmul.f32 %v862, %v878
          %v881 = vperm.slane %v843, 0
          %v883 = vmul.f32 %v879, %v881
          %v885 = vperm.slane %v844, 0
          %v887 = vadd.f32 %v883, %v885
          %v888 = vld [vmem:[%s8] sm:$0xff]
          %v889 = vld [vmem:[%s8 + $0x8] sm:$0xff]
          %v890 = vld [vmem:[%s8 + $0x10] sm:$0xff]
          %v891 = vld [vmem:[%s8 + $0x18] sm:$0xff]
          %v892 = vld [vmem:[#allocation14] sm:$0x1]
          %v894 = vperm.slane %v892, 0
          %v897 = vsel %vm850, %v887, 0
          %899 = vmatpush.msra.mxu0 0.0
          %900 = vmatpush.msra.mxu0 0.0
          %901 = vmatpush.msra.mxu0 0.0
          %902 = vmatpush.msra.mxu0 0.0
          %903 = vmatpush.msra.mxu0 0.0
          %904 = vmatpush.msra.mxu0 0.0
          %905 = vmatpush.msra.mxu0 0.0
          %906 = vmatpush.msra.mxu0 0.0
          %907 = vmatpush.msra.mxu0 0.0
          %908 = vmatpush.msra.mxu0 0.0
          %909 = vmatpush.msra.mxu0 0.0
          %910 = vmatpush.msra.mxu0 0.0
          %911 = vmatpush.msra.mxu0 %v891
          %912 = vmatpush.msra.mxu0 %v890
          %913 = vmatpush.msra.mxu0 %v889
          %914 = vmatpush.msra.mxu0 %v888
          %915 = vmatmul.f32.gmra.mxu0 %v897
          %v916 = vpop.f32.mrf.mxu0
          %v917 = vadd.f32 %v894, %v916
          %918 = vdwg.mxu0
          %919 = vxpose.xlu0.b32.start [1/16] %v917, 128
          %920 = vxpose.xlu0.b32.cont [2/16] 0.0, 128
          %921 = vxpose.xlu0.b32.cont [3/16] 0.0, 128
          %922 = vxpose.xlu0.b32.cont [4/16] 0.0, 128
          %923 = vxpose.xlu0.b32.cont [5/16] 0.0, 128
          %924 = vxpose.xlu0.b32.cont [6/16] 0.0, 128
          %925 = vxpose.xlu0.b32.cont [7/16] 0.0, 128
          %926 = vxpose.xlu0.b32.cont [8/16] 0.0, 128
          %927 = vxpose.xlu0.b32.cont [9/16] 0.0, 128
          %928 = vxpose.xlu0.b32.cont [10/16] 0.0, 128
          %929 = vxpose.xlu0.b32.cont [11/16] 0.0, 128
          %930 = vxpose.xlu0.b32.cont [12/16] 0.0, 128
          %931 = vxpose.xlu0.b32.cont [13/16] 0.0, 128
          %932 = vxpose.xlu0.b32.cont [14/16] 0.0, 128
          %933 = vxpose.xlu0.b32.cont [15/16] 0.0, 128
          %934 = vxpose.xlu0.b32.end [16/16] 0.0, 128
          %v935 = vpop.trf.xlu0
          %v936 = vpop.trf.xlu0
          %v937 = vpop.trf.xlu0
          %v938 = vpop.trf.xlu0
          %v939 = vpop.trf.xlu0
          %v940 = vpop.trf.xlu0
          %v941 = vpop.trf.xlu0
          %v942 = vpop.trf.xlu0
          %v943 = vpop.trf.xlu0
          %v944 = vpop.trf.xlu0
          %v945 = vpop.trf.xlu0
          %v946 = vpop.trf.xlu0
          %v947 = vpop.trf.xlu0
          %v948 = vpop.trf.xlu0
          %v949 = vpop.trf.xlu0
          %v950 = vpop.trf.xlu0
          %vm951 = vcmask 64512
          %952 = vst.msk [vmem:[#allocation2] sm:$0xff] %vm951, %v935
          %954 = vrot.lane.b32.xlu0 %v917, 96
          %v955 = vpop.permute.xlu0 %954
          %957 = vst.msk [vmem:[#allocation3] sm:$0xff] %vm951, %v955
          %958 = vrot.lane.b32.xlu0 %v917, 120
          %v959 = vpop.permute.xlu0 %958
          %961 = vxpose.xlu0.b32.start [1/16] %v959, 128
          %962 = vxpose.xlu0.b32.cont [2/16] 0.0, 128
          %963 = vxpose.xlu0.b32.cont [3/16] 0.0, 128
          %964 = vxpose.xlu0.b32.cont [4/16] 0.0, 128
          %965 = vxpose.xlu0.b32.cont [5/16] 0.0, 128
          %966 = vxpose.xlu0.b32.cont [6/16] 0.0, 128
          %967 = vxpose.xlu0.b32.cont [7/16] 0.0, 128
          %968 = vxpose.xlu0.b32.cont [8/16] 0.0, 128
          %969 = vxpose.xlu0.b32.cont [9/16] 0.0, 128
          %970 = vxpose.xlu0.b32.cont [10/16] 0.0, 128
          %971 = vxpose.xlu0.b32.cont [11/16] 0.0, 128
          %972 = vxpose.xlu0.b32.cont [12/16] 0.0, 128
          %973 = vxpose.xlu0.b32.cont [13/16] 0.0, 128
          %974 = vxpose.xlu0.b32.cont [14/16] 0.0, 128
          %975 = vxpose.xlu0.b32.cont [15/16] 0.0, 128
          %976 = vxpose.xlu0.b32.end [16/16] 0.0, 128
          %v977 = vpop.trf.xlu0
          %v978 = vpop.trf.xlu0
          %v979 = vpop.trf.xlu0
          %v980 = vpop.trf.xlu0
          %v981 = vpop.trf.xlu0
          %v982 = vpop.trf.xlu0
          %v983 = vpop.trf.xlu0
          %v984 = vpop.trf.xlu0
          %v985 = vpop.trf.xlu0
          %v986 = vpop.trf.xlu0
          %v987 = vpop.trf.xlu0
          %v988 = vpop.trf.xlu0
          %v989 = vpop.trf.xlu0
          %v990 = vpop.trf.xlu0
          %v991 = vpop.trf.xlu0
          %v992 = vpop.trf.xlu0
          %s993 = scalar_lea.vmem [#allocation2], 8
          %994 = vst.msk [vmem:[%s993] sm:$0xff] %vm951, %v977
          %995 = vrot.lane.b32.xlu0 %v917, 88
          %v996 = vpop.permute.xlu0 %995
          %s998 = scalar_lea.vmem [#allocation3], 8
          %999 = vst.msk [vmem:[%s998] sm:$0xff] %vm951, %v996
          %1000 = vrot.lane.b32.xlu0 %v917, 112
          %v1001 = vpop.permute.xlu0 %1000
          %1003 = vxpose.xlu0.b32.start [1/16] %v1001, 128
          %1004 = vxpose.xlu0.b32.cont [2/16] 0.0, 128
          %1005 = vxpose.xlu0.b32.cont [3/16] 0.0, 128
          %1006 = vxpose.xlu0.b32.cont [4/16] 0.0, 128
          %1007 = vxpose.xlu0.b32.cont [5/16] 0.0, 128
          %1008 = vxpose.xlu0.b32.cont [6/16] 0.0, 128
          %1009 = vxpose.xlu0.b32.cont [7/16] 0.0, 128
          %1010 = vxpose.xlu0.b32.cont [8/16] 0.0, 128
          %1011 = vxpose.xlu0.b32.cont [9/16] 0.0, 128
          %1012 = vxpose.xlu0.b32.cont [10/16] 0.0, 128
          %1013 = vxpose.xlu0.b32.cont [11/16] 0.0, 128
          %1014 = vxpose.xlu0.b32.cont [12/16] 0.0, 128
          %1015 = vxpose.xlu0.b32.cont [13/16] 0.0, 128
          %1016 = vxpose.xlu0.b32.cont [14/16] 0.0, 128
          %1017 = vxpose.xlu0.b32.cont [15/16] 0.0, 128
          %1018 = vxpose.xlu0.b32.end [16/16] 0.0, 128
          %v1019 = vpop.trf.xlu0
          %v1020 = vpop.trf.xlu0
          %v1021 = vpop.trf.xlu0
          %v1022 = vpop.trf.xlu0
          %v1023 = vpop.trf.xlu0
          %v1024 = vpop.trf.xlu0
          %v1025 = vpop.trf.xlu0
          %v1026 = vpop.trf.xlu0
          %v1027 = vpop.trf.xlu0
          %v1028 = vpop.trf.xlu0
          %v1029 = vpop.trf.xlu0
          %v1030 = vpop.trf.xlu0
          %v1031 = vpop.trf.xlu0
          %v1032 = vpop.trf.xlu0
          %v1033 = vpop.trf.xlu0
          %v1034 = vpop.trf.xlu0
          %s1035 = scalar_lea.vmem [#allocation2], 16
          %1036 = vst.msk [vmem:[%s1035] sm:$0xff] %vm951, %v1019
          %1037 = vrot.lane.b32.xlu0 %v917, 80
          %v1038 = vpop.permute.xlu0 %1037
          %s1040 = scalar_lea.vmem [#allocation3], 16
          %1041 = vst.msk [vmem:[%s1040] sm:$0xff] %vm951, %v1038
          %1042 = vrot.lane.b32.xlu0 %v917, 104
          %v1043 = vpop.permute.xlu0 %1042
          %1045 = vxpose.xlu0.b32.start [1/16] %v1043, 128
          %1046 = vxpose.xlu0.b32.cont [2/16] 0.0, 128
          %1047 = vxpose.xlu0.b32.cont [3/16] 0.0, 128
          %1048 = vxpose.xlu0.b32.cont [4/16] 0.0, 128
          %1049 = vxpose.xlu0.b32.cont [5/16] 0.0, 128
          %1050 = vxpose.xlu0.b32.cont [6/16] 0.0, 128
          %1051 = vxpose.xlu0.b32.cont [7/16] 0.0, 128
          %1052 = vxpose.xlu0.b32.cont [8/16] 0.0, 128
          %1053 = vxpose.xlu0.b32.cont [9/16] 0.0, 128
          %1054 = vxpose.xlu0.b32.cont [10/16] 0.0, 128
          %1055 = vxpose.xlu0.b32.cont [11/16] 0.0, 128
          %1056 = vxpose.xlu0.b32.cont [12/16] 0.0, 128
          %1057 = vxpose.xlu0.b32.cont [13/16] 0.0, 128
          %1058 = vxpose.xlu0.b32.cont [14/16] 0.0, 128
          %1059 = vxpose.xlu0.b32.cont [15/16] 0.0, 128
          %1060 = vxpose.xlu0.b32.end [16/16] 0.0, 128
          %v1061 = vpop.trf.xlu0
          %v1062 = vpop.trf.xlu0
          %v1063 = vpop.trf.xlu0
          %v1064 = vpop.trf.xlu0
          %v1065 = vpop.trf.xlu0
          %v1066 = vpop.trf.xlu0
          %v1067 = vpop.trf.xlu0
          %v1068 = vpop.trf.xlu0
          %v1069 = vpop.trf.xlu0
          %v1070 = vpop.trf.xlu0
          %v1071 = vpop.trf.xlu0
          %v1072 = vpop.trf.xlu0
          %v1073 = vpop.trf.xlu0
          %v1074 = vpop.trf.xlu0
          %v1075 = vpop.trf.xlu0
          %v1076 = vpop.trf.xlu0
          %s1077 = scalar_lea.vmem [#allocation2], 24
          %1078 = vst.msk [vmem:[%s1077] sm:$0xff] %vm951, %v1061
          %1079 = vrot.lane.b32.xlu0 %v917, 72
          %v1080 = vpop.permute.xlu0 %1079
          %s1082 = scalar_lea.vmem [#allocation3], 24
          %1083 = vst.msk [vmem:[%s1082] sm:$0xff] %vm951, %v1080
        $region144: #{tpu_custom_call.1} parent=91 // pred_fallthru
          _
        %vm1084 = vcmask 261120
        %v1085 = vsel %vm1084, %v842, 0.0
        %1086 = vadd.xlane.f32.xlu0 %v1085
        %v1087 = vpop.xlane.xlu0 %1086
        %v1088 = vrcp.pop 32.0
        %v1089 = vmul.f32 32.0, %v1088
        %v1090 = vsub.f32 1.0, %v1089
        %v1091 = vmul.f32 %v1088, %v1090
        %v1092 = vadd.f32 %v1088, %v1091
        %vm1093 = vweird.f32 %v1088
        %v1094 = vsel %vm1093, %v1088, %v1092
        %v1095 = vmul.f32 %v1087, %v1094
        %v1096 = vsub.f32 %v842, %v1095
        %v1097 = vmul.f32 %v1096, %v1096
        %v1098 = vsel %vm1084, %v1097, 0.0
        %1099 = vadd.xlane.f32.xlu0 %v1098
        %v1100 = vpop.xlane.xlu0 %1099
        %v1101 = vmul.f32 %v1100, %v1094
        %v1102 = vadd.f32 %v1101, 1e-05
        %v1103 = vrsqrt.pop %v1102
        %v1104 = vmul.f32 %v1103, %v1102
        %v1105 = vmul.f32 %v1104, %v1103
        %v1106 = vmul.f32 0.5, %v1105
        %v1107 = vsub.f32 1.5, %v1106
        %v1108 = vmul.f32 %v1103, %v1107
        %vm1109 = vweird.f32 %v1102
        %vm1110 = vweird.f32 %v1103
        %vm1111 = vmor %vm1109, %vm1110
        %v1112 = vsel %vm1111, %v1103, %v1108
        %v1113 = vmul.f32 %v1096, %v1112
        %v1115 = vperm.slane %v843, 0
        %v1117 = vmul.f32 %v1113, %v1115
        %v1119 = vperm.slane %v844, 0
        %v1121 = vadd.f32 %v1117, %v1119
        %v1122 = vld [vmem:[%s6] sm:$0xff]
        %v1123 = vld [vmem:[%s6 + $0x8] sm:$0xff]
        %v1124 = vld [vmem:[%s6 + $0x10] sm:$0xff]
        %v1125 = vld [vmem:[%s6 + $0x18] sm:$0xff]
        %v1126 = vld [vmem:[#allocation13] sm:$0x1]
        %v1128 = vperm.slane %v1126, 0
        %v1131 = vsel %vm1084, %v1121, 0
        %1133 = vmatpush.msra.mxu0 0.0
        %1134 = vmatpush.msra.mxu0 0.0
        %1135 = vmatpush.msra.mxu0 0.0
        %1136 = vmatpush.msra.mxu0 0.0
        %1137 = vmatpush.msra.mxu0 0.0
        %1138 = vmatpush.msra.mxu0 0.0
        %1139 = vmatpush.msra.mxu0 0.0
        %1140 = vmatpush.msra.mxu0 0.0
        %1141 = vmatpush.msra.mxu0 0.0
        %1142 = vmatpush.msra.mxu0 0.0
        %1143 = vmatpush.msra.mxu0 0.0
        %1144 = vmatpush.msra.mxu0 0.0
        %1145 = vmatpush.msra.mxu0 %v1125
        %1146 = vmatpush.msra.mxu0 %v1124
        %1147 = vmatpush.msra.mxu0 %v1123
        %1148 = vmatpush.msra.mxu0 %v1122
        %1149 = vmatmul.f32.gmra.mxu0 %v1131
        %v1150 = vpop.f32.mrf.mxu0
        %v1151 = vadd.f32 %v1128, %v1150
        %1152 = vdwg.mxu0
        %v1153 = vld [vmem:[%s720] sm:$0x1]
        %v1154 = vld [vmem:[#allocation2] sm:$0xff]
        %v1156 = vperm.slane %v1153, 0
        %vm1158 = vcmask 64512
        %v1160 = vsel %vm1158, %v1151, 0
        %1162 = vmatpush.msra.mxu0 0.0
        %1163 = vmatpush.msra.mxu0 0.0
        %1164 = vmatpush.msra.mxu0 0.0
        %1165 = vmatpush.msra.mxu0 0.0
        %1166 = vmatpush.msra.mxu0 0.0
        %1167 = vmatpush.msra.mxu0 0.0
        %1168 = vmatpush.msra.mxu0 0.0
        %1169 = vmatpush.msra.mxu0 0.0
        %1170 = vmatpush.msra.mxu0 0.0
        %1171 = vmatpush.msra.mxu0 0.0
        %1172 = vmatpush.msra.mxu0 0.0
        %1173 = vmatpush.msra.mxu0 0.0
        %1174 = vmatpush.msra.mxu0 0.0
        %1175 = vmatpush.msra.mxu0 0.0
        %1176 = vmatpush.msra.mxu0 0.0
        %1177 = vmatpush.msra.mxu0 %v1154
        %1178 = vmatmul.f32.gmra.mxu0 %v1160
        %v1179 = vpop.f32.mrf.mxu0
        %v1180 = vadd.f32 %v1156, %v1179
        %1181 = vdwg.mxu0
        %v1182 = vsel %vm1158, %v1180, -inf
        %1183 = vmax.xlane.f32.xlu0 %v1182
        %v1184 = vpop.xlane.xlu0 %1183
        %v1185 = vsub.f32 %v1180, %v1184
        %v1186 = vmul.f32 %v1185, 1.442695
        %v1187 = vpow.pop %v1186
        %v1188 = vsel %vm1158, %v1187, 0.0
        %1189 = vadd.xlane.f32.xlu0 %v1188
        %v1190 = vpop.xlane.xlu0 %1189
        %v1191 = vld [vmem:[#allocation3] sm:$0xff]
        %v1193 = vsel %vm1158, %v1187, 0
        %1195 = vmatpush.msra.mxu0 0.0
        %1196 = vmatpush.msra.mxu0 0.0
        %1197 = vmatpush.msra.mxu0 0.0
        %1198 = vmatpush.msra.mxu0 0.0
        %1199 = vmatpush.msra.mxu0 0.0
        %1200 = vmatpush.msra.mxu0 0.0
        %1201 = vmatpush.msra.mxu0 0.0
        %1202 = vmatpush.msra.mxu0 0.0
        %1203 = vmatpush.msra.mxu0 0.0
        %1204 = vmatpush.msra.mxu0 0.0
        %1205 = vmatpush.msra.mxu0 0.0
        %1206 = vmatpush.msra.mxu0 0.0
        %1207 = vmatpush.msra.mxu0 0.0
        %1208 = vmatpush.msra.mxu0 0.0
        %1209 = vmatpush.msra.mxu0 0.0
        %1210 = vmatpush.msra.mxu0 %v1191
        %1211 = vmatmul.f32.gmra.mxu0 %v1193
        %v1212 = vpop.f32.mrf.mxu0
        %v1213 = vadd.f32 0.0, %v1212
        %1214 = vdwg.mxu0
        %v1215 = vrcp.pop %v1190
        %v1216 = vmul.f32 %v1190, %v1215
        %v1217 = vsub.f32 1.0, %v1216
        %v1218 = vmul.f32 %v1215, %v1217
        %v1219 = vadd.f32 %v1215, %v1218
        %vm1220 = vweird.f32 %v1190
        %vm1221 = vweird.f32 %v1215
        %vm1222 = vmor %vm1220, %vm1221
        %v1223 = vsel %vm1222, %v1215, %v1219
        %v1224 = vand.u32 2147483647, %v1190
        %vm1225 = vcmp.eq.f32.partialorder %v1224, 8.507059e+37
        %v1226 = vand.u32 %v1190, 2147483648
        %v1227 = vor.u32 1.1754944e-38, %v1226
        %v1228 = vsel %vm1225, %v1227, %v1223
        %v1229 = vmul.f32 %v1213, %v1228
        %1230 = vst.msk [vmem:[#allocation4] sm:$0xff] %vm1158, %v1229
        %s1231 = scalar_lea.vmem [#allocation2], 8
        %v1232 = vld [vmem:[%s1231] sm:$0xff]
        %1233 = vrot.lane.b32.xlu0 %v1151, 120
        %v1234 = vpop.permute.xlu0 %1233
        %v1235 = vsel %vm1158, %v1234, 0
        %1237 = vmatpush.msra.mxu0 0.0
        %1238 = vmatpush.msra.mxu0 0.0
        %1239 = vmatpush.msra.mxu0 0.0
        %1240 = vmatpush.msra.mxu0 0.0
        %1241 = vmatpush.msra.mxu0 0.0
        %1242 = vmatpush.msra.mxu0 0.0
        %1243 = vmatpush.msra.mxu0 0.0
        %1244 = vmatpush.msra.mxu0 0.0
        %1245 = vmatpush.msra.mxu0 0.0
        %1246 = vmatpush.msra.mxu0 0.0
        %1247 = vmatpush.msra.mxu0 0.0
        %1248 = vmatpush.msra.mxu0 0.0
        %1249 = vmatpush.msra.mxu0 0.0
        %1250 = vmatpush.msra.mxu0 0.0
        %1251 = vmatpush.msra.mxu0 0.0
        %1252 = vmatpush.msra.mxu0 %v1232
        %1253 = vmatmul.f32.gmra.mxu0 %v1235
        %v1254 = vpop.f32.mrf.mxu0
        %v1255 = vadd.f32 %v1156, %v1254
        %1256 = vdwg.mxu0
        %v1257 = vsel %vm1158, %v1255, -inf
        %1258 = vmax.xlane.f32.xlu0 %v1257
        %v1259 = vpop.xlane.xlu0 %1258
        %v1260 = vsub.f32 %v1255, %v1259
        %v1261 = vmul.f32 %v1260, 1.442695
        %v1262 = vpow.pop %v1261
        %v1263 = vsel %vm1158, %v1262, 0.0
        %1264 = vadd.xlane.f32.xlu0 %v1263
        %v1265 = vpop.xlane.xlu0 %1264
        %s1266 = scalar_lea.vmem [#allocation3], 8
        %v1267 = vld [vmem:[%s1266] sm:$0xff]
        %v1269 = vsel %vm1158, %v1262, 0
        %1271 = vmatpush.msra.mxu0 0.0
        %1272 = vmatpush.msra.mxu0 0.0
        %1273 = vmatpush.msra.mxu0 0.0
        %1274 = vmatpush.msra.mxu0 0.0
        %1275 = vmatpush.msra.mxu0 0.0
        %1276 = vmatpush.msra.mxu0 0.0
        %1277 = vmatpush.msra.mxu0 0.0
        %1278 = vmatpush.msra.mxu0 0.0
        %1279 = vmatpush.msra.mxu0 0.0
        %1280 = vmatpush.msra.mxu0 0.0
        %1281 = vmatpush.msra.mxu0 0.0
        %1282 = vmatpush.msra.mxu0 0.0
        %1283 = vmatpush.msra.mxu0 0.0
        %1284 = vmatpush.msra.mxu0 0.0
        %1285 = vmatpush.msra.mxu0 0.0
        %1286 = vmatpush.msra.mxu0 %v1267
        %1287 = vmatmul.f32.gmra.mxu0 %v1269
        %v1288 = vpop.f32.mrf.mxu0
        %v1289 = vadd.f32 0.0, %v1288
        %1290 = vdwg.mxu0
        %v1291 = vrcp.pop %v1265
        %v1292 = vmul.f32 %v1265, %v1291
        %v1293 = vsub.f32 1.0, %v1292
        %v1294 = vmul.f32 %v1291, %v1293
        %v1295 = vadd.f32 %v1291, %v1294
        %vm1296 = vweird.f32 %v1265
        %vm1297 = vweird.f32 %v1291
        %vm1298 = vmor %vm1296, %vm1297
        %v1299 = vsel %vm1298, %v1291, %v1295
        %v1300 = vand.u32 2147483647, %v1265
        %vm1301 = vcmp.eq.f32.partialorder %v1300, 8.507059e+37
        %v1302 = vand.u32 %v1265, 2147483648
        %v1303 = vor.u32 1.1754944e-38, %v1302
        %v1304 = vsel %vm1301, %v1303, %v1299
        %v1305 = vmul.f32 %v1289, %v1304
        %1307 = vrot.lane.b32.xlu0 %v1305, 8
        %v1308 = vpop.permute.xlu0 %1307
        %vm1310 = vcmask 130112
        %1311 = vst.msk [vmem:[#allocation4] sm:$0xff] %vm1310, %v1308
        %s1312 = scalar_lea.vmem [#allocation2], 16
        %v1313 = vld [vmem:[%s1312] sm:$0xff]
        %1314 = vrot.lane.b32.xlu0 %v1151, 112
        %v1315 = vpop.permute.xlu0 %1314
        %v1316 = vsel %vm1158, %v1315, 0
        %1318 = vmatpush.msra.mxu0 0.0
        %1319 = vmatpush.msra.mxu0 0.0
        %1320 = vmatpush.msra.mxu0 0.0
        %1321 = vmatpush.msra.mxu0 0.0
        %1322 = vmatpush.msra.mxu0 0.0
        %1323 = vmatpush.msra.mxu0 0.0
        %1324 = vmatpush.msra.mxu0 0.0
        %1325 = vmatpush.msra.mxu0 0.0
        %1326 = vmatpush.msra.mxu0 0.0
        %1327 = vmatpush.msra.mxu0 0.0
        %1328 = vmatpush.msra.mxu0 0.0
        %1329 = vmatpush.msra.mxu0 0.0
        %1330 = vmatpush.msra.mxu0 0.0
        %1331 = vmatpush.msra.mxu0 0.0
        %1332 = vmatpush.msra.mxu0 0.0
        %1333 = vmatpush.msra.mxu0 %v1313
        %1334 = vmatmul.f32.gmra.mxu0 %v1316
        %v1335 = vpop.f32.mrf.mxu0
        %v1336 = vadd.f32 %v1156, %v1335
        %1337 = vdwg.mxu0
        %v1338 = vsel %vm1158, %v1336, -inf
        %1339 = vmax.xlane.f32.xlu0 %v1338
        %v1340 = vpop.xlane.xlu0 %1339
        %v1341 = vsub.f32 %v1336, %v1340
        %v1342 = vmul.f32 %v1341, 1.442695
        %v1343 = vpow.pop %v1342
        %v1344 = vsel %vm1158, %v1343, 0.0
        %1345 = vadd.xlane.f32.xlu0 %v1344
        %v1346 = vpop.xlane.xlu0 %1345
        %s1347 = scalar_lea.vmem [#allocation3], 16
        %v1348 = vld [vmem:[%s1347] sm:$0xff]
        %v1350 = vsel %vm1158, %v1343, 0
        %1352 = vmatpush.msra.mxu0 0.0
        %1353 = vmatpush.msra.mxu0 0.0
        %1354 = vmatpush.msra.mxu0 0.0
        %1355 = vmatpush.msra.mxu0 0.0
        %1356 = vmatpush.msra.mxu0 0.0
        %1357 = vmatpush.msra.mxu0 0.0
        %1358 = vmatpush.msra.mxu0 0.0
        %1359 = vmatpush.msra.mxu0 0.0
        %1360 = vmatpush.msra.mxu0 0.0
        %1361 = vmatpush.msra.mxu0 0.0
        %1362 = vmatpush.msra.mxu0 0.0
        %1363 = vmatpush.msra.mxu0 0.0
        %1364 = vmatpush.msra.mxu0 0.0
        %1365 = vmatpush.msra.mxu0 0.0
        %1366 = vmatpush.msra.mxu0 0.0
        %1367 = vmatpush.msra.mxu0 %v1348
        %1368 = vmatmul.f32.gmra.mxu0 %v1350
        %v1369 = vpop.f32.mrf.mxu0
        %v1370 = vadd.f32 0.0, %v1369
        %1371 = vdwg.mxu0
        %v1372 = vrcp.pop %v1346
        %v1373 = vmul.f32 %v1346, %v1372
        %v1374 = vsub.f32 1.0, %v1373
        %v1375 = vmul.f32 %v1372, %v1374
        %v1376 = vadd.f32 %v1372, %v1375
        %vm1377 = vweird.f32 %v1346
        %vm1378 = vweird.f32 %v1372
        %vm1379 = vmor %vm1377, %vm1378
        %v1380 = vsel %vm1379, %v1372, %v1376
        %v1381 = vand.u32 2147483647, %v1346
        %vm1382 = vcmp.eq.f32.partialorder %v1381, 8.507059e+37
        %v1383 = vand.u32 %v1346, 2147483648
        %v1384 = vor.u32 1.1754944e-38, %v1383
        %v1385 = vsel %vm1382, %v1384, %v1380
        %v1386 = vmul.f32 %v1370, %v1385
        %1388 = vrot.lane.b32.xlu0 %v1386, 16
        %v1389 = vpop.permute.xlu0 %1388
        %vm1391 = vcmask 195712
        %1392 = vst.msk [vmem:[#allocation4] sm:$0xff] %vm1391, %v1389
        %s1393 = scalar_lea.vmem [#allocation2], 24
        %v1394 = vld [vmem:[%s1393] sm:$0xff]
        %1395 = vrot.lane.b32.xlu0 %v1151, 104
        %v1396 = vpop.permute.xlu0 %1395
        %v1397 = vsel %vm1158, %v1396, 0
        %1399 = vmatpush.msra.mxu0 0.0
        %1400 = vmatpush.msra.mxu0 0.0
        %1401 = vmatpush.msra.mxu0 0.0
        %1402 = vmatpush.msra.mxu0 0.0
        %1403 = vmatpush.msra.mxu0 0.0
        %1404 = vmatpush.msra.mxu0 0.0
        %1405 = vmatpush.msra.mxu0 0.0
        %1406 = vmatpush.msra.mxu0 0.0
        %1407 = vmatpush.msra.mxu0 0.0
        %1408 = vmatpush.msra.mxu0 0.0
        %1409 = vmatpush.msra.mxu0 0.0
        %1410 = vmatpush.msra.mxu0 0.0
        %1411 = vmatpush.msra.mxu0 0.0
        %1412 = vmatpush.msra.mxu0 0.0
        %1413 = vmatpush.msra.mxu0 0.0
        %1414 = vmatpush.msra.mxu0 %v1394
        %1415 = vmatmul.f32.gmra.mxu0 %v1397
        %v1416 = vpop.f32.mrf.mxu0
        %v1417 = vadd.f32 %v1156, %v1416
        %1418 = vdwg.mxu0
        %v1419 = vsel %vm1158, %v1417, -inf
        %1420 = vmax.xlane.f32.xlu0 %v1419
        %v1421 = vpop.xlane.xlu0 %1420
        %v1422 = vsub.f32 %v1417, %v1421
        %v1423 = vmul.f32 %v1422, 1.442695
        %v1424 = vpow.pop %v1423
        %v1425 = vsel %vm1158, %v1424, 0.0
        %1426 = vadd.xlane.f32.xlu0 %v1425
        %v1427 = vpop.xlane.xlu0 %1426
        %s1428 = scalar_lea.vmem [#allocation3], 24
        %v1429 = vld [vmem:[%s1428] sm:$0xff]
        %v1431 = vsel %vm1158, %v1424, 0
        %1433 = vmatpush.msra.mxu0 0.0
        %1434 = vmatpush.msra.mxu0 0.0
        %1435 = vmatpush.msra.mxu0 0.0
        %1436 = vmatpush.msra.mxu0 0.0
        %1437 = vmatpush.msra.mxu0 0.0
        %1438 = vmatpush.msra.mxu0 0.0
        %1439 = vmatpush.msra.mxu0 0.0
        %1440 = vmatpush.msra.mxu0 0.0
        %1441 = vmatpush.msra.mxu0 0.0
        %1442 = vmatpush.msra.mxu0 0.0
        %1443 = vmatpush.msra.mxu0 0.0
        %1444 = vmatpush.msra.mxu0 0.0
        %1445 = vmatpush.msra.mxu0 0.0
        %1446 = vmatpush.msra.mxu0 0.0
        %1447 = vmatpush.msra.mxu0 0.0
        %1448 = vmatpush.msra.mxu0 %v1429
        %1449 = vmatmul.f32.gmra.mxu0 %v1431
        %v1450 = vpop.f32.mrf.mxu0
        %v1451 = vadd.f32 0.0, %v1450
        %1452 = vdwg.mxu0
        %v1453 = vrcp.pop %v1427
        %v1454 = vmul.f32 %v1427, %v1453
        %v1455 = vsub.f32 1.0, %v1454
        %v1456 = vmul.f32 %v1453, %v1455
        %v1457 = vadd.f32 %v1453, %v1456
        %vm1458 = vweird.f32 %v1427
        %vm1459 = vweird.f32 %v1453
        %vm1460 = vmor %vm1458, %vm1459
        %v1461 = vsel %vm1460, %v1453, %v1457
        %v1462 = vand.u32 2147483647, %v1427
        %vm1463 = vcmp.eq.f32.partialorder %v1462, 8.507059e+37
        %v1464 = vand.u32 %v1427, 2147483648
        %v1465 = vor.u32 1.1754944e-38, %v1464
        %v1466 = vsel %vm1463, %v1465, %v1461
        %v1467 = vmul.f32 %v1451, %v1466
        %1469 = vrot.lane.b32.xlu0 %v1467, 24
        %v1470 = vpop.permute.xlu0 %1469
        %vm1472 = vcmask 261312
        %1473 = vst.msk [vmem:[#allocation4] sm:$0xff] %vm1472, %v1470
        %v1474 = vld [vmem:[#allocation4] sm:$0xff]
        %v1475 = vld [vmem:[%s10] sm:$0xff]
        %v1476 = vld [vmem:[%s10 + $0x8] sm:$0xff]
        %v1477 = vld [vmem:[%s10 + $0x10] sm:$0xff]
        %v1478 = vld [vmem:[%s10 + $0x18] sm:$0xff]
        %v1479 = vld [vmem:[#allocation16] sm:$0x1]
        %v1481 = vperm.slane %v1479, 0
        %v1484 = vsel %vm1084, %v1474, 0
        %1486 = vmatpush.msra.mxu0 0.0
        %1487 = vmatpush.msra.mxu0 0.0
        %1488 = vmatpush.msra.mxu0 0.0
        %1489 = vmatpush.msra.mxu0 0.0
        %1490 = vmatpush.msra.mxu0 0.0
        %1491 = vmatpush.msra.mxu0 0.0
        %1492 = vmatpush.msra.mxu0 0.0
        %1493 = vmatpush.msra.mxu0 0.0
        %1494 = vmatpush.msra.mxu0 0.0
        %1495 = vmatpush.msra.mxu0 0.0
        %1496 = vmatpush.msra.mxu0 0.0
        %1497 = vmatpush.msra.mxu0 0.0
        %1498 = vmatpush.msra.mxu0 %v1478
        %1499 = vmatpush.msra.mxu0 %v1477
        %1500 = vmatpush.msra.mxu0 %v1476
        %1501 = vmatpush.msra.mxu0 %v1475
        %1502 = vmatmul.f32.gmra.mxu0 %v1484
        %v1503 = vpop.f32.mrf.mxu0
        %v1504 = vadd.f32 %v1481, %v1503
        %1505 = vdwg.mxu0
        %v1506 = vadd.f32 %v842, %v1504
        %v1507 = vld [vmem:[%s841] sm:$0xff]
        %v1508 = vld [vmem:[#allocation17] sm:$0x1]
        %v1509 = vld [vmem:[#allocation19] sm:$0x1]
        %v1510 = vsel %vm1084, %v1506, 0.0
        %1511 = vadd.xlane.f32.xlu0 %v1510
        %v1512 = vpop.xlane.xlu0 %1511
        %v1513 = vmul.f32 %v1512, %v1094
        %v1514 = vsub.f32 %v1506, %v1513
        %v1515 = vmul.f32 %v1514, %v1514
        %v1516 = vsel %vm1084, %v1515, 0.0
        %1517 = vadd.xlane.f32.xlu0 %v1516
        %v1518 = vpop.xlane.xlu0 %1517
        %v1519 = vmul.f32 %v1518, %v1094
        %v1520 = vadd.f32 %v1519, 1e-05
        %v1521 = vrsqrt.pop %v1520
        %v1522 = vmul.f32 %v1521, %v1520
        %v1523 = vmul.f32 %v1522, %v1521
        %v1524 = vmul.f32 0.5, %v1523
        %v1525 = vsub.f32 1.5, %v1524
        %v1526 = vmul.f32 %v1521, %v1525
        %vm1527 = vweird.f32 %v1520
        %vm1528 = vweird.f32 %v1521
        %vm1529 = vmor %vm1527, %vm1528
        %v1530 = vsel %vm1529, %v1521, %v1526
        %v1531 = vmul.f32 %v1514, %v1530
        %v1533 = vperm.slane %v1508, 0
        %v1535 = vmul.f32 %v1531, %v1533
        %v1537 = vperm.slane %v1509, 0
        %v1539 = vadd.f32 %v1535, %v1537
        %v1540 = vld [vmem:[#allocation20] sm:$0xff]
        %v1541 = vld [vmem:[#allocation20 + $0x8] sm:$0xff]
        %v1542 = vld [vmem:[#allocation20 + $0x10] sm:$0xff]
        %v1543 = vld [vmem:[#allocation20 + $0x18] sm:$0xff]
        %v1544 = vld [vmem:[#allocation22] sm:$0x1]
        %v1546 = vperm.slane %v1544, 0
        %v1549 = vsel %vm1084, %v1539, 0
        %1551 = vmatpush.msra.mxu0 0.0
        %1552 = vmatpush.msra.mxu0 0.0
        %1553 = vmatpush.msra.mxu0 0.0
        %1554 = vmatpush.msra.mxu0 0.0
        %1555 = vmatpush.msra.mxu0 0.0
        %1556 = vmatpush.msra.mxu0 0.0
        %1557 = vmatpush.msra.mxu0 0.0
        %1558 = vmatpush.msra.mxu0 0.0
        %1559 = vmatpush.msra.mxu0 0.0
        %1560 = vmatpush.msra.mxu0 0.0
        %1561 = vmatpush.msra.mxu0 0.0
        %1562 = vmatpush.msra.mxu0 0.0
        %1563 = vmatpush.msra.mxu0 %v1543
        %1564 = vmatpush.msra.mxu0 %v1542
        %1565 = vmatpush.msra.mxu0 %v1541
        %1566 = vmatpush.msra.mxu0 %v1540
        %1567 = vmatmul.f32.gmra.mxu0 %v1549
        %v1568 = vpop.f32.mrf.mxu0
        %v1569 = vadd.f32 %v1546, %v1568
        %1570 = vdwg.mxu0
        %v1571 = vmax.f32 %v1569, 0.0
        %1573 = vset.pattern.permute.xlu0 0
        %1574 = vperm.xlu0 %1573, %v1507
        %v1575 = vpop.permute.xlu0 %1574
        %v1577 = vmul.f32 %v1571, %v1575
        %v1578 = vld [vmem:[%s16] sm:$0xff]
        %v1579 = vld [vmem:[%s16 + $0x8] sm:$0xff]
        %v1580 = vld [vmem:[%s16 + $0x10] sm:$0xff]
        %v1581 = vld [vmem:[%s16 + $0x18] sm:$0xff]
        %v1582 = vld [vmem:[%s16 + $0x20] sm:$0xff]
        %v1583 = vld [vmem:[%s16 + $0x28] sm:$0xff]
        %v1584 = vld [vmem:[%s16 + $0x30] sm:$0xff]
        %v1585 = vld [vmem:[%s16 + $0x38] sm:$0xff]
        %v1586 = vld [vmem:[#allocation23] sm:$0x1]
        %v1588 = vperm.slane %v1586, 0
        %vm1590 = vcmask 523264
        %v1592 = vsel %vm1590, %v1577, 0
        %1594 = vmatpush.msra.mxu0 0.0
        %1595 = vmatpush.msra.mxu0 0.0
        %1596 = vmatpush.msra.mxu0 0.0
        %1597 = vmatpush.msra.mxu0 0.0
        %1598 = vmatpush.msra.mxu0 0.0
        %1599 = vmatpush.msra.mxu0 0.0
        %1600 = vmatpush.msra.mxu0 0.0
        %1601 = vmatpush.msra.mxu0 0.0
        %1602 = vmatpush.msra.mxu0 %v1585
        %1603 = vmatpush.msra.mxu0 %v1584
        %1604 = vmatpush.msra.mxu0 %v1583
        %1605 = vmatpush.msra.mxu0 %v1582
        %1606 = vmatpush.msra.mxu0 %v1581
        %1607 = vmatpush.msra.mxu0 %v1580
        %1608 = vmatpush.msra.mxu0 %v1579
        %1609 = vmatpush.msra.mxu0 %v1578
        %1610 = vmatmul.f32.gmra.mxu0 %v1592
        %v1611 = vpop.f32.mrf.mxu0
        %v1612 = vadd.f32 %v1588, %v1611
        %1613 = vdwg.mxu0
        %v1614 = vmul.f32 %v1612, %v1575
        %v1615 = vadd.f32 %v1506, %v1614
        %1616 = vst.msk [vmem:[%s834] sm:$0xff] %vm1084, %v1615
        %s1617 = sand.u32 %s467, 1
        %s1618 = scalar_lea.sflag [#allocation7], %s1617
        %s1619 = sand.u32 %s467, 1
        %s1620 = smul.addr %s1619, 8
        %s1621 = scalar_lea.vmem [#allocation25], %s1620
        // Predicated region
        $region145: #{tpu_custom_call.1} parent=91 // pred_check
          %p1622 = pneg %p477
        $region146: #{tpu_custom_call.1} parent=91 // pred_check_branch
          %1624 = sbr.rel (%p1622) target = $region148
        $region147: #{tpu_custom_call.1} parent=91 // pred_region
          %1626 = vsyncadd %s1618, 0
          %s1627 = sadd.s32 %s48, %s47
          %s1628 = smul.addr %s1627, 8
          %s1629 = scalar_lea.hbm %s18, %s1628
          %s1631 = sshll.u32 %s1621, 4
          %s1632 = int_to_ptr.vmem [resolvable:$true] %s1631
          %s1633 = sshll.u32 %s1629, 4
          %s1634 = int_to_ptr.hbm [resolvable:$true] %s1633
          %1636 = dma.vmem_to_hbm [thread:$0]  %s1632, 128, %s1634, %s1618
        $region148: #{tpu_custom_call.1} parent=91 // pred_fallthru
          _
      $region92: #{tpu_custom_call.1} parent=5 // pred_fallthru
        _
      %p1637 = scmp.le.s32.totalorder 2, %s38
      // Predicated region
      $region149: #{tpu_custom_call.1} parent=5 // pred_check
        %p1638 = pneg %p1637
      $region150: #{tpu_custom_call.1} parent=5 // pred_check_branch
        %1640 = sbr.rel (%p1638) target = $region152
      $region151: #{tpu_custom_call.1} parent=5 // pred_region
        %s1641 = ssub.s32 %s38, 2
        // Predicated region
        $region153: #{tpu_custom_call.1} parent=151 // pred_check
          %p1642 = pneg %p483
        $region154: #{tpu_custom_call.1} parent=151 // pred_check_branch
          %1644 = sbr.rel (%p1642) target = $region156
        $region155: #{tpu_custom_call.1} parent=151 // pred_region
          %s1645 = sand.u32 %s468, 1
          %s1646 = scalar_lea.sflag [#allocation7], %s1645
          %s1647 = sand.u32 %s468, 1
          %s1648 = smul.addr %s1647, 8
          %s1649 = scalar_lea.vmem [#allocation25], %s1648
          %1651 = dma.done %s1646, 128
        $region156: #{tpu_custom_call.1} parent=151 // pred_fallthru
          _
      $region152: #{tpu_custom_call.1} parent=5 // pred_fallthru
        _
    $region6: #{tpu_custom_call.1} parent=1 // loop_footer
      %s42 = sadd.s32 1, %s38
    $region7: #{tpu_custom_call.1} parent=1 // loop_footer_branch
      %37 = sbr.rel target = $region3
    $region8: #{tpu_custom_call.1} parent=1 // loop_exit
      _
    %1652 = vsyncpa [#allocation6], 1
    %s1653 = scalar_lea.sflag [#allocation6], 1
    %1654 = vsyncpa %s1653, 1
    %1655 = vsyncpa [#allocation9], 1
    %s1656 = scalar_lea.sflag [#allocation9], 1
    %1657 = vsyncpa %s1656, 1
    %1658 = vsyncpa [#allocation12], 1
    %1659 = vsyncpa [#allocation15], 1
    %1660 = vsyncpa [#allocation18], 1
    %1661 = vsyncpa [#allocation21], 1
    %1662 = vsyncpa [#allocation24], 1
    %1663 = vsyncpa [#allocation7], 1
    %s1664 = scalar_lea.sflag [#allocation7], 1
    %1665 = vsyncpa %s1664, 1

</llo_original>
